<compile_context>
chip_gen: v7x
topology: tpu7x:2x2x1
jax: 0.10.0
libtpu: 0.0.40
codegen_flags: <defaults>
</compile_context>

<pallas_src>
import functools
import math

import jax
import jax.numpy as jnp
from jax.experimental import pallas as pl
from jax.experimental.pallas import tpu as pltpu


# ---------------------------------------------------------------------------
# Fused whole-encoder Pallas kernel (one batch element per grid step)
# ---------------------------------------------------------------------------

def _layernorm(z, gamma, beta):
    # LayerNorm over last dim, eps = 1e-5 (PyTorch default).
    mu = jnp.mean(z, axis=-1, keepdims=True)
    var = jnp.mean(jnp.square(z - mu), axis=-1, keepdims=True)
    return (z - mu) * jax.lax.rsqrt(var + 1e-5) * gamma + beta


def _encoder_kernel(src_ref, pos_ref, bias_ref,
                    wqk_ref, bqk_ref, wv_ref, bv_ref, wo_ref, bo_ref,
                    w1_ref, b1_ref, w2_ref, b2_ref,
                    g1_ref, be1_ref, g2_ref, be2_ref,
                    out_ref, wts_ref, *, num_layers, nhead):
    """Full TransformerEncoder stack (forward_post layers) for one batch element."""
    x = src_ref[0]             # (L, d)
    pos = pos_ref[0]           # (L, d)
    bias = bias_ref[0]         # (1, L) additive key-padding bias (0 or -1e30)
    L, d = x.shape
    hd = d // nhead
    scale = 1.0 / math.sqrt(hd)

    wavg = jnp.zeros((L, L), jnp.float32)
    for layer in range(num_layers):                 # static unroll (num_layers small)
        wqk = wqk_ref[layer]                        # (d, 2d)  [Wq^T | Wk^T]
        wv = wv_ref[layer]                          # (d, d)
        wo = wo_ref[layer]                          # (d, d)
        w1 = w1_ref[layer]                          # (d, dff)
        w2 = w2_ref[layer]                          # (dff, d)

        # --- self attention: q = k = x + pos, value = x (forward_post) ---
        xp = x + pos
        qk = jnp.dot(xp, wqk, preferred_element_type=jnp.float32) + bqk_ref[layer]   # (L, 2d)
        v = jnp.dot(x, wv, preferred_element_type=jnp.float32) + bv_ref[layer]       # (L, d)

        attn_out = jnp.zeros((L, d), jnp.float32)
        wsum = jnp.zeros((L, L), jnp.float32)
        for h in range(nhead):                      # static unroll over heads
            qh = qk[:, h * hd:(h + 1) * hd]         # (L, hd)
            kh = qk[:, d + h * hd:d + (h + 1) * hd] # (L, hd)
            vh = v[:, h * hd:(h + 1) * hd]          # (L, hd)
            # q . k^T without materializing a transpose (contract last dims).
            logits = jax.lax.dot_general(
                qh, kh, (((1,), (1,)), ((), ())),
                preferred_element_type=jnp.float32) * scale + bias                   # (L, L)
            m = jnp.max(logits, axis=-1, keepdims=True)
            e = jnp.exp(logits - m)
            p = e * pl.reciprocal(jnp.sum(e, axis=-1, keepdims=True), approx=True)
            wsum = wsum + p
            ctx_h = jnp.dot(p, vh, preferred_element_type=jnp.float32)               # (L, hd)
            # Out-projection fused per head: ctx @ Wo^T == sum_h ctx_h @ Wo^T[h*hd:(h+1)*hd]
            attn_out = attn_out + jnp.dot(ctx_h, wo[h * hd:(h + 1) * hd, :],
                                          preferred_element_type=jnp.float32)
        attn_out = attn_out + bo_ref[layer]
        wavg = wsum * (1.0 / nhead)                 # head-averaged weights (in-kernel)

        # --- add & norm 1 ---
        x1 = _layernorm(x + attn_out, g1_ref[layer], be1_ref[layer])
        # --- feed forward (relu) ---
        h1 = jnp.maximum(jnp.dot(x1, w1, preferred_element_type=jnp.float32)
                         + b1_ref[layer], 0.0)                                        # (L, dff)
        h2 = jnp.dot(h1, w2, preferred_element_type=jnp.float32) + b2_ref[layer]      # (L, d)
        # --- add & norm 2 ---
        x = _layernorm(x1 + h2, g2_ref[layer], be2_ref[layer])

    out_ref[0] = x
    wts_ref[0] = wavg          # last layer's head-averaged attention weights


def transformer_encoder(enc_params, src_b, pos_b, bias_b, nhead):
    """src_b / pos_b: (B, L, d); bias_b: (B, 1, L).
    Returns (output (B, L, d), attention weights of last layer (B, L, L))."""
    B, L, d = src_b.shape
    NL = enc_params["wqk"].shape[0]
    dff = enc_params["w1"].shape[-1]

    def full(shape):
        n = len(shape)
        return pl.BlockSpec(shape, lambda b: (0,) * n)

    def per_b(shape):
        return pl.BlockSpec(shape, lambda b: (b, 0, 0))

    kern = functools.partial(_encoder_kernel, num_layers=NL, nhead=nhead)
    return pl.pallas_call(
        kern,
        out_shape=(jax.ShapeDtypeStruct((B, L, d), jnp.float32),
                   jax.ShapeDtypeStruct((B, L, L), jnp.float32)),
        grid=(B,),
        in_specs=[
            per_b((1, L, d)),                               # src
            per_b((1, L, d)),                               # pos
            per_b((1, 1, L)),                               # key-padding bias
            full((NL, d, 2 * d)), full((NL, 1, 2 * d)),     # fused Q/K proj
            full((NL, d, d)), full((NL, 1, d)),             # V proj
            full((NL, d, d)), full((NL, 1, d)),             # out proj
            full((NL, d, dff)), full((NL, 1, dff)),         # linear1
            full((NL, dff, d)), full((NL, 1, d)),           # linear2
            full((NL, 1, d)), full((NL, 1, d)),             # norm1 gamma / beta
            full((NL, 1, d)), full((NL, 1, d)),             # norm2 gamma / beta
        ],
        out_specs=(per_b((1, L, d)), per_b((1, L, L))),
        compiler_params=pltpu.CompilerParams(dimension_semantics=("parallel",)),
    )(src_b, pos_b, bias_b,
      enc_params["wqk"], enc_params["bqk"],
      enc_params["wv"], enc_params["bv"],
      enc_params["wo"], enc_params["bo"],
      enc_params["w1"], enc_params["b1"],
      enc_params["w2"], enc_params["b2"],
      enc_params["g1"], enc_params["be1"],
      enc_params["g2"], enc_params["be2"])


# ---------------------------------------------------------------------------
# Allen_transformer2 forward (glue / layout plumbing in plain JAX)
# ---------------------------------------------------------------------------

def allen_transformer2_forward(params, src, mask, pos_embed, *, nhead):
    bs, f, c, h, w = src.shape

    # Row encoder: sequence length L = f*h, d_model = c*w; batch-major layout (B, L, d).
    row_src = jnp.transpose(src, (0, 2, 4, 1, 3)).reshape(bs, c * w, f * h)
    row_src_b = jnp.transpose(row_src, (0, 2, 1))                       # (B, f*h, c*w)
    row_pos = jnp.transpose(pos_embed, (0, 2, 4, 1, 3)).reshape(bs, c * w, f * h)
    row_pos_b = jnp.transpose(row_pos, (0, 2, 1))
    row_mask = (mask.astype(jnp.int32).sum(axis=-1) == w).reshape(bs, -1)
    row_bias = jnp.where(row_mask, -1e30, 0.0).astype(jnp.float32)[:, None, :]   # (B, 1, L)

    # Col encoder inputs (pos / mask) are independent of the row output.
    col_mask = (mask.astype(jnp.int32).sum(axis=-2) == h).reshape(bs, -1)
    col_pos = jnp.transpose(pos_embed, (0, 2, 3, 1, 4)).reshape(bs, c * h, f * w)
    col_pos_b = jnp.transpose(col_pos, (0, 2, 1))                        # (B, f*w, c*h)
    col_bias = jnp.where(col_mask, -1e30, 0.0).astype(jnp.float32)[:, None, :]

    # --- row encoder (single fused pallas_call) ---
    row_out_b, row_weights = transformer_encoder(params["row"], row_src_b, row_pos_b,
                                                 row_bias, nhead)
    # back to (bs, f, c, h, w) exactly like the torch reshape/permute chain
    row_memory = jnp.transpose(row_out_b, (1, 0, 2)).reshape(f, h, bs, c, w)
    row_memory = jnp.transpose(row_memory, (2, 0, 3, 1, 4))

    # --- col encoder (single fused pallas_call) ---
    col_src = jnp.transpose(row_memory, (0, 2, 3, 1, 4)).reshape(bs, c * h, f * w)
    col_src_b = jnp.transpose(col_src, (0, 2, 1))                        # (B, f*w, c*h)
    col_out_b, col_weights = transformer_encoder(params["col"], col_src_b, col_pos_b,
                                                 col_bias, nhead)
    col_memory = jnp.transpose(col_out_b, (1, 0, 2)).reshape(f, w, bs, c, h)
    col_memory = jnp.transpose(col_memory, (2, 0, 3, 4, 1))
    return col_memory, row_weights, col_weights


# ---------------------------------------------------------------------------
# Parameter init (xavier_uniform for 2-D weights, zeros biases, ones/zeros LN,
# mirroring _reset_parameters + PyTorch defaults) and one-time prep: transpose
# to (din, dout), fuse Q/K, stack over layers.  Runs once, OUTSIDE jit.
# ---------------------------------------------------------------------------

def xavier_uniform(key, shape):
    fan_out, fan_in = shape
    bound = math.sqrt(6.0 / (fan_in + fan_out))
    return jax.random.uniform(key, shape, jnp.float32, -bound, bound)


def init_layer(key, d, dff):
    ks = jax.random.split(key, 4)
    in_proj = xavier_uniform(ks[0], (3 * d, d))      # PyTorch in_proj_weight layout
    z = lambda n: jnp.zeros((n,), jnp.float32)
    return dict(
        wq=in_proj[:d], wk=in_proj[d:2 * d], wv=in_proj[2 * d:],
        bq=z(d), bk=z(d), bv=z(d),
        wo=xavier_uniform(ks[1], (d, d)), bo=z(d),
        w1=xavier_uniform(ks[2], (dff, d)), b1=z(dff),
        w2=xavier_uniform(ks[3], (d, dff)), b2=z(d),
        g1=jnp.ones((d,), jnp.float32), be1=z(d),
        g2=jnp.ones((d,), jnp.float32), be2=z(d),
    )


def prepare_encoder_params(layer_params):
    """Pre-transpose PyTorch-layout weights, fuse Q/K, stack over layers."""
    def stack(fn):
        return jnp.stack([fn(lp) for lp in layer_params], axis=0)
    return dict(
        wqk=stack(lambda p: jnp.concatenate([p["wq"].T, p["wk"].T], axis=1)),   # (d, 2d)
        bqk=stack(lambda p: jnp.concatenate([p["bq"], p["bk"]])[None, :]),      # (1, 2d)
        wv=stack(lambda p: p["wv"].T), bv=stack(lambda p: p["bv"][None, :]),
        wo=stack(lambda p: p["wo"].T), bo=stack(lambda p: p["bo"][None, :]),
        w1=stack(lambda p: p["w1"].T), b1=stack(lambda p: p["b1"][None, :]),
        w2=stack(lambda p: p["w2"].T), b2=stack(lambda p: p["b2"][None, :]),
        g1=stack(lambda p: p["g1"][None, :]), be1=stack(lambda p: p["be1"][None, :]),
        g2=stack(lambda p: p["g2"][None, :]), be2=stack(lambda p: p["be2"][None, :]),
    )


if __name__ == "__main__":
    bs, f, c, h, w = 2, 2, 4, 4, 4
    nhead = 2
    row_dim = c * w          # 16  (d_model of the row encoder)
    col_dim = c * h          # 16  (d_model of the col encoder)
    dim_feedforward = 32
    num_row_layer = num_col_layer = 2

    key = jax.random.PRNGKey(0)
    k_src, k_pos, k_params = jax.random.split(key, 3)
    src = jax.random.normal(k_src, (bs, f, c, h, w), jnp.float32)
    pos_embed = jax.random.normal(k_pos, (bs, f, c, h, w), jnp.float32)

    mask = jnp.zeros((bs, f, h, w), dtype=bool)
    mask = mask.at[1, 1, 3, :].set(True)   # one fully-padded (f,h) row -> masked key position

    layer_keys = jax.random.split(k_params, num_row_layer + num_col_layer)
    raw_row = [init_layer(layer_keys[i], row_dim, dim_feedforward)
               for i in range(num_row_layer)]
    raw_col = [init_layer(layer_keys[num_row_layer + i], col_dim, dim_feedforward)
               for i in range(num_col_layer)]
    params = {
        "row": prepare_encoder_params(raw_row),   # fused / transposed / stacked, outside jit
        "col": prepare_encoder_params(raw_col),
    }

    fwd = jax.jit(functools.partial(allen_transformer2_forward, nhead=nhead))
    col_memory, row_weights, col_weights = fwd(params, src, mask, pos_embed)
    jax.block_until_ready((col_memory, row_weights, col_weights))

    assert col_memory.shape == (bs, f, c, h, w)
    assert row_weights.shape == (bs, f * h, f * h)
    assert col_weights.shape == (bs, f * w, f * w)
    assert bool(jnp.all(jnp.isfinite(col_memory)))
    assert bool(jnp.all(jnp.isfinite(row_weights)))
    assert bool(jnp.all(jnp.isfinite(col_weights)))
    print("KERNEL_OK")
</pallas_src>

<mosaic_0001>
module attributes {stable_mosaic.version = 11 : i64} {
  func.func @_encoder_kernel(%arg0: i32, %arg1: memref<1x8x16xf32, #tpu.memory_space<vmem>>, %arg2: memref<1x8x16xf32, #tpu.memory_space<vmem>>, %arg3: memref<1x1x8xf32, #tpu.memory_space<vmem>>, %arg4: memref<2x16x32xf32, #tpu.memory_space<vmem>>, %arg5: memref<2x1x32xf32, #tpu.memory_space<vmem>>, %arg6: memref<2x16x16xf32, #tpu.memory_space<vmem>>, %arg7: memref<2x1x16xf32, #tpu.memory_space<vmem>>, %arg8: memref<2x16x16xf32, #tpu.memory_space<vmem>>, %arg9: memref<2x1x16xf32, #tpu.memory_space<vmem>>, %arg10: memref<2x16x32xf32, #tpu.memory_space<vmem>>, %arg11: memref<2x1x32xf32, #tpu.memory_space<vmem>>, %arg12: memref<2x32x16xf32, #tpu.memory_space<vmem>>, %arg13: memref<2x1x16xf32, #tpu.memory_space<vmem>>, %arg14: memref<2x1x16xf32, #tpu.memory_space<vmem>>, %arg15: memref<2x1x16xf32, #tpu.memory_space<vmem>>, %arg16: memref<2x1x16xf32, #tpu.memory_space<vmem>>, %arg17: memref<2x1x16xf32, #tpu.memory_space<vmem>>, %arg18: memref<1x8x16xf32, #tpu.memory_space<vmem>>, %arg19: memref<1x8x8xf32, #tpu.memory_space<vmem>>) attributes {dimension_semantics = [#tpu.dimension_semantics<parallel>], iteration_bounds = array<i64: 2>, scalar_prefetch = 0 : i64, scratch_operands = 0 : i64, tpu.core_type = #tpu.core_type<tc>, window_params = [{transform_indices = @transform_0, window_bounds = array<i64: 1, 8, 16>}, {transform_indices = @transform_1, window_bounds = array<i64: 1, 8, 16>}, {transform_indices = @transform_2, window_bounds = array<i64: 1, 1, 8>}, {pipeline_mode = #tpu.pipeline_mode<synchronous>, transform_indices = @transform_3, window_bounds = array<i64: 2, 16, 32>}, {pipeline_mode = #tpu.pipeline_mode<synchronous>, transform_indices = @transform_4, window_bounds = array<i64: 2, 1, 32>}, {pipeline_mode = #tpu.pipeline_mode<synchronous>, transform_indices = @transform_5, window_bounds = array<i64: 2, 16, 16>}, {pipeline_mode = #tpu.pipeline_mode<synchronous>, transform_indices = @transform_6, window_bounds = array<i64: 2, 1, 16>}, {pipeline_mode = #tpu.pipeline_mode<synchronous>, transform_indices = @transform_7, window_bounds = array<i64: 2, 16, 16>}, {pipeline_mode = #tpu.pipeline_mode<synchronous>, transform_indices = @transform_8, window_bounds = array<i64: 2, 1, 16>}, {pipeline_mode = #tpu.pipeline_mode<synchronous>, transform_indices = @transform_9, window_bounds = array<i64: 2, 16, 32>}, {pipeline_mode = #tpu.pipeline_mode<synchronous>, transform_indices = @transform_10, window_bounds = array<i64: 2, 1, 32>}, {pipeline_mode = #tpu.pipeline_mode<synchronous>, transform_indices = @transform_11, window_bounds = array<i64: 2, 32, 16>}, {pipeline_mode = #tpu.pipeline_mode<synchronous>, transform_indices = @transform_12, window_bounds = array<i64: 2, 1, 16>}, {pipeline_mode = #tpu.pipeline_mode<synchronous>, transform_indices = @transform_13, window_bounds = array<i64: 2, 1, 16>}, {pipeline_mode = #tpu.pipeline_mode<synchronous>, transform_indices = @transform_14, window_bounds = array<i64: 2, 1, 16>}, {pipeline_mode = #tpu.pipeline_mode<synchronous>, transform_indices = @transform_15, window_bounds = array<i64: 2, 1, 16>}, {pipeline_mode = #tpu.pipeline_mode<synchronous>, transform_indices = @transform_16, window_bounds = array<i64: 2, 1, 16>}, {transform_indices = @transform_17, window_bounds = array<i64: 1, 8, 16>}, {transform_indices = @transform_18, window_bounds = array<i64: 1, 8, 8>}]} {
    %c0 = arith.constant 0 : index
    %c0_0 = arith.constant 0 : index
    %c0_1 = arith.constant 0 : index
    %0 = vector.load %arg1[%c0, %c0_0, %c0_1] : memref<1x8x16xf32, #tpu.memory_space<vmem>>, vector<1x8x16xf32>
    %1 = vector.shape_cast %0 : vector<1x8x16xf32> to vector<8x16xf32>
    %c0_2 = arith.constant 0 : index
    %c0_3 = arith.constant 0 : index
    %c0_4 = arith.constant 0 : index
    %2 = vector.load %arg2[%c0_2, %c0_3, %c0_4] : memref<1x8x16xf32, #tpu.memory_space<vmem>>, vector<1x8x16xf32>
    %3 = vector.shape_cast %2 : vector<1x8x16xf32> to vector<8x16xf32>
    %c0_5 = arith.constant 0 : index
    %c0_6 = arith.constant 0 : index
    %c0_7 = arith.constant 0 : index
    %4 = vector.load %arg3[%c0_5, %c0_6, %c0_7] : memref<1x1x8xf32, #tpu.memory_space<vmem>>, vector<1x1x8xf32>
    %5 = vector.shape_cast %4 : vector<1x1x8xf32> to vector<1x8xf32>
    %c0_8 = arith.constant 0 : index
    %c0_9 = arith.constant 0 : index
    %c0_10 = arith.constant 0 : index
    %6 = vector.load %arg4[%c0_8, %c0_9, %c0_10] : memref<2x16x32xf32, #tpu.memory_space<vmem>>, vector<1x16x32xf32>
    %7 = vector.shape_cast %6 : vector<1x16x32xf32> to vector<16x32xf32>
    %c0_11 = arith.constant 0 : index
    %c0_12 = arith.constant 0 : index
    %c0_13 = arith.constant 0 : index
    %8 = vector.load %arg6[%c0_11, %c0_12, %c0_13] : memref<2x16x16xf32, #tpu.memory_space<vmem>>, vector<1x16x16xf32>
    %9 = vector.shape_cast %8 : vector<1x16x16xf32> to vector<16x16xf32>
    %c0_14 = arith.constant 0 : index
    %c0_15 = arith.constant 0 : index
    %c0_16 = arith.constant 0 : index
    %10 = vector.load %arg8[%c0_14, %c0_15, %c0_16] : memref<2x16x16xf32, #tpu.memory_space<vmem>>, vector<1x16x16xf32>
    %11 = vector.shape_cast %10 : vector<1x16x16xf32> to vector<16x16xf32>
    %c0_17 = arith.constant 0 : index
    %c0_18 = arith.constant 0 : index
    %c0_19 = arith.constant 0 : index
    %12 = vector.load %arg10[%c0_17, %c0_18, %c0_19] : memref<2x16x32xf32, #tpu.memory_space<vmem>>, vector<1x16x32xf32>
    %13 = vector.shape_cast %12 : vector<1x16x32xf32> to vector<16x32xf32>
    %c0_20 = arith.constant 0 : index
    %c0_21 = arith.constant 0 : index
    %c0_22 = arith.constant 0 : index
    %14 = vector.load %arg12[%c0_20, %c0_21, %c0_22] : memref<2x32x16xf32, #tpu.memory_space<vmem>>, vector<1x32x16xf32>
    %15 = vector.shape_cast %14 : vector<1x32x16xf32> to vector<32x16xf32>
    %16 = arith.addf %1, %3 : vector<8x16xf32>
    %cst = arith.constant dense<0.000000e+00> : vector<8x32xf32>
    %17 = tpu.matmul %16, %7, %cst {dimension_numbers = #tpu.dot_dimension_numbers<[1], [0], [0], [1], [0, 0, 1, 1], [], []>} : vector<8x16xf32>, vector<16x32xf32>, vector<8x32xf32> -> vector<8x32xf32>
    %c0_23 = arith.constant 0 : index
    %c0_24 = arith.constant 0 : index
    %c0_25 = arith.constant 0 : index
    %18 = vector.load %arg5[%c0_23, %c0_24, %c0_25] : memref<2x1x32xf32, #tpu.memory_space<vmem>>, vector<1x1x32xf32>
    %19 = vector.shape_cast %18 : vector<1x1x32xf32> to vector<1x32xf32>
    %20 = vector.broadcast %19 : vector<1x32xf32> to vector<8x32xf32>
    %21 = arith.addf %17, %20 : vector<8x32xf32>
    %cst_26 = arith.constant dense<0.000000e+00> : vector<8x16xf32>
    %22 = tpu.matmul %1, %9, %cst_26 {dimension_numbers = #tpu.dot_dimension_numbers<[1], [0], [0], [1], [0, 0, 1, 1], [], []>} : vector<8x16xf32>, vector<16x16xf32>, vector<8x16xf32> -> vector<8x16xf32>
    %c0_27 = arith.constant 0 : index
    %c0_28 = arith.constant 0 : index
    %c0_29 = arith.constant 0 : index
    %23 = vector.load %arg7[%c0_27, %c0_28, %c0_29] : memref<2x1x16xf32, #tpu.memory_space<vmem>>, vector<1x1x16xf32>
    %24 = vector.shape_cast %23 : vector<1x1x16xf32> to vector<1x16xf32>
    %25 = vector.broadcast %24 : vector<1x16xf32> to vector<8x16xf32>
    %26 = arith.addf %22, %25 : vector<8x16xf32>
    %cst_30 = arith.constant 0.000000e+00 : f32
    %27 = vector.broadcast %cst_30 : f32 to vector<8x16xf32>
    %28 = vector.extract_strided_slice %21 {offsets = [0, 0], sizes = [8, 8], strides = [1, 1]} : vector<8x32xf32> to vector<8x8xf32>
    %29 = vector.extract_strided_slice %21 {offsets = [0, 16], sizes = [8, 8], strides = [1, 1]} : vector<8x32xf32> to vector<8x8xf32>
    %30 = vector.extract_strided_slice %26 {offsets = [0, 0], sizes = [8, 8], strides = [1, 1]} : vector<8x16xf32> to vector<8x8xf32>
    %cst_31 = arith.constant dense<0.000000e+00> : vector<8x8xf32>
    %31 = tpu.matmul %28, %29, %cst_31 {dimension_numbers = #tpu.dot_dimension_numbers<[1], [1], [0], [0], [0, 0, 1, 0], [], []>} : vector<8x8xf32>, vector<8x8xf32>, vector<8x8xf32> -> vector<8x8xf32>
    %cst_32 = arith.constant 0.353553385 : f32
    %32 = vector.broadcast %cst_32 : f32 to vector<8x8xf32>
    %33 = arith.mulf %31, %32 : vector<8x8xf32>
    %34 = vector.broadcast %5 : vector<1x8xf32> to vector<8x8xf32>
    %35 = arith.addf %33, %34 : vector<8x8xf32>
    %cst_33 = arith.constant dense<0xFF800000> : vector<8xf32>
    %36 = vector.multi_reduction <maximumf>, %35, %cst_33 [1] : vector<8x8xf32> to vector<8xf32>
    %37 = vector.shape_cast %36 : vector<8xf32> to vector<8x1xf32>
    %38 = vector.broadcast %37 : vector<8x1xf32> to vector<8x8xf32>
    %39 = arith.subf %35, %38 : vector<8x8xf32>
    %40 = math.exp %39 : vector<8x8xf32>
    %cst_34 = arith.constant dense<0.000000e+00> : vector<8xf32>
    %41 = vector.multi_reduction <add>, %40, %cst_34 [1] : vector<8x8xf32> to vector<8xf32>
    %42 = vector.shape_cast %41 : vector<8xf32> to vector<8x1xf32>
    %43 = tpu.reciprocal %42 {approx = true} : vector<8x1xf32> -> vector<8x1xf32>
    %44 = vector.broadcast %43 : vector<8x1xf32> to vector<8x8xf32>
    %45 = arith.mulf %40, %44 : vector<8x8xf32>
    %cst_35 = arith.constant dense<0.000000e+00> : vector<8x8xf32>
    %46 = tpu.matmul %45, %30, %cst_35 {dimension_numbers = #tpu.dot_dimension_numbers<[1], [0], [0], [1], [0, 0, 1, 1], [], []>} : vector<8x8xf32>, vector<8x8xf32>, vector<8x8xf32> -> vector<8x8xf32>
    %47 = vector.extract_strided_slice %11 {offsets = [0, 0], sizes = [8, 16], strides = [1, 1]} : vector<16x16xf32> to vector<8x16xf32>
    %cst_36 = arith.constant dense<0.000000e+00> : vector<8x16xf32>
    %48 = tpu.matmul %46, %47, %cst_36 {dimension_numbers = #tpu.dot_dimension_numbers<[1], [0], [0], [1], [0, 0, 1, 1], [], []>} : vector<8x8xf32>, vector<8x16xf32>, vector<8x16xf32> -> vector<8x16xf32>
    %49 = arith.addf %27, %48 : vector<8x16xf32>
    %50 = vector.extract_strided_slice %21 {offsets = [0, 8], sizes = [8, 8], strides = [1, 1]} : vector<8x32xf32> to vector<8x8xf32>
    %51 = vector.extract_strided_slice %21 {offsets = [0, 24], sizes = [8, 8], strides = [1, 1]} : vector<8x32xf32> to vector<8x8xf32>
    %52 = vector.extract_strided_slice %26 {offsets = [0, 8], sizes = [8, 8], strides = [1, 1]} : vector<8x16xf32> to vector<8x8xf32>
    %cst_37 = arith.constant dense<0.000000e+00> : vector<8x8xf32>
    %53 = tpu.matmul %50, %51, %cst_37 {dimension_numbers = #tpu.dot_dimension_numbers<[1], [1], [0], [0], [0, 0, 1, 0], [], []>} : vector<8x8xf32>, vector<8x8xf32>, vector<8x8xf32> -> vector<8x8xf32>
    %cst_38 = arith.constant 0.353553385 : f32
    %54 = vector.broadcast %cst_38 : f32 to vector<8x8xf32>
    %55 = arith.mulf %53, %54 : vector<8x8xf32>
    %56 = vector.broadcast %5 : vector<1x8xf32> to vector<8x8xf32>
    %57 = arith.addf %55, %56 : vector<8x8xf32>
    %cst_39 = arith.constant dense<0xFF800000> : vector<8xf32>
    %58 = vector.multi_reduction <maximumf>, %57, %cst_39 [1] : vector<8x8xf32> to vector<8xf32>
    %59 = vector.shape_cast %58 : vector<8xf32> to vector<8x1xf32>
    %60 = vector.broadcast %59 : vector<8x1xf32> to vector<8x8xf32>
    %61 = arith.subf %57, %60 : vector<8x8xf32>
    %62 = math.exp %61 : vector<8x8xf32>
    %cst_40 = arith.constant dense<0.000000e+00> : vector<8xf32>
    %63 = vector.multi_reduction <add>, %62, %cst_40 [1] : vector<8x8xf32> to vector<8xf32>
    %64 = vector.shape_cast %63 : vector<8xf32> to vector<8x1xf32>
    %65 = tpu.reciprocal %64 {approx = true} : vector<8x1xf32> -> vector<8x1xf32>
    %66 = vector.broadcast %65 : vector<8x1xf32> to vector<8x8xf32>
    %67 = arith.mulf %62, %66 : vector<8x8xf32>
    %cst_41 = arith.constant dense<0.000000e+00> : vector<8x8xf32>
    %68 = tpu.matmul %67, %52, %cst_41 {dimension_numbers = #tpu.dot_dimension_numbers<[1], [0], [0], [1], [0, 0, 1, 1], [], []>} : vector<8x8xf32>, vector<8x8xf32>, vector<8x8xf32> -> vector<8x8xf32>
    %69 = vector.extract_strided_slice %11 {offsets = [8, 0], sizes = [8, 16], strides = [1, 1]} : vector<16x16xf32> to vector<8x16xf32>
    %cst_42 = arith.constant dense<0.000000e+00> : vector<8x16xf32>
    %70 = tpu.matmul %68, %69, %cst_42 {dimension_numbers = #tpu.dot_dimension_numbers<[1], [0], [0], [1], [0, 0, 1, 1], [], []>} : vector<8x8xf32>, vector<8x16xf32>, vector<8x16xf32> -> vector<8x16xf32>
    %71 = arith.addf %49, %70 : vector<8x16xf32>
    %c0_43 = arith.constant 0 : index
    %c0_44 = arith.constant 0 : index
    %c0_45 = arith.constant 0 : index
    %72 = vector.load %arg9[%c0_43, %c0_44, %c0_45] : memref<2x1x16xf32, #tpu.memory_space<vmem>>, vector<1x1x16xf32>
    %73 = vector.shape_cast %72 : vector<1x1x16xf32> to vector<1x16xf32>
    %74 = vector.broadcast %73 : vector<1x16xf32> to vector<8x16xf32>
    %75 = arith.addf %71, %74 : vector<8x16xf32>
    %76 = arith.addf %1, %75 : vector<8x16xf32>
    %c0_46 = arith.constant 0 : index
    %c0_47 = arith.constant 0 : index
    %c0_48 = arith.constant 0 : index
    %77 = vector.load %arg14[%c0_46, %c0_47, %c0_48] : memref<2x1x16xf32, #tpu.memory_space<vmem>>, vector<1x1x16xf32>
    %78 = vector.shape_cast %77 : vector<1x1x16xf32> to vector<1x16xf32>
    %c0_49 = arith.constant 0 : index
    %c0_50 = arith.constant 0 : index
    %c0_51 = arith.constant 0 : index
    %79 = vector.load %arg15[%c0_49, %c0_50, %c0_51] : memref<2x1x16xf32, #tpu.memory_space<vmem>>, vector<1x1x16xf32>
    %80 = vector.shape_cast %79 : vector<1x1x16xf32> to vector<1x16xf32>
    %cst_52 = arith.constant dense<0.000000e+00> : vector<8xf32>
    %81 = vector.multi_reduction <add>, %76, %cst_52 [1] : vector<8x16xf32> to vector<8xf32>
    %82 = vector.shape_cast %81 : vector<8xf32> to vector<8x1xf32>
    %cst_53 = arith.constant 1.600000e+01 : f32
    %83 = vector.broadcast %cst_53 : f32 to vector<8x1xf32>
    %84 = arith.divf %82, %83 : vector<8x1xf32>
    %85 = vector.broadcast %84 : vector<8x1xf32> to vector<8x16xf32>
    %86 = arith.subf %76, %85 : vector<8x16xf32>
    %87 = arith.mulf %86, %86 : vector<8x16xf32>
    %cst_54 = arith.constant dense<0.000000e+00> : vector<8xf32>
    %88 = vector.multi_reduction <add>, %87, %cst_54 [1] : vector<8x16xf32> to vector<8xf32>
    %89 = vector.shape_cast %88 : vector<8xf32> to vector<8x1xf32>
    %cst_55 = arith.constant 1.600000e+01 : f32
    %90 = vector.broadcast %cst_55 : f32 to vector<8x1xf32>
    %91 = arith.divf %89, %90 : vector<8x1xf32>
    %92 = vector.broadcast %84 : vector<8x1xf32> to vector<8x16xf32>
    %93 = arith.subf %76, %92 : vector<8x16xf32>
    %cst_56 = arith.constant 9.99999974E-6 : f32
    %94 = vector.broadcast %cst_56 : f32 to vector<8x1xf32>
    %95 = arith.addf %91, %94 : vector<8x1xf32>
    %96 = math.rsqrt %95 : vector<8x1xf32>
    %97 = vector.broadcast %96 : vector<8x1xf32> to vector<8x16xf32>
    %98 = arith.mulf %93, %97 : vector<8x16xf32>
    %99 = vector.broadcast %78 : vector<1x16xf32> to vector<8x16xf32>
    %100 = arith.mulf %98, %99 : vector<8x16xf32>
    %101 = vector.broadcast %80 : vector<1x16xf32> to vector<8x16xf32>
    %102 = arith.addf %100, %101 : vector<8x16xf32>
    %cst_57 = arith.constant dense<0.000000e+00> : vector<8x32xf32>
    %103 = tpu.matmul %102, %13, %cst_57 {dimension_numbers = #tpu.dot_dimension_numbers<[1], [0], [0], [1], [0, 0, 1, 1], [], []>} : vector<8x16xf32>, vector<16x32xf32>, vector<8x32xf32> -> vector<8x32xf32>
    %c0_58 = arith.constant 0 : index
    %c0_59 = arith.constant 0 : index
    %c0_60 = arith.constant 0 : index
    %104 = vector.load %arg11[%c0_58, %c0_59, %c0_60] : memref<2x1x32xf32, #tpu.memory_space<vmem>>, vector<1x1x32xf32>
    %105 = vector.shape_cast %104 : vector<1x1x32xf32> to vector<1x32xf32>
    %106 = vector.broadcast %105 : vector<1x32xf32> to vector<8x32xf32>
    %107 = arith.addf %103, %106 : vector<8x32xf32>
    %cst_61 = arith.constant 0.000000e+00 : f32
    %108 = vector.broadcast %cst_61 : f32 to vector<8x32xf32>
    %109 = arith.maximumf %107, %108 : vector<8x32xf32>
    %cst_62 = arith.constant dense<0.000000e+00> : vector<8x16xf32>
    %110 = tpu.matmul %109, %15, %cst_62 {dimension_numbers = #tpu.dot_dimension_numbers<[1], [0], [0], [1], [0, 0, 1, 1], [], []>} : vector<8x32xf32>, vector<32x16xf32>, vector<8x16xf32> -> vector<8x16xf32>
    %c0_63 = arith.constant 0 : index
    %c0_64 = arith.constant 0 : index
    %c0_65 = arith.constant 0 : index
    %111 = vector.load %arg13[%c0_63, %c0_64, %c0_65] : memref<2x1x16xf32, #tpu.memory_space<vmem>>, vector<1x1x16xf32>
    %112 = vector.shape_cast %111 : vector<1x1x16xf32> to vector<1x16xf32>
    %113 = vector.broadcast %112 : vector<1x16xf32> to vector<8x16xf32>
    %114 = arith.addf %110, %113 : vector<8x16xf32>
    %115 = arith.addf %102, %114 : vector<8x16xf32>
    %c0_66 = arith.constant 0 : index
    %c0_67 = arith.constant 0 : index
    %c0_68 = arith.constant 0 : index
    %116 = vector.load %arg16[%c0_66, %c0_67, %c0_68] : memref<2x1x16xf32, #tpu.memory_space<vmem>>, vector<1x1x16xf32>
    %117 = vector.shape_cast %116 : vector<1x1x16xf32> to vector<1x16xf32>
    %c0_69 = arith.constant 0 : index
    %c0_70 = arith.constant 0 : index
    %c0_71 = arith.constant 0 : index
    %118 = vector.load %arg17[%c0_69, %c0_70, %c0_71] : memref<2x1x16xf32, #tpu.memory_space<vmem>>, vector<1x1x16xf32>
    %119 = vector.shape_cast %118 : vector<1x1x16xf32> to vector<1x16xf32>
    %cst_72 = arith.constant dense<0.000000e+00> : vector<8xf32>
    %120 = vector.multi_reduction <add>, %115, %cst_72 [1] : vector<8x16xf32> to vector<8xf32>
    %121 = vector.shape_cast %120 : vector<8xf32> to vector<8x1xf32>
    %cst_73 = arith.constant 1.600000e+01 : f32
    %122 = vector.broadcast %cst_73 : f32 to vector<8x1xf32>
    %123 = arith.divf %121, %122 : vector<8x1xf32>
    %124 = vector.broadcast %123 : vector<8x1xf32> to vector<8x16xf32>
    %125 = arith.subf %115, %124 : vector<8x16xf32>
    %126 = arith.mulf %125, %125 : vector<8x16xf32>
    %cst_74 = arith.constant dense<0.000000e+00> : vector<8xf32>
    %127 = vector.multi_reduction <add>, %126, %cst_74 [1] : vector<8x16xf32> to vector<8xf32>
    %128 = vector.shape_cast %127 : vector<8xf32> to vector<8x1xf32>
    %cst_75 = arith.constant 1.600000e+01 : f32
    %129 = vector.broadcast %cst_75 : f32 to vector<8x1xf32>
    %130 = arith.divf %128, %129 : vector<8x1xf32>
    %131 = vector.broadcast %123 : vector<8x1xf32> to vector<8x16xf32>
    %132 = arith.subf %115, %131 : vector<8x16xf32>
    %cst_76 = arith.constant 9.99999974E-6 : f32
    %133 = vector.broadcast %cst_76 : f32 to vector<8x1xf32>
    %134 = arith.addf %130, %133 : vector<8x1xf32>
    %135 = math.rsqrt %134 : vector<8x1xf32>
    %136 = vector.broadcast %135 : vector<8x1xf32> to vector<8x16xf32>
    %137 = arith.mulf %132, %136 : vector<8x16xf32>
    %138 = vector.broadcast %117 : vector<1x16xf32> to vector<8x16xf32>
    %139 = arith.mulf %137, %138 : vector<8x16xf32>
    %140 = vector.broadcast %119 : vector<1x16xf32> to vector<8x16xf32>
    %141 = arith.addf %139, %140 : vector<8x16xf32>
    %c1 = arith.constant 1 : index
    %c0_77 = arith.constant 0 : index
    %c0_78 = arith.constant 0 : index
    %142 = vector.load %arg4[%c1, %c0_77, %c0_78] : memref<2x16x32xf32, #tpu.memory_space<vmem>>, vector<1x16x32xf32>
    %143 = vector.shape_cast %142 : vector<1x16x32xf32> to vector<16x32xf32>
    %c1_79 = arith.constant 1 : index
    %c0_80 = arith.constant 0 : index
    %c0_81 = arith.constant 0 : index
    %144 = vector.load %arg6[%c1_79, %c0_80, %c0_81] : memref<2x16x16xf32, #tpu.memory_space<vmem>>, vector<1x16x16xf32>
    %145 = vector.shape_cast %144 : vector<1x16x16xf32> to vector<16x16xf32>
    %c1_82 = arith.constant 1 : index
    %c0_83 = arith.constant 0 : index
    %c0_84 = arith.constant 0 : index
    %146 = vector.load %arg8[%c1_82, %c0_83, %c0_84] : memref<2x16x16xf32, #tpu.memory_space<vmem>>, vector<1x16x16xf32>
    %147 = vector.shape_cast %146 : vector<1x16x16xf32> to vector<16x16xf32>
    %c1_85 = arith.constant 1 : index
    %c0_86 = arith.constant 0 : index
    %c0_87 = arith.constant 0 : index
    %148 = vector.load %arg10[%c1_85, %c0_86, %c0_87] : memref<2x16x32xf32, #tpu.memory_space<vmem>>, vector<1x16x32xf32>
    %149 = vector.shape_cast %148 : vector<1x16x32xf32> to vector<16x32xf32>
    %c1_88 = arith.constant 1 : index
    %c0_89 = arith.constant 0 : index
    %c0_90 = arith.constant 0 : index
    %150 = vector.load %arg12[%c1_88, %c0_89, %c0_90] : memref<2x32x16xf32, #tpu.memory_space<vmem>>, vector<1x32x16xf32>
    %151 = vector.shape_cast %150 : vector<1x32x16xf32> to vector<32x16xf32>
    %152 = arith.addf %141, %3 : vector<8x16xf32>
    %cst_91 = arith.constant dense<0.000000e+00> : vector<8x32xf32>
    %153 = tpu.matmul %152, %143, %cst_91 {dimension_numbers = #tpu.dot_dimension_numbers<[1], [0], [0], [1], [0, 0, 1, 1], [], []>} : vector<8x16xf32>, vector<16x32xf32>, vector<8x32xf32> -> vector<8x32xf32>
    %c1_92 = arith.constant 1 : index
    %c0_93 = arith.constant 0 : index
    %c0_94 = arith.constant 0 : index
    %154 = vector.load %arg5[%c1_92, %c0_93, %c0_94] : memref<2x1x32xf32, #tpu.memory_space<vmem>>, vector<1x1x32xf32>
    %155 = vector.shape_cast %154 : vector<1x1x32xf32> to vector<1x32xf32>
    %156 = vector.broadcast %155 : vector<1x32xf32> to vector<8x32xf32>
    %157 = arith.addf %153, %156 : vector<8x32xf32>
    %cst_95 = arith.constant dense<0.000000e+00> : vector<8x16xf32>
    %158 = tpu.matmul %141, %145, %cst_95 {dimension_numbers = #tpu.dot_dimension_numbers<[1], [0], [0], [1], [0, 0, 1, 1], [], []>} : vector<8x16xf32>, vector<16x16xf32>, vector<8x16xf32> -> vector<8x16xf32>
    %c1_96 = arith.constant 1 : index
    %c0_97 = arith.constant 0 : index
    %c0_98 = arith.constant 0 : index
    %159 = vector.load %arg7[%c1_96, %c0_97, %c0_98] : memref<2x1x16xf32, #tpu.memory_space<vmem>>, vector<1x1x16xf32>
    %160 = vector.shape_cast %159 : vector<1x1x16xf32> to vector<1x16xf32>
    %161 = vector.broadcast %160 : vector<1x16xf32> to vector<8x16xf32>
    %162 = arith.addf %158, %161 : vector<8x16xf32>
    %cst_99 = arith.constant 0.000000e+00 : f32
    %163 = vector.broadcast %cst_99 : f32 to vector<8x16xf32>
    %cst_100 = arith.constant 0.000000e+00 : f32
    %164 = vector.broadcast %cst_100 : f32 to vector<8x8xf32>
    %165 = vector.extract_strided_slice %157 {offsets = [0, 0], sizes = [8, 8], strides = [1, 1]} : vector<8x32xf32> to vector<8x8xf32>
    %166 = vector.extract_strided_slice %157 {offsets = [0, 16], sizes = [8, 8], strides = [1, 1]} : vector<8x32xf32> to vector<8x8xf32>
    %167 = vector.extract_strided_slice %162 {offsets = [0, 0], sizes = [8, 8], strides = [1, 1]} : vector<8x16xf32> to vector<8x8xf32>
    %cst_101 = arith.constant dense<0.000000e+00> : vector<8x8xf32>
    %168 = tpu.matmul %165, %166, %cst_101 {dimension_numbers = #tpu.dot_dimension_numbers<[1], [1], [0], [0], [0, 0, 1, 0], [], []>} : vector<8x8xf32>, vector<8x8xf32>, vector<8x8xf32> -> vector<8x8xf32>
    %cst_102 = arith.constant 0.353553385 : f32
    %169 = vector.broadcast %cst_102 : f32 to vector<8x8xf32>
    %170 = arith.mulf %168, %169 : vector<8x8xf32>
    %171 = vector.broadcast %5 : vector<1x8xf32> to vector<8x8xf32>
    %172 = arith.addf %170, %171 : vector<8x8xf32>
    %cst_103 = arith.constant dense<0xFF800000> : vector<8xf32>
    %173 = vector.multi_reduction <maximumf>, %172, %cst_103 [1] : vector<8x8xf32> to vector<8xf32>
    %174 = vector.shape_cast %173 : vector<8xf32> to vector<8x1xf32>
    %175 = vector.broadcast %174 : vector<8x1xf32> to vector<8x8xf32>
    %176 = arith.subf %172, %175 : vector<8x8xf32>
    %177 = math.exp %176 : vector<8x8xf32>
    %cst_104 = arith.constant dense<0.000000e+00> : vector<8xf32>
    %178 = vector.multi_reduction <add>, %177, %cst_104 [1] : vector<8x8xf32> to vector<8xf32>
    %179 = vector.shape_cast %178 : vector<8xf32> to vector<8x1xf32>
    %180 = tpu.reciprocal %179 {approx = true} : vector<8x1xf32> -> vector<8x1xf32>
    %181 = vector.broadcast %180 : vector<8x1xf32> to vector<8x8xf32>
    %182 = arith.mulf %177, %181 : vector<8x8xf32>
    %183 = arith.addf %164, %182 : vector<8x8xf32>
    %cst_105 = arith.constant dense<0.000000e+00> : vector<8x8xf32>
    %184 = tpu.matmul %182, %167, %cst_105 {dimension_numbers = #tpu.dot_dimension_numbers<[1], [0], [0], [1], [0, 0, 1, 1], [], []>} : vector<8x8xf32>, vector<8x8xf32>, vector<8x8xf32> -> vector<8x8xf32>
    %185 = vector.extract_strided_slice %147 {offsets = [0, 0], sizes = [8, 16], strides = [1, 1]} : vector<16x16xf32> to vector<8x16xf32>
    %cst_106 = arith.constant dense<0.000000e+00> : vector<8x16xf32>
    %186 = tpu.matmul %184, %185, %cst_106 {dimension_numbers = #tpu.dot_dimension_numbers<[1], [0], [0], [1], [0, 0, 1, 1], [], []>} : vector<8x8xf32>, vector<8x16xf32>, vector<8x16xf32> -> vector<8x16xf32>
    %187 = arith.addf %163, %186 : vector<8x16xf32>
    %188 = vector.extract_strided_slice %157 {offsets = [0, 8], sizes = [8, 8], strides = [1, 1]} : vector<8x32xf32> to vector<8x8xf32>
    %189 = vector.extract_strided_slice %157 {offsets = [0, 24], sizes = [8, 8], strides = [1, 1]} : vector<8x32xf32> to vector<8x8xf32>
    %190 = vector.extract_strided_slice %162 {offsets = [0, 8], sizes = [8, 8], strides = [1, 1]} : vector<8x16xf32> to vector<8x8xf32>
    %cst_107 = arith.constant dense<0.000000e+00> : vector<8x8xf32>
    %191 = tpu.matmul %188, %189, %cst_107 {dimension_numbers = #tpu.dot_dimension_numbers<[1], [1], [0], [0], [0, 0, 1, 0], [], []>} : vector<8x8xf32>, vector<8x8xf32>, vector<8x8xf32> -> vector<8x8xf32>
    %cst_108 = arith.constant 0.353553385 : f32
    %192 = vector.broadcast %cst_108 : f32 to vector<8x8xf32>
    %193 = arith.mulf %191, %192 : vector<8x8xf32>
    %194 = vector.broadcast %5 : vector<1x8xf32> to vector<8x8xf32>
    %195 = arith.addf %193, %194 : vector<8x8xf32>
    %cst_109 = arith.constant dense<0xFF800000> : vector<8xf32>
    %196 = vector.multi_reduction <maximumf>, %195, %cst_109 [1] : vector<8x8xf32> to vector<8xf32>
    %197 = vector.shape_cast %196 : vector<8xf32> to vector<8x1xf32>
    %198 = vector.broadcast %197 : vector<8x1xf32> to vector<8x8xf32>
    %199 = arith.subf %195, %198 : vector<8x8xf32>
    %200 = math.exp %199 : vector<8x8xf32>
    %cst_110 = arith.constant dense<0.000000e+00> : vector<8xf32>
    %201 = vector.multi_reduction <add>, %200, %cst_110 [1] : vector<8x8xf32> to vector<8xf32>
    %202 = vector.shape_cast %201 : vector<8xf32> to vector<8x1xf32>
    %203 = tpu.reciprocal %202 {approx = true} : vector<8x1xf32> -> vector<8x1xf32>
    %204 = vector.broadcast %203 : vector<8x1xf32> to vector<8x8xf32>
    %205 = arith.mulf %200, %204 : vector<8x8xf32>
    %206 = arith.addf %183, %205 : vector<8x8xf32>
    %cst_111 = arith.constant dense<0.000000e+00> : vector<8x8xf32>
    %207 = tpu.matmul %205, %190, %cst_111 {dimension_numbers = #tpu.dot_dimension_numbers<[1], [0], [0], [1], [0, 0, 1, 1], [], []>} : vector<8x8xf32>, vector<8x8xf32>, vector<8x8xf32> -> vector<8x8xf32>
    %208 = vector.extract_strided_slice %147 {offsets = [8, 0], sizes = [8, 16], strides = [1, 1]} : vector<16x16xf32> to vector<8x16xf32>
    %cst_112 = arith.constant dense<0.000000e+00> : vector<8x16xf32>
    %209 = tpu.matmul %207, %208, %cst_112 {dimension_numbers = #tpu.dot_dimension_numbers<[1], [0], [0], [1], [0, 0, 1, 1], [], []>} : vector<8x8xf32>, vector<8x16xf32>, vector<8x16xf32> -> vector<8x16xf32>
    %210 = arith.addf %187, %209 : vector<8x16xf32>
    %c1_113 = arith.constant 1 : index
    %c0_114 = arith.constant 0 : index
    %c0_115 = arith.constant 0 : index
    %211 = vector.load %arg9[%c1_113, %c0_114, %c0_115] : memref<2x1x16xf32, #tpu.memory_space<vmem>>, vector<1x1x16xf32>
    %212 = vector.shape_cast %211 : vector<1x1x16xf32> to vector<1x16xf32>
    %213 = vector.broadcast %212 : vector<1x16xf32> to vector<8x16xf32>
    %214 = arith.addf %210, %213 : vector<8x16xf32>
    %cst_116 = arith.constant 5.000000e-01 : f32
    %215 = vector.broadcast %cst_116 : f32 to vector<8x8xf32>
    %216 = arith.mulf %206, %215 : vector<8x8xf32>
    %217 = arith.addf %141, %214 : vector<8x16xf32>
    %c1_117 = arith.constant 1 : index
    %c0_118 = arith.constant 0 : index
    %c0_119 = arith.constant 0 : index
    %218 = vector.load %arg14[%c1_117, %c0_118, %c0_119] : memref<2x1x16xf32, #tpu.memory_space<vmem>>, vector<1x1x16xf32>
    %219 = vector.shape_cast %218 : vector<1x1x16xf32> to vector<1x16xf32>
    %c1_120 = arith.constant 1 : index
    %c0_121 = arith.constant 0 : index
    %c0_122 = arith.constant 0 : index
    %220 = vector.load %arg15[%c1_120, %c0_121, %c0_122] : memref<2x1x16xf32, #tpu.memory_space<vmem>>, vector<1x1x16xf32>
    %221 = vector.shape_cast %220 : vector<1x1x16xf32> to vector<1x16xf32>
    %cst_123 = arith.constant dense<0.000000e+00> : vector<8xf32>
    %222 = vector.multi_reduction <add>, %217, %cst_123 [1] : vector<8x16xf32> to vector<8xf32>
    %223 = vector.shape_cast %222 : vector<8xf32> to vector<8x1xf32>
    %cst_124 = arith.constant 1.600000e+01 : f32
    %224 = vector.broadcast %cst_124 : f32 to vector<8x1xf32>
    %225 = arith.divf %223, %224 : vector<8x1xf32>
    %226 = vector.broadcast %225 : vector<8x1xf32> to vector<8x16xf32>
    %227 = arith.subf %217, %226 : vector<8x16xf32>
    %228 = arith.mulf %227, %227 : vector<8x16xf32>
    %cst_125 = arith.constant dense<0.000000e+00> : vector<8xf32>
    %229 = vector.multi_reduction <add>, %228, %cst_125 [1] : vector<8x16xf32> to vector<8xf32>
    %230 = vector.shape_cast %229 : vector<8xf32> to vector<8x1xf32>
    %cst_126 = arith.constant 1.600000e+01 : f32
    %231 = vector.broadcast %cst_126 : f32 to vector<8x1xf32>
    %232 = arith.divf %230, %231 : vector<8x1xf32>
    %233 = vector.broadcast %225 : vector<8x1xf32> to vector<8x16xf32>
    %234 = arith.subf %217, %233 : vector<8x16xf32>
    %cst_127 = arith.constant 9.99999974E-6 : f32
    %235 = vector.broadcast %cst_127 : f32 to vector<8x1xf32>
    %236 = arith.addf %232, %235 : vector<8x1xf32>
    %237 = math.rsqrt %236 : vector<8x1xf32>
    %238 = vector.broadcast %237 : vector<8x1xf32> to vector<8x16xf32>
    %239 = arith.mulf %234, %238 : vector<8x16xf32>
    %240 = vector.broadcast %219 : vector<1x16xf32> to vector<8x16xf32>
    %241 = arith.mulf %239, %240 : vector<8x16xf32>
    %242 = vector.broadcast %221 : vector<1x16xf32> to vector<8x16xf32>
    %243 = arith.addf %241, %242 : vector<8x16xf32>
    %cst_128 = arith.constant dense<0.000000e+00> : vector<8x32xf32>
    %244 = tpu.matmul %243, %149, %cst_128 {dimension_numbers = #tpu.dot_dimension_numbers<[1], [0], [0], [1], [0, 0, 1, 1], [], []>} : vector<8x16xf32>, vector<16x32xf32>, vector<8x32xf32> -> vector<8x32xf32>
    %c1_129 = arith.constant 1 : index
    %c0_130 = arith.constant 0 : index
    %c0_131 = arith.constant 0 : index
    %245 = vector.load %arg11[%c1_129, %c0_130, %c0_131] : memref<2x1x32xf32, #tpu.memory_space<vmem>>, vector<1x1x32xf32>
    %246 = vector.shape_cast %245 : vector<1x1x32xf32> to vector<1x32xf32>
    %247 = vector.broadcast %246 : vector<1x32xf32> to vector<8x32xf32>
    %248 = arith.addf %244, %247 : vector<8x32xf32>
    %cst_132 = arith.constant 0.000000e+00 : f32
    %249 = vector.broadcast %cst_132 : f32 to vector<8x32xf32>
    %250 = arith.maximumf %248, %249 : vector<8x32xf32>
    %cst_133 = arith.constant dense<0.000000e+00> : vector<8x16xf32>
    %251 = tpu.matmul %250, %151, %cst_133 {dimension_numbers = #tpu.dot_dimension_numbers<[1], [0], [0], [1], [0, 0, 1, 1], [], []>} : vector<8x32xf32>, vector<32x16xf32>, vector<8x16xf32> -> vector<8x16xf32>
    %c1_134 = arith.constant 1 : index
    %c0_135 = arith.constant 0 : index
    %c0_136 = arith.constant 0 : index
    %252 = vector.load %arg13[%c1_134, %c0_135, %c0_136] : memref<2x1x16xf32, #tpu.memory_space<vmem>>, vector<1x1x16xf32>
    %253 = vector.shape_cast %252 : vector<1x1x16xf32> to vector<1x16xf32>
    %254 = vector.broadcast %253 : vector<1x16xf32> to vector<8x16xf32>
    %255 = arith.addf %251, %254 : vector<8x16xf32>
    %256 = arith.addf %243, %255 : vector<8x16xf32>
    %c1_137 = arith.constant 1 : index
    %c0_138 = arith.constant 0 : index
    %c0_139 = arith.constant 0 : index
    %257 = vector.load %arg16[%c1_137, %c0_138, %c0_139] : memref<2x1x16xf32, #tpu.memory_space<vmem>>, vector<1x1x16xf32>
    %258 = vector.shape_cast %257 : vector<1x1x16xf32> to vector<1x16xf32>
    %c1_140 = arith.constant 1 : index
    %c0_141 = arith.constant 0 : index
    %c0_142 = arith.constant 0 : index
    %259 = vector.load %arg17[%c1_140, %c0_141, %c0_142] : memref<2x1x16xf32, #tpu.memory_space<vmem>>, vector<1x1x16xf32>
    %260 = vector.shape_cast %259 : vector<1x1x16xf32> to vector<1x16xf32>
    %cst_143 = arith.constant dense<0.000000e+00> : vector<8xf32>
    %261 = vector.multi_reduction <add>, %256, %cst_143 [1] : vector<8x16xf32> to vector<8xf32>
    %262 = vector.shape_cast %261 : vector<8xf32> to vector<8x1xf32>
    %cst_144 = arith.constant 1.600000e+01 : f32
    %263 = vector.broadcast %cst_144 : f32 to vector<8x1xf32>
    %264 = arith.divf %262, %263 : vector<8x1xf32>
    %265 = vector.broadcast %264 : vector<8x1xf32> to vector<8x16xf32>
    %266 = arith.subf %256, %265 : vector<8x16xf32>
    %267 = arith.mulf %266, %266 : vector<8x16xf32>
    %cst_145 = arith.constant dense<0.000000e+00> : vector<8xf32>
    %268 = vector.multi_reduction <add>, %267, %cst_145 [1] : vector<8x16xf32> to vector<8xf32>
    %269 = vector.shape_cast %268 : vector<8xf32> to vector<8x1xf32>
    %cst_146 = arith.constant 1.600000e+01 : f32
    %270 = vector.broadcast %cst_146 : f32 to vector<8x1xf32>
    %271 = arith.divf %269, %270 : vector<8x1xf32>
    %272 = vector.broadcast %264 : vector<8x1xf32> to vector<8x16xf32>
    %273 = arith.subf %256, %272 : vector<8x16xf32>
    %cst_147 = arith.constant 9.99999974E-6 : f32
    %274 = vector.broadcast %cst_147 : f32 to vector<8x1xf32>
    %275 = arith.addf %271, %274 : vector<8x1xf32>
    %276 = math.rsqrt %275 : vector<8x1xf32>
    %277 = vector.broadcast %276 : vector<8x1xf32> to vector<8x16xf32>
    %278 = arith.mulf %273, %277 : vector<8x16xf32>
    %279 = vector.broadcast %258 : vector<1x16xf32> to vector<8x16xf32>
    %280 = arith.mulf %278, %279 : vector<8x16xf32>
    %281 = vector.broadcast %260 : vector<1x16xf32> to vector<8x16xf32>
    %282 = arith.addf %280, %281 : vector<8x16xf32>
    %c0_148 = arith.constant 0 : index
    %c0_149 = arith.constant 0 : index
    %c0_150 = arith.constant 0 : index
    %283 = vector.load %arg18[%c0_148, %c0_149, %c0_150] : memref<1x8x16xf32, #tpu.memory_space<vmem>>, vector<1x8x16xf32>
    %284 = vector.shape_cast %283 : vector<1x8x16xf32> to vector<8x16xf32>
    %285 = vector.shape_cast %282 : vector<8x16xf32> to vector<1x8x16xf32>
    tpu.vector_store %arg18[%c0_148, %c0_149, %c0_150], %285 {strides = array<i32>} : memref<1x8x16xf32, #tpu.memory_space<vmem>>, vector<1x8x16xf32>,
    %c0_151 = arith.constant 0 : index
    %c0_152 = arith.constant 0 : index
    %c0_153 = arith.constant 0 : index
    %286 = vector.load %arg19[%c0_151, %c0_152, %c0_153] : memref<1x8x8xf32, #tpu.memory_space<vmem>>, vector<1x8x8xf32>
    %287 = vector.shape_cast %286 : vector<1x8x8xf32> to vector<8x8xf32>
    %288 = vector.shape_cast %216 : vector<8x8xf32> to vector<1x8x8xf32>
    tpu.vector_store %arg19[%c0_151, %c0_152, %c0_153], %288 {strides = array<i32>} : memref<1x8x8xf32, #tpu.memory_space<vmem>>, vector<1x8x8xf32>,
    return
  }
  func.func @transform_0(%arg0: i32) -> (i32, i32, i32) {
    %c0_i32 = arith.constant 0 : i32
    %c0_i32_0 = arith.constant 0 : i32
    %c0_i32_1 = arith.constant 0 : i32
    return %arg0, %c0_i32, %c0_i32_0 : i32, i32, i32
  }
  func.func @transform_1(%arg0: i32) -> (i32, i32, i32) {
    %c0_i32 = arith.constant 0 : i32
    %c0_i32_0 = arith.constant 0 : i32
    %c0_i32_1 = arith.constant 0 : i32
    return %arg0, %c0_i32, %c0_i32_0 : i32, i32, i32
  }
  func.func @transform_2(%arg0: i32) -> (i32, i32, i32) {
    %c0_i32 = arith.constant 0 : i32
    %c0_i32_0 = arith.constant 0 : i32
    %c0_i32_1 = arith.constant 0 : i32
    return %arg0, %c0_i32, %c0_i32_0 : i32, i32, i32
  }
  func.func @transform_3(%arg0: i32) -> (i32, i32, i32) {
    %c0_i32 = arith.constant 0 : i32
    %c0_i32_0 = arith.constant 0 : i32
    %c0_i32_1 = arith.constant 0 : i32
    %c0_i32_2 = arith.constant 0 : i32
    return %c0_i32, %c0_i32_0, %c0_i32_1 : i32, i32, i32
  }
  func.func @transform_4(%arg0: i32) -> (i32, i32, i32) {
    %c0_i32 = arith.constant 0 : i32
    %c0_i32_0 = arith.constant 0 : i32
    %c0_i32_1 = arith.constant 0 : i32
    %c0_i32_2 = arith.constant 0 : i32
    return %c0_i32, %c0_i32_0, %c0_i32_1 : i32, i32, i32
  }
  func.func @transform_5(%arg0: i32) -> (i32, i32, i32) {
    %c0_i32 = arith.constant 0 : i32
    %c0_i32_0 = arith.constant 0 : i32
    %c0_i32_1 = arith.constant 0 : i32
    %c0_i32_2 = arith.constant 0 : i32
    return %c0_i32, %c0_i32_0, %c0_i32_1 : i32, i32, i32
  }
  func.func @transform_6(%arg0: i32) -> (i32, i32, i32) {
    %c0_i32 = arith.constant 0 : i32
    %c0_i32_0 = arith.constant 0 : i32
    %c0_i32_1 = arith.constant 0 : i32
    %c0_i32_2 = arith.constant 0 : i32
    return %c0_i32, %c0_i32_0, %c0_i32_1 : i32, i32, i32
  }
  func.func @transform_7(%arg0: i32) -> (i32, i32, i32) {
    %c0_i32 = arith.constant 0 : i32
    %c0_i32_0 = arith.constant 0 : i32
    %c0_i32_1 = arith.constant 0 : i32
    %c0_i32_2 = arith.constant 0 : i32
    return %c0_i32, %c0_i32_0, %c0_i32_1 : i32, i32, i32
  }
  func.func @transform_8(%arg0: i32) -> (i32, i32, i32) {
    %c0_i32 = arith.constant 0 : i32
    %c0_i32_0 = arith.constant 0 : i32
    %c0_i32_1 = arith.constant 0 : i32
    %c0_i32_2 = arith.constant 0 : i32
    return %c0_i32, %c0_i32_0, %c0_i32_1 : i32, i32, i32
  }
  func.func @transform_9(%arg0: i32) -> (i32, i32, i32) {
    %c0_i32 = arith.constant 0 : i32
    %c0_i32_0 = arith.constant 0 : i32
    %c0_i32_1 = arith.constant 0 : i32
    %c0_i32_2 = arith.constant 0 : i32
    return %c0_i32, %c0_i32_0, %c0_i32_1 : i32, i32, i32
  }
  func.func @transform_10(%arg0: i32) -> (i32, i32, i32) {
    %c0_i32 = arith.constant 0 : i32
    %c0_i32_0 = arith.constant 0 : i32
    %c0_i32_1 = arith.constant 0 : i32
    %c0_i32_2 = arith.constant 0 : i32
    return %c0_i32, %c0_i32_0, %c0_i32_1 : i32, i32, i32
  }
  func.func @transform_11(%arg0: i32) -> (i32, i32, i32) {
    %c0_i32 = arith.constant 0 : i32
    %c0_i32_0 = arith.constant 0 : i32
    %c0_i32_1 = arith.constant 0 : i32
    %c0_i32_2 = arith.constant 0 : i32
    return %c0_i32, %c0_i32_0, %c0_i32_1 : i32, i32, i32
  }
  func.func @transform_12(%arg0: i32) -> (i32, i32, i32) {
    %c0_i32 = arith.constant 0 : i32
    %c0_i32_0 = arith.constant 0 : i32
    %c0_i32_1 = arith.constant 0 : i32
    %c0_i32_2 = arith.constant 0 : i32
    return %c0_i32, %c0_i32_0, %c0_i32_1 : i32, i32, i32
  }
  func.func @transform_13(%arg0: i32) -> (i32, i32, i32) {
    %c0_i32 = arith.constant 0 : i32
    %c0_i32_0 = arith.constant 0 : i32
    %c0_i32_1 = arith.constant 0 : i32
    %c0_i32_2 = arith.constant 0 : i32
    return %c0_i32, %c0_i32_0, %c0_i32_1 : i32, i32, i32
  }
  func.func @transform_14(%arg0: i32) -> (i32, i32, i32) {
    %c0_i32 = arith.constant 0 : i32
    %c0_i32_0 = arith.constant 0 : i32
    %c0_i32_1 = arith.constant 0 : i32
    %c0_i32_2 = arith.constant 0 : i32
    return %c0_i32, %c0_i32_0, %c0_i32_1 : i32, i32, i32
  }
  func.func @transform_15(%arg0: i32) -> (i32, i32, i32) {
    %c0_i32 = arith.constant 0 : i32
    %c0_i32_0 = arith.constant 0 : i32
    %c0_i32_1 = arith.constant 0 : i32
    %c0_i32_2 = arith.constant 0 : i32
    return %c0_i32, %c0_i32_0, %c0_i32_1 : i32, i32, i32
  }
  func.func @transform_16(%arg0: i32) -> (i32, i32, i32) {
    %c0_i32 = arith.constant 0 : i32
    %c0_i32_0 = arith.constant 0 : i32
    %c0_i32_1 = arith.constant 0 : i32
    %c0_i32_2 = arith.constant 0 : i32
    return %c0_i32, %c0_i32_0, %c0_i32_1 : i32, i32, i32
  }
  func.func @transform_17(%arg0: i32) -> (i32, i32, i32) {
    %c0_i32 = arith.constant 0 : i32
    %c0_i32_0 = arith.constant 0 : i32
    %c0_i32_1 = arith.constant 0 : i32
    return %arg0, %c0_i32, %c0_i32_0 : i32, i32, i32
  }
  func.func @transform_18(%arg0: i32) -> (i32, i32, i32) {
    %c0_i32 = arith.constant 0 : i32
    %c0_i32_0 = arith.constant 0 : i32
    %c0_i32_1 = arith.constant 0 : i32
    return %arg0, %c0_i32, %c0_i32_0 : i32, i32, i32
  }
}

</mosaic_0001>

<llo_original>
// kernel: allen_transformer2_forward.2
$region0: #{allen_transformer2_forward.2}
  #allocation0 [shape = 'u32[]', space=smem, size = 0x4, offset = 0x4, fixed_abs, tag = 'smem constant byte address 0x4 - core index']
  #allocation1 [shape = 'u32[144,128]{1,0:T(1,128)}', space=vmem, size = 0x12000, scoped, tag = 'internal scratch']
  %s0 = inlined_call_operand.vmem [shape: f32[2,8,16], index: 0, kind: input, shape index: {}]
  %s1 = inlined_call_operand.vmem [shape: f32[2,8,16], index: 1, kind: input, shape index: {}]
  %s2 = inlined_call_operand.vmem [shape: f32[2,1,8], index: 2, kind: input, shape index: {}]
  %s3 = inlined_call_operand.vmem [shape: f32[2,16,32], index: 3, kind: input, shape index: {}]
  %s4 = inlined_call_operand.vmem [shape: f32[2,1,32], index: 4, kind: input, shape index: {}]
  %s5 = inlined_call_operand.vmem [shape: f32[2,16,16], index: 5, kind: input, shape index: {}]
  %s6 = inlined_call_operand.vmem [shape: f32[2,1,16], index: 6, kind: input, shape index: {}]
  %s7 = inlined_call_operand.vmem [shape: f32[2,16,16], index: 7, kind: input, shape index: {}]
  %s8 = inlined_call_operand.vmem [shape: f32[2,1,16], index: 8, kind: input, shape index: {}]
  %s9 = inlined_call_operand.vmem [shape: f32[2,16,32], index: 9, kind: input, shape index: {}]
  %s10 = inlined_call_operand.vmem [shape: f32[2,1,32], index: 10, kind: input, shape index: {}]
  %s11 = inlined_call_operand.vmem [shape: f32[2,32,16], index: 11, kind: input, shape index: {}]
  %s12 = inlined_call_operand.vmem [shape: f32[2,1,16], index: 12, kind: input, shape index: {}]
  %s13 = inlined_call_operand.vmem [shape: f32[2,1,16], index: 13, kind: input, shape index: {}]
  %s14 = inlined_call_operand.vmem [shape: f32[2,1,16], index: 14, kind: input, shape index: {}]
  %s15 = inlined_call_operand.vmem [shape: f32[2,1,16], index: 15, kind: input, shape index: {}]
  %s16 = inlined_call_operand.vmem [shape: f32[2,1,16], index: 16, kind: input, shape index: {}]
  %s17 = inlined_call_operand.vmem [shape: f32[2,8,16], index: 17, kind: output, shape index: {0}]
  %s18 = inlined_call_operand.hbm [shape: f32[2,8,8], index: 18, kind: output, shape index: {1}]
  %19 = xla_tuple %s17, %s18
  %s20 = sld [smem:[#allocation0]]
  $region109: #{allen_transformer2_forward.2} parent=0
    _
  %s22 = ssub.s32 1, %s20
  %s23 = scalar_select 0, %s22, %s20
  $region1: #{allen_transformer2_forward.2} parent=0
    #allocation2 [shape = 'u8[8192]{0}', space=vmem, size = 0x2000, scoped, tag = 'output window, operand 1']
    #allocation3 [shape = 's32[2]{0}', space=sflag, size = 0x8, scoped, tag = 'scoped memory for allen_transformer2_forward.2']
    %24 = vsyncpa [#allocation3], 0
    %s25 = scalar_lea.sflag [#allocation3], 1
    %26 = vsyncpa %s25, 0
    loop: start=0, step=1, limit=4
    $region2: #{allen_transformer2_forward.2} parent=1 // loop_pre_header
      _
    $region3: #{allen_transformer2_forward.2} parent=1 // loop_header
      %s28 = sphi 0, %s32
      %p29 = scmp.ge.s32.totalorder %s28, 4
      %s38 = sphi 0, %s40
      %s41 = sphi 0, %s38
      %s42 = sphi 0, %s41
      %s58 = sphi 0, %s42
      %s64 = sphi 0, %s66
      %s67 = sphi 0, %s64
      %s68 = sphi 0, %s67
      %s84 = sphi 0, %s68
      %s90 = sphi 0, %s92
      %s93 = sphi 0, %s90
      %s94 = sphi 0, %s93
      %s110 = sphi 0, %s94
      %s114 = sphi 0, %s114
      %s116 = sphi 0, %s114
      %s117 = sphi 0, %s116
      %s131 = sphi 0, %s117
      %s135 = sphi 0, %s135
      %s137 = sphi 0, %s135
      %s138 = sphi 0, %s137
      %s152 = sphi 0, %s138
      %s156 = sphi 0, %s156
      %s158 = sphi 0, %s156
      %s159 = sphi 0, %s158
      %s173 = sphi 0, %s159
      %s177 = sphi 0, %s177
      %s179 = sphi 0, %s177
      %s180 = sphi 0, %s179
      %s194 = sphi 0, %s180
      %s198 = sphi 0, %s198
      %s200 = sphi 0, %s198
      %s201 = sphi 0, %s200
      %s215 = sphi 0, %s201
      %s219 = sphi 0, %s219
      %s221 = sphi 0, %s219
      %s222 = sphi 0, %s221
      %s236 = sphi 0, %s222
      %s240 = sphi 0, %s240
      %s242 = sphi 0, %s240
      %s243 = sphi 0, %s242
      %s257 = sphi 0, %s243
      %s261 = sphi 0, %s261
      %s263 = sphi 0, %s261
      %s264 = sphi 0, %s263
      %s278 = sphi 0, %s264
      %s282 = sphi 0, %s282
      %s284 = sphi 0, %s282
      %s285 = sphi 0, %s284
      %s299 = sphi 0, %s285
      %s303 = sphi 0, %s303
      %s305 = sphi 0, %s303
      %s306 = sphi 0, %s305
      %s320 = sphi 0, %s306
      %s324 = sphi 0, %s324
      %s326 = sphi 0, %s324
      %s327 = sphi 0, %s326
      %s341 = sphi 0, %s327
      %s345 = sphi 0, %s345
      %s347 = sphi 0, %s345
      %s348 = sphi 0, %s347
      %s362 = sphi 0, %s348
      %s366 = sphi 0, %s366
      %s368 = sphi 0, %s366
      %s369 = sphi 0, %s368
      %s383 = sphi 0, %s369
      %s387 = sphi 0, %s387
      %s389 = sphi 0, %s387
      %s390 = sphi 0, %s389
      %s404 = sphi 0, %s390
      %s410 = sphi 0, %s412
      %s413 = sphi 0, %s410
      %s414 = sphi 0, %s413
      %s430 = sphi 0, %s414
      %s436 = sphi 0, %s438
      %s439 = sphi 0, %s436
      %s440 = sphi 0, %s439
      %s456 = sphi 0, %s440
    $region4: #{allen_transformer2_forward.2} parent=1 // loop_header_branch
      %31 = sbr.rel (%p29) target = $region8
    $region5: #{allen_transformer2_forward.2} parent=1 // loop_body
      %s33 = ssub.s32 %s28, 1
      %s34 = ssub.s32 %s28, 2
      %s35 = sadd.s32 %s28, 1
      %s36 = ssub.s32 %s28, %s35
      %p37 = scmp.eq.s32.totalorder %s36, 0
      %s39 = sadd.s32 %s38, 1
      %s40 = scalar_select %p37, %s38, %s39
      %p43 = pneg %p37
      %p44 = scmp.eq.s32.totalorder %s28, 1
      %p45 = por %p43, %p44
      %p46 = scmp.ne.s32.totalorder %s38, %s41
      %p47 = scmp.eq.s32.totalorder %s28, 0
      %p48 = por %p46, %p47
      %p49 = scmp.ne.s32.totalorder %s38, %s41
      %p50 = scmp.eq.s32.totalorder %s33, 1
      %p51 = por %p49, %p50
      %p52 = scmp.ne.s32.totalorder %s41, %s42
      %p53 = scmp.eq.s32.totalorder %s33, 0
      %p54 = por %p52, %p53
      %p55 = scmp.ne.s32.totalorder %s41, %s42
      %p56 = scmp.eq.s32.totalorder %s34, 1
      %p57 = por %p55, %p56
      %p59 = scmp.ne.s32.totalorder %s42, %s58
      %p60 = scmp.eq.s32.totalorder %s34, 0
      %p61 = por %p59, %p60
      %s62 = ssub.s32 %s28, %s35
      %p63 = scmp.eq.s32.totalorder %s62, 0
      %s65 = sadd.s32 %s64, 1
      %s66 = scalar_select %p63, %s64, %s65
      %p69 = pneg %p63
      %p70 = scmp.eq.s32.totalorder %s28, 1
      %p71 = por %p69, %p70
      %p72 = scmp.ne.s32.totalorder %s64, %s67
      %p73 = scmp.eq.s32.totalorder %s28, 0
      %p74 = por %p72, %p73
      %p75 = scmp.ne.s32.totalorder %s64, %s67
      %p76 = scmp.eq.s32.totalorder %s33, 1
      %p77 = por %p75, %p76
      %p78 = scmp.ne.s32.totalorder %s67, %s68
      %p79 = scmp.eq.s32.totalorder %s33, 0
      %p80 = por %p78, %p79
      %p81 = scmp.ne.s32.totalorder %s67, %s68
      %p82 = scmp.eq.s32.totalorder %s34, 1
      %p83 = por %p81, %p82
      %p85 = scmp.ne.s32.totalorder %s68, %s84
      %p86 = scmp.eq.s32.totalorder %s34, 0
      %p87 = por %p85, %p86
      %s88 = ssub.s32 %s28, %s35
      %p89 = scmp.eq.s32.totalorder %s88, 0
      %s91 = sadd.s32 %s90, 1
      %s92 = scalar_select %p89, %s90, %s91
      %p95 = pneg %p89
      %p96 = scmp.eq.s32.totalorder %s28, 1
      %p97 = por %p95, %p96
      %p98 = scmp.ne.s32.totalorder %s90, %s93
      %p99 = scmp.eq.s32.totalorder %s28, 0
      %p100 = por %p98, %p99
      %p101 = scmp.ne.s32.totalorder %s90, %s93
      %p102 = scmp.eq.s32.totalorder %s33, 1
      %p103 = por %p101, %p102
      %p104 = scmp.ne.s32.totalorder %s93, %s94
      %p105 = scmp.eq.s32.totalorder %s33, 0
      %p106 = por %p104, %p105
      %p107 = scmp.ne.s32.totalorder %s93, %s94
      %p108 = scmp.eq.s32.totalorder %s34, 1
      %p109 = por %p107, %p108
      %p111 = scmp.ne.s32.totalorder %s94, %s110
      %p112 = scmp.eq.s32.totalorder %s34, 0
      %p113 = por %p111, %p112
      %s115 = sadd.s32 %s114, 1
      %p118 = scmp.eq.s32.totalorder %s28, 1
      %p119 = scmp.ne.s32.totalorder %s114, %s116
      %p120 = scmp.eq.s32.totalorder %s28, 0
      %p121 = por %p119, %p120
      %p122 = scmp.ne.s32.totalorder %s114, %s116
      %p123 = scmp.eq.s32.totalorder %s33, 1
      %p124 = por %p122, %p123
      %p125 = scmp.ne.s32.totalorder %s116, %s117
      %p126 = scmp.eq.s32.totalorder %s33, 0
      %p127 = por %p125, %p126
      %p128 = scmp.ne.s32.totalorder %s116, %s117
      %p129 = scmp.eq.s32.totalorder %s34, 1
      %p130 = por %p128, %p129
      %p132 = scmp.ne.s32.totalorder %s117, %s131
      %p133 = scmp.eq.s32.totalorder %s34, 0
      %p134 = por %p132, %p133
      %s136 = sadd.s32 %s135, 1
      %p139 = scmp.eq.s32.totalorder %s28, 1
      %p140 = scmp.ne.s32.totalorder %s135, %s137
      %p141 = scmp.eq.s32.totalorder %s28, 0
      %p142 = por %p140, %p141
      %p143 = scmp.ne.s32.totalorder %s135, %s137
      %p144 = scmp.eq.s32.totalorder %s33, 1
      %p145 = por %p143, %p144
      %p146 = scmp.ne.s32.totalorder %s137, %s138
      %p147 = scmp.eq.s32.totalorder %s33, 0
      %p148 = por %p146, %p147
      %p149 = scmp.ne.s32.totalorder %s137, %s138
      %p150 = scmp.eq.s32.totalorder %s34, 1
      %p151 = por %p149, %p150
      %p153 = scmp.ne.s32.totalorder %s138, %s152
      %p154 = scmp.eq.s32.totalorder %s34, 0
      %p155 = por %p153, %p154
      %s157 = sadd.s32 %s156, 1
      %p160 = scmp.eq.s32.totalorder %s28, 1
      %p161 = scmp.ne.s32.totalorder %s156, %s158
      %p162 = scmp.eq.s32.totalorder %s28, 0
      %p163 = por %p161, %p162
      %p164 = scmp.ne.s32.totalorder %s156, %s158
      %p165 = scmp.eq.s32.totalorder %s33, 1
      %p166 = por %p164, %p165
      %p167 = scmp.ne.s32.totalorder %s158, %s159
      %p168 = scmp.eq.s32.totalorder %s33, 0
      %p169 = por %p167, %p168
      %p170 = scmp.ne.s32.totalorder %s158, %s159
      %p171 = scmp.eq.s32.totalorder %s34, 1
      %p172 = por %p170, %p171
      %p174 = scmp.ne.s32.totalorder %s159, %s173
      %p175 = scmp.eq.s32.totalorder %s34, 0
      %p176 = por %p174, %p175
      %s178 = sadd.s32 %s177, 1
      %p181 = scmp.eq.s32.totalorder %s28, 1
      %p182 = scmp.ne.s32.totalorder %s177, %s179
      %p183 = scmp.eq.s32.totalorder %s28, 0
      %p184 = por %p182, %p183
      %p185 = scmp.ne.s32.totalorder %s177, %s179
      %p186 = scmp.eq.s32.totalorder %s33, 1
      %p187 = por %p185, %p186
      %p188 = scmp.ne.s32.totalorder %s179, %s180
      %p189 = scmp.eq.s32.totalorder %s33, 0
      %p190 = por %p188, %p189
      %p191 = scmp.ne.s32.totalorder %s179, %s180
      %p192 = scmp.eq.s32.totalorder %s34, 1
      %p193 = por %p191, %p192
      %p195 = scmp.ne.s32.totalorder %s180, %s194
      %p196 = scmp.eq.s32.totalorder %s34, 0
      %p197 = por %p195, %p196
      %s199 = sadd.s32 %s198, 1
      %p202 = scmp.eq.s32.totalorder %s28, 1
      %p203 = scmp.ne.s32.totalorder %s198, %s200
      %p204 = scmp.eq.s32.totalorder %s28, 0
      %p205 = por %p203, %p204
      %p206 = scmp.ne.s32.totalorder %s198, %s200
      %p207 = scmp.eq.s32.totalorder %s33, 1
      %p208 = por %p206, %p207
      %p209 = scmp.ne.s32.totalorder %s200, %s201
      %p210 = scmp.eq.s32.totalorder %s33, 0
      %p211 = por %p209, %p210
      %p212 = scmp.ne.s32.totalorder %s200, %s201
      %p213 = scmp.eq.s32.totalorder %s34, 1
      %p214 = por %p212, %p213
      %p216 = scmp.ne.s32.totalorder %s201, %s215
      %p217 = scmp.eq.s32.totalorder %s34, 0
      %p218 = por %p216, %p217
      %s220 = sadd.s32 %s219, 1
      %p223 = scmp.eq.s32.totalorder %s28, 1
      %p224 = scmp.ne.s32.totalorder %s219, %s221
      %p225 = scmp.eq.s32.totalorder %s28, 0
      %p226 = por %p224, %p225
      %p227 = scmp.ne.s32.totalorder %s219, %s221
      %p228 = scmp.eq.s32.totalorder %s33, 1
      %p229 = por %p227, %p228
      %p230 = scmp.ne.s32.totalorder %s221, %s222
      %p231 = scmp.eq.s32.totalorder %s33, 0
      %p232 = por %p230, %p231
      %p233 = scmp.ne.s32.totalorder %s221, %s222
      %p234 = scmp.eq.s32.totalorder %s34, 1
      %p235 = por %p233, %p234
      %p237 = scmp.ne.s32.totalorder %s222, %s236
      %p238 = scmp.eq.s32.totalorder %s34, 0
      %p239 = por %p237, %p238
      %s241 = sadd.s32 %s240, 1
      %p244 = scmp.eq.s32.totalorder %s28, 1
      %p245 = scmp.ne.s32.totalorder %s240, %s242
      %p246 = scmp.eq.s32.totalorder %s28, 0
      %p247 = por %p245, %p246
      %p248 = scmp.ne.s32.totalorder %s240, %s242
      %p249 = scmp.eq.s32.totalorder %s33, 1
      %p250 = por %p248, %p249
      %p251 = scmp.ne.s32.totalorder %s242, %s243
      %p252 = scmp.eq.s32.totalorder %s33, 0
      %p253 = por %p251, %p252
      %p254 = scmp.ne.s32.totalorder %s242, %s243
      %p255 = scmp.eq.s32.totalorder %s34, 1
      %p256 = por %p254, %p255
      %p258 = scmp.ne.s32.totalorder %s243, %s257
      %p259 = scmp.eq.s32.totalorder %s34, 0
      %p260 = por %p258, %p259
      %s262 = sadd.s32 %s261, 1
      %p265 = scmp.eq.s32.totalorder %s28, 1
      %p266 = scmp.ne.s32.totalorder %s261, %s263
      %p267 = scmp.eq.s32.totalorder %s28, 0
      %p268 = por %p266, %p267
      %p269 = scmp.ne.s32.totalorder %s261, %s263
      %p270 = scmp.eq.s32.totalorder %s33, 1
      %p271 = por %p269, %p270
      %p272 = scmp.ne.s32.totalorder %s263, %s264
      %p273 = scmp.eq.s32.totalorder %s33, 0
      %p274 = por %p272, %p273
      %p275 = scmp.ne.s32.totalorder %s263, %s264
      %p276 = scmp.eq.s32.totalorder %s34, 1
      %p277 = por %p275, %p276
      %p279 = scmp.ne.s32.totalorder %s264, %s278
      %p280 = scmp.eq.s32.totalorder %s34, 0
      %p281 = por %p279, %p280
      %s283 = sadd.s32 %s282, 1
      %p286 = scmp.eq.s32.totalorder %s28, 1
      %p287 = scmp.ne.s32.totalorder %s282, %s284
      %p288 = scmp.eq.s32.totalorder %s28, 0
      %p289 = por %p287, %p288
      %p290 = scmp.ne.s32.totalorder %s282, %s284
      %p291 = scmp.eq.s32.totalorder %s33, 1
      %p292 = por %p290, %p291
      %p293 = scmp.ne.s32.totalorder %s284, %s285
      %p294 = scmp.eq.s32.totalorder %s33, 0
      %p295 = por %p293, %p294
      %p296 = scmp.ne.s32.totalorder %s284, %s285
      %p297 = scmp.eq.s32.totalorder %s34, 1
      %p298 = por %p296, %p297
      %p300 = scmp.ne.s32.totalorder %s285, %s299
      %p301 = scmp.eq.s32.totalorder %s34, 0
      %p302 = por %p300, %p301
      %s304 = sadd.s32 %s303, 1
      %p307 = scmp.eq.s32.totalorder %s28, 1
      %p308 = scmp.ne.s32.totalorder %s303, %s305
      %p309 = scmp.eq.s32.totalorder %s28, 0
      %p310 = por %p308, %p309
      %p311 = scmp.ne.s32.totalorder %s303, %s305
      %p312 = scmp.eq.s32.totalorder %s33, 1
      %p313 = por %p311, %p312
      %p314 = scmp.ne.s32.totalorder %s305, %s306
      %p315 = scmp.eq.s32.totalorder %s33, 0
      %p316 = por %p314, %p315
      %p317 = scmp.ne.s32.totalorder %s305, %s306
      %p318 = scmp.eq.s32.totalorder %s34, 1
      %p319 = por %p317, %p318
      %p321 = scmp.ne.s32.totalorder %s306, %s320
      %p322 = scmp.eq.s32.totalorder %s34, 0
      %p323 = por %p321, %p322
      %s325 = sadd.s32 %s324, 1
      %p328 = scmp.eq.s32.totalorder %s28, 1
      %p329 = scmp.ne.s32.totalorder %s324, %s326
      %p330 = scmp.eq.s32.totalorder %s28, 0
      %p331 = por %p329, %p330
      %p332 = scmp.ne.s32.totalorder %s324, %s326
      %p333 = scmp.eq.s32.totalorder %s33, 1
      %p334 = por %p332, %p333
      %p335 = scmp.ne.s32.totalorder %s326, %s327
      %p336 = scmp.eq.s32.totalorder %s33, 0
      %p337 = por %p335, %p336
      %p338 = scmp.ne.s32.totalorder %s326, %s327
      %p339 = scmp.eq.s32.totalorder %s34, 1
      %p340 = por %p338, %p339
      %p342 = scmp.ne.s32.totalorder %s327, %s341
      %p343 = scmp.eq.s32.totalorder %s34, 0
      %p344 = por %p342, %p343
      %s346 = sadd.s32 %s345, 1
      %p349 = scmp.eq.s32.totalorder %s28, 1
      %p350 = scmp.ne.s32.totalorder %s345, %s347
      %p351 = scmp.eq.s32.totalorder %s28, 0
      %p352 = por %p350, %p351
      %p353 = scmp.ne.s32.totalorder %s345, %s347
      %p354 = scmp.eq.s32.totalorder %s33, 1
      %p355 = por %p353, %p354
      %p356 = scmp.ne.s32.totalorder %s347, %s348
      %p357 = scmp.eq.s32.totalorder %s33, 0
      %p358 = por %p356, %p357
      %p359 = scmp.ne.s32.totalorder %s347, %s348
      %p360 = scmp.eq.s32.totalorder %s34, 1
      %p361 = por %p359, %p360
      %p363 = scmp.ne.s32.totalorder %s348, %s362
      %p364 = scmp.eq.s32.totalorder %s34, 0
      %p365 = por %p363, %p364
      %s367 = sadd.s32 %s366, 1
      %p370 = scmp.eq.s32.totalorder %s28, 1
      %p371 = scmp.ne.s32.totalorder %s366, %s368
      %p372 = scmp.eq.s32.totalorder %s28, 0
      %p373 = por %p371, %p372
      %p374 = scmp.ne.s32.totalorder %s366, %s368
      %p375 = scmp.eq.s32.totalorder %s33, 1
      %p376 = por %p374, %p375
      %p377 = scmp.ne.s32.totalorder %s368, %s369
      %p378 = scmp.eq.s32.totalorder %s33, 0
      %p379 = por %p377, %p378
      %p380 = scmp.ne.s32.totalorder %s368, %s369
      %p381 = scmp.eq.s32.totalorder %s34, 1
      %p382 = por %p380, %p381
      %p384 = scmp.ne.s32.totalorder %s369, %s383
      %p385 = scmp.eq.s32.totalorder %s34, 0
      %p386 = por %p384, %p385
      %s388 = sadd.s32 %s387, 1
      %p391 = scmp.eq.s32.totalorder %s28, 1
      %p392 = scmp.ne.s32.totalorder %s387, %s389
      %p393 = scmp.eq.s32.totalorder %s28, 0
      %p394 = por %p392, %p393
      %p395 = scmp.ne.s32.totalorder %s387, %s389
      %p396 = scmp.eq.s32.totalorder %s33, 1
      %p397 = por %p395, %p396
      %p398 = scmp.ne.s32.totalorder %s389, %s390
      %p399 = scmp.eq.s32.totalorder %s33, 0
      %p400 = por %p398, %p399
      %p401 = scmp.ne.s32.totalorder %s389, %s390
      %p402 = scmp.eq.s32.totalorder %s34, 1
      %p403 = por %p401, %p402
      %p405 = scmp.ne.s32.totalorder %s390, %s404
      %p406 = scmp.eq.s32.totalorder %s34, 0
      %p407 = por %p405, %p406
      %s408 = ssub.s32 %s28, %s35
      %p409 = scmp.eq.s32.totalorder %s408, 0
      %s411 = sadd.s32 %s410, 1
      %s412 = scalar_select %p409, %s410, %s411
      %p415 = pneg %p409
      %p416 = scmp.eq.s32.totalorder %s28, 1
      %p417 = por %p415, %p416
      %p418 = scmp.ne.s32.totalorder %s410, %s413
      %p419 = scmp.eq.s32.totalorder %s28, 0
      %p420 = por %p418, %p419
      %p421 = scmp.ne.s32.totalorder %s410, %s413
      %p422 = scmp.eq.s32.totalorder %s33, 1
      %p423 = por %p421, %p422
      %p424 = scmp.ne.s32.totalorder %s413, %s414
      %p425 = scmp.eq.s32.totalorder %s33, 0
      %p426 = por %p424, %p425
      %p427 = scmp.ne.s32.totalorder %s413, %s414
      %p428 = scmp.eq.s32.totalorder %s34, 1
      %p429 = por %p427, %p428
      %p431 = scmp.ne.s32.totalorder %s414, %s430
      %p432 = scmp.eq.s32.totalorder %s34, 0
      %p433 = por %p431, %p432
      %s434 = ssub.s32 %s28, %s35
      %p435 = scmp.eq.s32.totalorder %s434, 0
      %s437 = sadd.s32 %s436, 1
      %s438 = scalar_select %p435, %s436, %s437
      %p441 = pneg %p435
      %p442 = scmp.eq.s32.totalorder %s28, 1
      %p443 = por %p441, %p442
      %p444 = scmp.ne.s32.totalorder %s436, %s439
      %p445 = scmp.eq.s32.totalorder %s28, 0
      %p446 = por %p444, %p445
      %p447 = scmp.ne.s32.totalorder %s436, %s439
      %p448 = scmp.eq.s32.totalorder %s33, 1
      %p449 = por %p447, %p448
      %p450 = scmp.ne.s32.totalorder %s439, %s440
      %p451 = scmp.eq.s32.totalorder %s33, 0
      %p452 = por %p450, %p451
      %p453 = scmp.ne.s32.totalorder %s439, %s440
      %p454 = scmp.eq.s32.totalorder %s34, 1
      %p455 = por %p453, %p454
      %p457 = scmp.ne.s32.totalorder %s440, %s456
      %p458 = scmp.eq.s32.totalorder %s34, 0
      %p459 = por %p457, %p458
      %p460 = scmp.le.s32.totalorder 1, %s28
      %p461 = scmp.lt.s32.totalorder %s28, 3
      %p462 = pnand %p460, %p461
      %p463 = pneg %p462
      // Predicated region
      $region9: #{allen_transformer2_forward.2} parent=5 // pred_check
        _
      $region10: #{allen_transformer2_forward.2} parent=5 // pred_check_branch
        %465 = sbr.rel (%p462) target = $region12
      $region11: #{allen_transformer2_forward.2} parent=5 // pred_region
        %s466 = ssub.s32 %s28, 1
        // Predicated region
        $region13: #{allen_transformer2_forward.2} parent=11 // pred_check
          %p467 = pneg %p127
        $region14: #{allen_transformer2_forward.2} parent=11 // pred_check_branch
          %469 = sbr.rel (%p467) target = $region16
        $region15: #{allen_transformer2_forward.2} parent=11 // pred_region
          _
        $region16: #{allen_transformer2_forward.2} parent=11 // pred_fallthru
          _
        // Predicated region
        $region17: #{allen_transformer2_forward.2} parent=11 // pred_check
          %p470 = pneg %p148
        $region18: #{allen_transformer2_forward.2} parent=11 // pred_check_branch
          %472 = sbr.rel (%p470) target = $region20
        $region19: #{allen_transformer2_forward.2} parent=11 // pred_region
          _
        $region20: #{allen_transformer2_forward.2} parent=11 // pred_fallthru
          _
        // Predicated region
        $region21: #{allen_transformer2_forward.2} parent=11 // pred_check
          %p473 = pneg %p169
        $region22: #{allen_transformer2_forward.2} parent=11 // pred_check_branch
          %475 = sbr.rel (%p473) target = $region24
        $region23: #{allen_transformer2_forward.2} parent=11 // pred_region
          _
        $region24: #{allen_transformer2_forward.2} parent=11 // pred_fallthru
          _
        // Predicated region
        $region25: #{allen_transformer2_forward.2} parent=11 // pred_check
          %p476 = pneg %p190
        $region26: #{allen_transformer2_forward.2} parent=11 // pred_check_branch
          %478 = sbr.rel (%p476) target = $region28
        $region27: #{allen_transformer2_forward.2} parent=11 // pred_region
          _
        $region28: #{allen_transformer2_forward.2} parent=11 // pred_fallthru
          _
        // Predicated region
        $region29: #{allen_transformer2_forward.2} parent=11 // pred_check
          %p479 = pneg %p211
        $region30: #{allen_transformer2_forward.2} parent=11 // pred_check_branch
          %481 = sbr.rel (%p479) target = $region32
        $region31: #{allen_transformer2_forward.2} parent=11 // pred_region
          _
        $region32: #{allen_transformer2_forward.2} parent=11 // pred_fallthru
          _
        // Predicated region
        $region33: #{allen_transformer2_forward.2} parent=11 // pred_check
          %p482 = pneg %p232
        $region34: #{allen_transformer2_forward.2} parent=11 // pred_check_branch
          %484 = sbr.rel (%p482) target = $region36
        $region35: #{allen_transformer2_forward.2} parent=11 // pred_region
          _
        $region36: #{allen_transformer2_forward.2} parent=11 // pred_fallthru
          _
        // Predicated region
        $region37: #{allen_transformer2_forward.2} parent=11 // pred_check
          %p485 = pneg %p253
        $region38: #{allen_transformer2_forward.2} parent=11 // pred_check_branch
          %487 = sbr.rel (%p485) target = $region40
        $region39: #{allen_transformer2_forward.2} parent=11 // pred_region
          _
        $region40: #{allen_transformer2_forward.2} parent=11 // pred_fallthru
          _
        // Predicated region
        $region41: #{allen_transformer2_forward.2} parent=11 // pred_check
          %p488 = pneg %p274
        $region42: #{allen_transformer2_forward.2} parent=11 // pred_check_branch
          %490 = sbr.rel (%p488) target = $region44
        $region43: #{allen_transformer2_forward.2} parent=11 // pred_region
          _
        $region44: #{allen_transformer2_forward.2} parent=11 // pred_fallthru
          _
        // Predicated region
        $region45: #{allen_transformer2_forward.2} parent=11 // pred_check
          %p491 = pneg %p295
        $region46: #{allen_transformer2_forward.2} parent=11 // pred_check_branch
          %493 = sbr.rel (%p491) target = $region48
        $region47: #{allen_transformer2_forward.2} parent=11 // pred_region
          _
        $region48: #{allen_transformer2_forward.2} parent=11 // pred_fallthru
          _
        // Predicated region
        $region49: #{allen_transformer2_forward.2} parent=11 // pred_check
          %p494 = pneg %p316
        $region50: #{allen_transformer2_forward.2} parent=11 // pred_check_branch
          %496 = sbr.rel (%p494) target = $region52
        $region51: #{allen_transformer2_forward.2} parent=11 // pred_region
          _
        $region52: #{allen_transformer2_forward.2} parent=11 // pred_fallthru
          _
        // Predicated region
        $region53: #{allen_transformer2_forward.2} parent=11 // pred_check
          %p497 = pneg %p337
        $region54: #{allen_transformer2_forward.2} parent=11 // pred_check_branch
          %499 = sbr.rel (%p497) target = $region56
        $region55: #{allen_transformer2_forward.2} parent=11 // pred_region
          _
        $region56: #{allen_transformer2_forward.2} parent=11 // pred_fallthru
          _
        // Predicated region
        $region57: #{allen_transformer2_forward.2} parent=11 // pred_check
          %p500 = pneg %p358
        $region58: #{allen_transformer2_forward.2} parent=11 // pred_check_branch
          %502 = sbr.rel (%p500) target = $region60
        $region59: #{allen_transformer2_forward.2} parent=11 // pred_region
          _
        $region60: #{allen_transformer2_forward.2} parent=11 // pred_fallthru
          _
        // Predicated region
        $region61: #{allen_transformer2_forward.2} parent=11 // pred_check
          %p503 = pneg %p379
        $region62: #{allen_transformer2_forward.2} parent=11 // pred_check_branch
          %505 = sbr.rel (%p503) target = $region64
        $region63: #{allen_transformer2_forward.2} parent=11 // pred_region
          _
        $region64: #{allen_transformer2_forward.2} parent=11 // pred_fallthru
          _
        // Predicated region
        $region65: #{allen_transformer2_forward.2} parent=11 // pred_check
          %p506 = pneg %p400
        $region66: #{allen_transformer2_forward.2} parent=11 // pred_check_branch
          %508 = sbr.rel (%p506) target = $region68
        $region67: #{allen_transformer2_forward.2} parent=11 // pred_region
          _
        $region68: #{allen_transformer2_forward.2} parent=11 // pred_fallthru
          _
      $region12: #{allen_transformer2_forward.2} parent=5 // pred_fallthru
        _
      %p509 = scmp.lt.s32.totalorder %s28, 2
      // Predicated region
      $region69: #{allen_transformer2_forward.2} parent=5 // pred_check
        %p510 = pneg %p509
      $region70: #{allen_transformer2_forward.2} parent=5 // pred_check_branch
        %512 = sbr.rel (%p510) target = $region72
      $region71: #{allen_transformer2_forward.2} parent=5 // pred_region
        // Predicated region
        $region73: #{allen_transformer2_forward.2} parent=71 // pred_check
          %p513 = pneg %p48
        $region74: #{allen_transformer2_forward.2} parent=71 // pred_check_branch
          %515 = sbr.rel (%p513) target = $region76
        $region75: #{allen_transformer2_forward.2} parent=71 // pred_region
          %p516 = scmp.lt.s32.totalorder %s28, 1
          %s517 = scalar_select %p516, %s28, 1
          %s518 = smul.addr %s517, 8
          %s519 = scalar_lea.vmem %s0, %s518
        $region76: #{allen_transformer2_forward.2} parent=71 // pred_fallthru
          _
        // Predicated region
        $region77: #{allen_transformer2_forward.2} parent=71 // pred_check
          %p520 = pneg %p74
        $region78: #{allen_transformer2_forward.2} parent=71 // pred_check_branch
          %522 = sbr.rel (%p520) target = $region80
        $region79: #{allen_transformer2_forward.2} parent=71 // pred_region
          %p523 = scmp.lt.s32.totalorder %s28, 1
          %s524 = scalar_select %p523, %s28, 1
          %s525 = smul.addr %s524, 8
          %s526 = scalar_lea.vmem %s1, %s525
        $region80: #{allen_transformer2_forward.2} parent=71 // pred_fallthru
          _
        // Predicated region
        $region81: #{allen_transformer2_forward.2} parent=71 // pred_check
          %p527 = pneg %p100
        $region82: #{allen_transformer2_forward.2} parent=71 // pred_check_branch
          %529 = sbr.rel (%p527) target = $region84
        $region83: #{allen_transformer2_forward.2} parent=71 // pred_region
          %p530 = scmp.lt.s32.totalorder %s28, 1
          %s531 = scalar_select %p530, %s28, 1
          %s532 = scalar_lea.vmem %s2, %s531
        $region84: #{allen_transformer2_forward.2} parent=71 // pred_fallthru
          _
      $region72: #{allen_transformer2_forward.2} parent=5 // pred_fallthru
        _
      %p533 = scmp.le.s32.totalorder 1, %s28
      %p534 = scmp.lt.s32.totalorder %s28, 3
      %p535 = pnand %p533, %p534
      %p536 = pneg %p535
      // Predicated region
      $region85: #{allen_transformer2_forward.2} parent=5 // pred_check
        _
      $region86: #{allen_transformer2_forward.2} parent=5 // pred_check_branch
        %538 = sbr.rel (%p535) target = $region88
      $region87: #{allen_transformer2_forward.2} parent=5 // pred_region
        %s539 = ssub.s32 %s28, 1
        %p540 = scmp.lt.s32.totalorder %s33, 1
        %s541 = scalar_select %p540, %s33, 1
        %s542 = smul.addr %s541, 8
        %s543 = scalar_lea.vmem %s0, %s542
        %p544 = pneg %p54
        %p545 = pneg %p51
        %p546 = scmp.lt.s32.totalorder %s33, 1
        %s547 = scalar_select %p546, %s33, 1
        %s548 = smul.addr %s547, 8
        %s549 = scalar_lea.vmem %s1, %s548
        %p550 = pneg %p80
        %p551 = pneg %p77
        %p552 = scmp.lt.s32.totalorder %s33, 1
        %s553 = scalar_select %p552, %s33, 1
        %s554 = scalar_lea.vmem %s2, %s553
        %p555 = pneg %p106
        %p556 = pneg %p103
        %p557 = pneg %p127
        %p558 = pneg %p124
        %p559 = pneg %p148
        %p560 = pneg %p145
        %p561 = pneg %p169
        %p562 = pneg %p166
        %p563 = pneg %p190
        %p564 = pneg %p187
        %p565 = pneg %p211
        %p566 = pneg %p208
        %p567 = pneg %p232
        %p568 = pneg %p229
        %p569 = pneg %p253
        %p570 = pneg %p250
        %p571 = pneg %p274
        %p572 = pneg %p271
        %p573 = pneg %p295
        %p574 = pneg %p292
        %p575 = pneg %p316
        %p576 = pneg %p313
        %p577 = pneg %p337
        %p578 = pneg %p334
        %p579 = pneg %p358
        %p580 = pneg %p355
        %p581 = pneg %p379
        %p582 = pneg %p376
        %p583 = pneg %p400
        %p584 = pneg %p397
        %p585 = pneg %p426
        %p586 = pneg %p423
        %p587 = scmp.lt.s32.totalorder %s33, 1
        %s588 = scalar_select %p587, %s33, 1
        %s589 = smul.addr %s588, 8
        %s590 = scalar_lea.vmem %s17, %s589
        %p591 = pneg %p452
        %p592 = pneg %p449
        %s593 = sand.u32 %s439, 1
        %s594 = scalar_lea.sflag [#allocation3], %s593
        %s595 = sand.u32 %s439, 1
        %s596 = smul.addr %s595, 8
        %s597 = scalar_lea.vmem [#allocation2], %s596
        %p598 = scmp.lt.s32.totalorder %s33, 1
        %s599 = scalar_select %p598, %s33, 1
        %s600 = smul.addr %s599, 8
        %s601 = scalar_lea.vmem %s0, %s600
        %p602 = scmp.lt.s32.totalorder %s33, 1
        %s603 = scalar_select %p602, %s33, 1
        %s604 = smul.addr %s603, 8
        %s605 = scalar_lea.vmem %s1, %s604
        %p606 = scmp.lt.s32.totalorder %s33, 1
        %s607 = scalar_select %p606, %s33, 1
        %s608 = scalar_lea.vmem %s2, %s607
        %p609 = scmp.lt.s32.totalorder %s33, 1
        %s610 = scalar_select %p609, %s33, 1
        %s611 = smul.addr %s610, 8
        %s612 = scalar_lea.vmem %s17, %s611
        %v613 = vld [vmem:[%s601] sm:$0xff]
        %v614 = vld [vmem:[%s605] sm:$0xff]
        %v615 = vld [vmem:[%s608] sm:$0x1]
        %v616 = vld [vmem:[%s3] sm:$0xff]
        %v617 = vld [vmem:[%s3 + $0x8] sm:$0xff]
        %v618 = vld [vmem:[%s5] sm:$0xff]
        %v619 = vld [vmem:[%s5 + $0x8] sm:$0xff]
        %v620 = vld [vmem:[%s7] sm:$0xff]
        %v621 = vld [vmem:[%s7 + $0x8] sm:$0xff]
        %v622 = vld [vmem:[%s9] sm:$0xff]
        %v623 = vld [vmem:[%s9 + $0x8] sm:$0xff]
        %v624 = vld [vmem:[%s11] sm:$0xff]
        %v625 = vld [vmem:[%s11 + $0x8] sm:$0xff]
        %v626 = vld [vmem:[%s11 + $0x10] sm:$0xff]
        %v627 = vld [vmem:[%s11 + $0x18] sm:$0xff]
        %v628 = vadd.f32 %v613, %v614
        %v629 = vld [vmem:[%s4] sm:$0x1]
        %v631 = vlaneseq
        %v632 = vshrl.u32 %v631, 7
        %v633 = vsub.s32 0, %v632
        %v634 = vrot.slane %v629, %v633
        %vm636 = vcmask 130048
        %v638 = vsel %vm636, %v628, 0
        %640 = vmatprep.subr.mxu0 0.0
        %641 = vmatpush1.msra.mxu0 %v616
        %642 = vmatprep.subr.mxu0 0.0
        %643 = vmatpush1.msra.mxu0 %v617
        %644 = vmatprep.subr.mxu0 0.0
        %645 = vmatpush1.msra.mxu0 0.0
        %646 = vmatprep.subr.mxu0 0.0
        %647 = vmatpush1.msra.mxu0 0.0
        %648 = vmatprep.subr.mxu0 0.0
        %649 = vmatpush1.msra.mxu0 0.0
        %650 = vmatprep.subr.mxu0 0.0
        %651 = vmatpush1.msra.mxu0 0.0
        %652 = vmatprep.subr.mxu0 0.0
        %653 = vmatpush1.msra.mxu0 0.0
        %654 = vmatprep.subr.mxu0 0.0
        %655 = vmatpush1.msra.mxu0 0.0
        %656 = vmatprep.subr.mxu0 0.0
        %657 = vmatpush1.msra.mxu0 0.0
        %658 = vmatprep.subr.mxu0 0.0
        %659 = vmatpush1.msra.mxu0 0.0
        %660 = vmatprep.subr.mxu0 0.0
        %661 = vmatpush1.msra.mxu0 0.0
        %662 = vmatprep.subr.mxu0 0.0
        %663 = vmatpush1.msra.mxu0 0.0
        %664 = vmatprep.subr.mxu0 0.0
        %665 = vmatpush1.msra.mxu0 0.0
        %666 = vmatprep.subr.mxu0 0.0
        %667 = vmatpush1.msra.mxu0 0.0
        %668 = vmatprep.subr.mxu0 0.0
        %669 = vmatpush1.msra.mxu0 0.0
        %670 = vmatprep.subr.mxu0 0.0
        %671 = vmatpush1.msra.mxu0 0.0
        %672 = vmatprep.subr.mxu0 0.0
        %673 = vmatpush1.msra.mxu0 0.0
        %674 = vmatprep.subr.mxu0 0.0
        %675 = vmatpush1.msra.mxu0 0.0
        %676 = vmatprep.subr.mxu0 0.0
        %677 = vmatpush1.msra.mxu0 0.0
        %678 = vmatprep.subr.mxu0 0.0
        %679 = vmatpush1.msra.mxu0 0.0
        %680 = vmatprep.subr.mxu0 0.0
        %681 = vmatpush1.msra.mxu0 0.0
        %682 = vmatprep.subr.mxu0 0.0
        %683 = vmatpush1.msra.mxu0 0.0
        %684 = vmatprep.subr.mxu0 0.0
        %685 = vmatpush1.msra.mxu0 0.0
        %686 = vmatprep.subr.mxu0 0.0
        %687 = vmatpush1.msra.mxu0 0.0
        %688 = vmatprep.subr.mxu0 0.0
        %689 = vmatpush1.msra.mxu0 0.0
        %690 = vmatprep.subr.mxu0 0.0
        %691 = vmatpush1.msra.mxu0 0.0
        %692 = vmatprep.subr.mxu0 0.0
        %693 = vmatpush1.msra.mxu0 0.0
        %694 = vmatprep.subr.mxu0 0.0
        %695 = vmatpush1.msra.mxu0 0.0
        %696 = vmatprep.subr.mxu0 0.0
        %697 = vmatpush1.msra.mxu0 0.0
        %698 = vmatprep.subr.mxu0 0.0
        %699 = vmatpush1.msra.mxu0 0.0
        %700 = vmatprep.subr.mxu0 0.0
        %701 = vmatpush1.msra.mxu0 0.0
        %702 = vmatprep.subr.mxu0 0.0
        %703 = vmatpush1.msra.mxu0 0.0
        %704 = vmatprep.mubr.f32.mxu0 0.0
        %705 = vmatmul.mubr.f32.gmra.mrb[0].mxu0 %v638
        %v706 = vpop.f32.mrb[0].mxu0
        %v707 = vadd.f32 %v634, %v706
        %v708 = vpop.f32.mrb[0].mxu0
        %709 = vdwg.mxu0
        %v710 = vld [vmem:[%s6] sm:$0x1]
        %v712 = vlaneseq
        %v713 = vshrl.u32 %v712, 7
        %v714 = vsub.s32 0, %v713
        %v715 = vrot.slane %v710, %v714
        %v718 = vsel %vm636, %v613, 0
        %720 = vmatprep.subr.mxu0 0.0
        %721 = vmatpush1.msra.mxu0 %v618
        %722 = vmatprep.subr.mxu0 0.0
        %723 = vmatpush1.msra.mxu0 %v619
        %724 = vmatprep.subr.mxu0 0.0
        %725 = vmatpush1.msra.mxu0 0.0
        %726 = vmatprep.subr.mxu0 0.0
        %727 = vmatpush1.msra.mxu0 0.0
        %728 = vmatprep.subr.mxu0 0.0
        %729 = vmatpush1.msra.mxu0 0.0
        %730 = vmatprep.subr.mxu0 0.0
        %731 = vmatpush1.msra.mxu0 0.0
        %732 = vmatprep.subr.mxu0 0.0
        %733 = vmatpush1.msra.mxu0 0.0
        %734 = vmatprep.subr.mxu0 0.0
        %735 = vmatpush1.msra.mxu0 0.0
        %736 = vmatprep.subr.mxu0 0.0
        %737 = vmatpush1.msra.mxu0 0.0
        %738 = vmatprep.subr.mxu0 0.0
        %739 = vmatpush1.msra.mxu0 0.0
        %740 = vmatprep.subr.mxu0 0.0
        %741 = vmatpush1.msra.mxu0 0.0
        %742 = vmatprep.subr.mxu0 0.0
        %743 = vmatpush1.msra.mxu0 0.0
        %744 = vmatprep.subr.mxu0 0.0
        %745 = vmatpush1.msra.mxu0 0.0
        %746 = vmatprep.subr.mxu0 0.0
        %747 = vmatpush1.msra.mxu0 0.0
        %748 = vmatprep.subr.mxu0 0.0
        %749 = vmatpush1.msra.mxu0 0.0
        %750 = vmatprep.subr.mxu0 0.0
        %751 = vmatpush1.msra.mxu0 0.0
        %752 = vmatprep.subr.mxu0 0.0
        %753 = vmatpush1.msra.mxu0 0.0
        %754 = vmatprep.subr.mxu0 0.0
        %755 = vmatpush1.msra.mxu0 0.0
        %756 = vmatprep.subr.mxu0 0.0
        %757 = vmatpush1.msra.mxu0 0.0
        %758 = vmatprep.subr.mxu0 0.0
        %759 = vmatpush1.msra.mxu0 0.0
        %760 = vmatprep.subr.mxu0 0.0
        %761 = vmatpush1.msra.mxu0 0.0
        %762 = vmatprep.subr.mxu0 0.0
        %763 = vmatpush1.msra.mxu0 0.0
        %764 = vmatprep.subr.mxu0 0.0
        %765 = vmatpush1.msra.mxu0 0.0
        %766 = vmatprep.subr.mxu0 0.0
        %767 = vmatpush1.msra.mxu0 0.0
        %768 = vmatprep.subr.mxu0 0.0
        %769 = vmatpush1.msra.mxu0 0.0
        %770 = vmatprep.subr.mxu0 0.0
        %771 = vmatpush1.msra.mxu0 0.0
        %772 = vmatprep.subr.mxu0 0.0
        %773 = vmatpush1.msra.mxu0 0.0
        %774 = vmatprep.subr.mxu0 0.0
        %775 = vmatpush1.msra.mxu0 0.0
        %776 = vmatprep.subr.mxu0 0.0
        %777 = vmatpush1.msra.mxu0 0.0
        %778 = vmatprep.subr.mxu0 0.0
        %779 = vmatpush1.msra.mxu0 0.0
        %780 = vmatprep.subr.mxu0 0.0
        %781 = vmatpush1.msra.mxu0 0.0
        %782 = vmatprep.subr.mxu0 0.0
        %783 = vmatpush1.msra.mxu0 0.0
        %784 = vmatprep.mubr.f32.mxu0 0.0
        %785 = vmatmul.mubr.f32.gmra.mrb[0].mxu0 %v718
        %v786 = vpop.f32.mrb[0].mxu0
        %v787 = vadd.f32 %v715, %v786
        %v788 = vpop.f32.mrb[0].mxu0
        %789 = vdwg.mxu0
        %791 = vrot.lane.b32.xlu0 %v707, 112
        %v792 = vpop.permute.xlu0 %791
        %vm793 = vcmask 64512
        %v794 = vsel %vm793, %v707, 0
        %v796 = vsel %vm793, %v792, 0
        %798 = vmatprep.subr.mxu0 0.0
        %799 = vmatpush1.xpose.msra.mxu0 %v796
        %800 = vmatprep.subr.mxu0 0.0
        %801 = vmatpush1.xpose.msra.mxu0 0.0
        %802 = vmatprep.subr.mxu0 0.0
        %803 = vmatpush1.xpose.msra.mxu0 0.0
        %804 = vmatprep.subr.mxu0 0.0
        %805 = vmatpush1.xpose.msra.mxu0 0.0
        %806 = vmatprep.subr.mxu0 0.0
        %807 = vmatpush1.xpose.msra.mxu0 0.0
        %808 = vmatprep.subr.mxu0 0.0
        %809 = vmatpush1.xpose.msra.mxu0 0.0
        %810 = vmatprep.subr.mxu0 0.0
        %811 = vmatpush1.xpose.msra.mxu0 0.0
        %812 = vmatprep.subr.mxu0 0.0
        %813 = vmatpush1.xpose.msra.mxu0 0.0
        %814 = vmatprep.subr.mxu0 0.0
        %815 = vmatpush1.xpose.msra.mxu0 0.0
        %816 = vmatprep.subr.mxu0 0.0
        %817 = vmatpush1.xpose.msra.mxu0 0.0
        %818 = vmatprep.subr.mxu0 0.0
        %819 = vmatpush1.xpose.msra.mxu0 0.0
        %820 = vmatprep.subr.mxu0 0.0
        %821 = vmatpush1.xpose.msra.mxu0 0.0
        %822 = vmatprep.subr.mxu0 0.0
        %823 = vmatpush1.xpose.msra.mxu0 0.0
        %824 = vmatprep.subr.mxu0 0.0
        %825 = vmatpush1.xpose.msra.mxu0 0.0
        %826 = vmatprep.subr.mxu0 0.0
        %827 = vmatpush1.xpose.msra.mxu0 0.0
        %828 = vmatprep.subr.mxu0 0.0
        %829 = vmatpush1.xpose.msra.mxu0 0.0
        %830 = vmatprep.subr.mxu0 0.0
        %831 = vmatpush1.xpose.msra.mxu0 0.0
        %832 = vmatprep.subr.mxu0 0.0
        %833 = vmatpush1.xpose.msra.mxu0 0.0
        %834 = vmatprep.subr.mxu0 0.0
        %835 = vmatpush1.xpose.msra.mxu0 0.0
        %836 = vmatprep.subr.mxu0 0.0
        %837 = vmatpush1.xpose.msra.mxu0 0.0
        %838 = vmatprep.subr.mxu0 0.0
        %839 = vmatpush1.xpose.msra.mxu0 0.0
        %840 = vmatprep.subr.mxu0 0.0
        %841 = vmatpush1.xpose.msra.mxu0 0.0
        %842 = vmatprep.subr.mxu0 0.0
        %843 = vmatpush1.xpose.msra.mxu0 0.0
        %844 = vmatprep.subr.mxu0 0.0
        %845 = vmatpush1.xpose.msra.mxu0 0.0
        %846 = vmatprep.subr.mxu0 0.0
        %847 = vmatpush1.xpose.msra.mxu0 0.0
        %848 = vmatprep.subr.mxu0 0.0
        %849 = vmatpush1.xpose.msra.mxu0 0.0
        %850 = vmatprep.subr.mxu0 0.0
        %851 = vmatpush1.xpose.msra.mxu0 0.0
        %852 = vmatprep.subr.mxu0 0.0
        %853 = vmatpush1.xpose.msra.mxu0 0.0
        %854 = vmatprep.subr.mxu0 0.0
        %855 = vmatpush1.xpose.msra.mxu0 0.0
        %856 = vmatprep.subr.mxu0 0.0
        %857 = vmatpush1.xpose.msra.mxu0 0.0
        %858 = vmatprep.subr.mxu0 0.0
        %859 = vmatpush1.xpose.msra.mxu0 0.0
        %860 = vmatprep.subr.mxu0 0.0
        %861 = vmatpush1.xpose.msra.mxu0 0.0
        %862 = vmatprep.mubr.f32.mxu0 0.0
        %863 = vmatmul.mubr.f32.gmra.mrb[0].mxu0 %v794
        %v864 = vpop.f32.mrb[0].mxu0
        %v865 = vadd.f32 0.0, %v864
        %v866 = vpop.f32.mrb[0].mxu0
        %867 = vdwg.mxu0
        %v868 = vmul.f32 %v865, 0.35355338
        %v870 = vlaneseq
        %v871 = vshrl.u32 %v870, 7
        %v872 = vsub.s32 0, %v871
        %v873 = vrot.slane %v615, %v872
        %v875 = vadd.f32 %v868, %v873
        %v876 = vsel %vm793, %v875, -inf
        %877 = vmax.xlane.f32.xlu0 %v876
        %v878 = vpop.xlane.xlu0 %877
        %v879 = vsub.f32 %v875, %v878
        %v880 = vmul.f32 %v879, 1.442695
        %v881 = vpow.pop %v880
        %v882 = vsel %vm793, %v881, 0.0
        %883 = vadd.xlane.f32.xlu0 %v882
        %v884 = vpop.xlane.xlu0 %883
        %v885 = vrcp.pop %v884
        %v886 = vmul.f32 %v881, %v885
        %v888 = vsel %vm793, %v886, 0
        %890 = vmatprep.subr.mxu0 0.0
        %891 = vmatpush1.msra.mxu0 %v787
        %892 = vmatprep.subr.mxu0 0.0
        %893 = vmatpush1.msra.mxu0 0.0
        %894 = vmatprep.subr.mxu0 0.0
        %895 = vmatpush1.msra.mxu0 0.0
        %896 = vmatprep.subr.mxu0 0.0
        %897 = vmatpush1.msra.mxu0 0.0
        %898 = vmatprep.subr.mxu0 0.0
        %899 = vmatpush1.msra.mxu0 0.0
        %900 = vmatprep.subr.mxu0 0.0
        %901 = vmatpush1.msra.mxu0 0.0
        %902 = vmatprep.subr.mxu0 0.0
        %903 = vmatpush1.msra.mxu0 0.0
        %904 = vmatprep.subr.mxu0 0.0
        %905 = vmatpush1.msra.mxu0 0.0
        %906 = vmatprep.subr.mxu0 0.0
        %907 = vmatpush1.msra.mxu0 0.0
        %908 = vmatprep.subr.mxu0 0.0
        %909 = vmatpush1.msra.mxu0 0.0
        %910 = vmatprep.subr.mxu0 0.0
        %911 = vmatpush1.msra.mxu0 0.0
        %912 = vmatprep.subr.mxu0 0.0
        %913 = vmatpush1.msra.mxu0 0.0
        %914 = vmatprep.subr.mxu0 0.0
        %915 = vmatpush1.msra.mxu0 0.0
        %916 = vmatprep.subr.mxu0 0.0
        %917 = vmatpush1.msra.mxu0 0.0
        %918 = vmatprep.subr.mxu0 0.0
        %919 = vmatpush1.msra.mxu0 0.0
        %920 = vmatprep.subr.mxu0 0.0
        %921 = vmatpush1.msra.mxu0 0.0
        %922 = vmatprep.subr.mxu0 0.0
        %923 = vmatpush1.msra.mxu0 0.0
        %924 = vmatprep.subr.mxu0 0.0
        %925 = vmatpush1.msra.mxu0 0.0
        %926 = vmatprep.subr.mxu0 0.0
        %927 = vmatpush1.msra.mxu0 0.0
        %928 = vmatprep.subr.mxu0 0.0
        %929 = vmatpush1.msra.mxu0 0.0
        %930 = vmatprep.subr.mxu0 0.0
        %931 = vmatpush1.msra.mxu0 0.0
        %932 = vmatprep.subr.mxu0 0.0
        %933 = vmatpush1.msra.mxu0 0.0
        %934 = vmatprep.subr.mxu0 0.0
        %935 = vmatpush1.msra.mxu0 0.0
        %936 = vmatprep.subr.mxu0 0.0
        %937 = vmatpush1.msra.mxu0 0.0
        %938 = vmatprep.subr.mxu0 0.0
        %939 = vmatpush1.msra.mxu0 0.0
        %940 = vmatprep.subr.mxu0 0.0
        %941 = vmatpush1.msra.mxu0 0.0
        %942 = vmatprep.subr.mxu0 0.0
        %943 = vmatpush1.msra.mxu0 0.0
        %944 = vmatprep.subr.mxu0 0.0
        %945 = vmatpush1.msra.mxu0 0.0
        %946 = vmatprep.subr.mxu0 0.0
        %947 = vmatpush1.msra.mxu0 0.0
        %948 = vmatprep.subr.mxu0 0.0
        %949 = vmatpush1.msra.mxu0 0.0
        %950 = vmatprep.subr.mxu0 0.0
        %951 = vmatpush1.msra.mxu0 0.0
        %952 = vmatprep.subr.mxu0 0.0
        %953 = vmatpush1.msra.mxu0 0.0
        %954 = vmatprep.mubr.f32.mxu0 0.0
        %955 = vmatmul.mubr.f32.gmra.mrb[0].mxu0 %v888
        %v956 = vpop.f32.mrb[0].mxu0
        %v957 = vadd.f32 0.0, %v956
        %v958 = vpop.f32.mrb[0].mxu0
        %959 = vdwg.mxu0
        %960 = vrot.lane.b32.xlu0 %v707, 120
        %v961 = vpop.permute.xlu0 %960
        %962 = vrot.lane.b32.xlu0 %v707, 104
        %v963 = vpop.permute.xlu0 %962
        %v964 = vsel %vm793, %v961, 0
        %v966 = vsel %vm793, %v963, 0
        %968 = vmatprep.subr.mxu0 0.0
        %969 = vmatpush1.xpose.msra.mxu0 %v966
        %970 = vmatprep.subr.mxu0 0.0
        %971 = vmatpush1.xpose.msra.mxu0 0.0
        %972 = vmatprep.subr.mxu0 0.0
        %973 = vmatpush1.xpose.msra.mxu0 0.0
        %974 = vmatprep.subr.mxu0 0.0
        %975 = vmatpush1.xpose.msra.mxu0 0.0
        %976 = vmatprep.subr.mxu0 0.0
        %977 = vmatpush1.xpose.msra.mxu0 0.0
        %978 = vmatprep.subr.mxu0 0.0
        %979 = vmatpush1.xpose.msra.mxu0 0.0
        %980 = vmatprep.subr.mxu0 0.0
        %981 = vmatpush1.xpose.msra.mxu0 0.0
        %982 = vmatprep.subr.mxu0 0.0
        %983 = vmatpush1.xpose.msra.mxu0 0.0
        %984 = vmatprep.subr.mxu0 0.0
        %985 = vmatpush1.xpose.msra.mxu0 0.0
        %986 = vmatprep.subr.mxu0 0.0
        %987 = vmatpush1.xpose.msra.mxu0 0.0
        %988 = vmatprep.subr.mxu0 0.0
        %989 = vmatpush1.xpose.msra.mxu0 0.0
        %990 = vmatprep.subr.mxu0 0.0
        %991 = vmatpush1.xpose.msra.mxu0 0.0
        %992 = vmatprep.subr.mxu0 0.0
        %993 = vmatpush1.xpose.msra.mxu0 0.0
        %994 = vmatprep.subr.mxu0 0.0
        %995 = vmatpush1.xpose.msra.mxu0 0.0
        %996 = vmatprep.subr.mxu0 0.0
        %997 = vmatpush1.xpose.msra.mxu0 0.0
        %998 = vmatprep.subr.mxu0 0.0
        %999 = vmatpush1.xpose.msra.mxu0 0.0
        %1000 = vmatprep.subr.mxu0 0.0
        %1001 = vmatpush1.xpose.msra.mxu0 0.0
        %1002 = vmatprep.subr.mxu0 0.0
        %1003 = vmatpush1.xpose.msra.mxu0 0.0
        %1004 = vmatprep.subr.mxu0 0.0
        %1005 = vmatpush1.xpose.msra.mxu0 0.0
        %1006 = vmatprep.subr.mxu0 0.0
        %1007 = vmatpush1.xpose.msra.mxu0 0.0
        %1008 = vmatprep.subr.mxu0 0.0
        %1009 = vmatpush1.xpose.msra.mxu0 0.0
        %1010 = vmatprep.subr.mxu0 0.0
        %1011 = vmatpush1.xpose.msra.mxu0 0.0
        %1012 = vmatprep.subr.mxu0 0.0
        %1013 = vmatpush1.xpose.msra.mxu0 0.0
        %1014 = vmatprep.subr.mxu0 0.0
        %1015 = vmatpush1.xpose.msra.mxu0 0.0
        %1016 = vmatprep.subr.mxu0 0.0
        %1017 = vmatpush1.xpose.msra.mxu0 0.0
        %1018 = vmatprep.subr.mxu0 0.0
        %1019 = vmatpush1.xpose.msra.mxu0 0.0
        %1020 = vmatprep.subr.mxu0 0.0
        %1021 = vmatpush1.xpose.msra.mxu0 0.0
        %1022 = vmatprep.subr.mxu0 0.0
        %1023 = vmatpush1.xpose.msra.mxu0 0.0
        %1024 = vmatprep.subr.mxu0 0.0
        %1025 = vmatpush1.xpose.msra.mxu0 0.0
        %1026 = vmatprep.subr.mxu0 0.0
        %1027 = vmatpush1.xpose.msra.mxu0 0.0
        %1028 = vmatprep.subr.mxu0 0.0
        %1029 = vmatpush1.xpose.msra.mxu0 0.0
        %1030 = vmatprep.subr.mxu0 0.0
        %1031 = vmatpush1.xpose.msra.mxu0 0.0
        %1032 = vmatprep.mubr.f32.mxu0 0.0
        %1033 = vmatmul.mubr.f32.gmra.mrb[0].mxu0 %v964
        %v1034 = vpop.f32.mrb[0].mxu0
        %v1035 = vadd.f32 0.0, %v1034
        %v1036 = vpop.f32.mrb[0].mxu0
        %1037 = vdwg.mxu0
        %v1038 = vmul.f32 %v1035, 0.35355338
        %v1039 = vadd.f32 %v1038, %v873
        %v1040 = vsel %vm793, %v1039, -inf
        %1041 = vmax.xlane.f32.xlu0 %v1040
        %v1042 = vpop.xlane.xlu0 %1041
        %v1043 = vsub.f32 %v1039, %v1042
        %v1044 = vmul.f32 %v1043, 1.442695
        %v1045 = vpow.pop %v1044
        %v1046 = vsel %vm793, %v1045, 0.0
        %1047 = vadd.xlane.f32.xlu0 %v1046
        %v1048 = vpop.xlane.xlu0 %1047
        %v1049 = vrcp.pop %v1048
        %v1050 = vmul.f32 %v1045, %v1049
        %1052 = vrot.lane.b32.xlu0 %v787, 120
        %v1053 = vpop.permute.xlu0 %1052
        %v1056 = vsel %vm793, %v1050, 0
        %1058 = vmatprep.subr.mxu0 0.0
        %1059 = vmatpush1.msra.mxu0 %v1053
        %1060 = vmatprep.subr.mxu0 0.0
        %1061 = vmatpush1.msra.mxu0 0.0
        %1062 = vmatprep.subr.mxu0 0.0
        %1063 = vmatpush1.msra.mxu0 0.0
        %1064 = vmatprep.subr.mxu0 0.0
        %1065 = vmatpush1.msra.mxu0 0.0
        %1066 = vmatprep.subr.mxu0 0.0
        %1067 = vmatpush1.msra.mxu0 0.0
        %1068 = vmatprep.subr.mxu0 0.0
        %1069 = vmatpush1.msra.mxu0 0.0
        %1070 = vmatprep.subr.mxu0 0.0
        %1071 = vmatpush1.msra.mxu0 0.0
        %1072 = vmatprep.subr.mxu0 0.0
        %1073 = vmatpush1.msra.mxu0 0.0
        %1074 = vmatprep.subr.mxu0 0.0
        %1075 = vmatpush1.msra.mxu0 0.0
        %1076 = vmatprep.subr.mxu0 0.0
        %1077 = vmatpush1.msra.mxu0 0.0
        %1078 = vmatprep.subr.mxu0 0.0
        %1079 = vmatpush1.msra.mxu0 0.0
        %1080 = vmatprep.subr.mxu0 0.0
        %1081 = vmatpush1.msra.mxu0 0.0
        %1082 = vmatprep.subr.mxu0 0.0
        %1083 = vmatpush1.msra.mxu0 0.0
        %1084 = vmatprep.subr.mxu0 0.0
        %1085 = vmatpush1.msra.mxu0 0.0
        %1086 = vmatprep.subr.mxu0 0.0
        %1087 = vmatpush1.msra.mxu0 0.0
        %1088 = vmatprep.subr.mxu0 0.0
        %1089 = vmatpush1.msra.mxu0 0.0
        %1090 = vmatprep.subr.mxu0 0.0
        %1091 = vmatpush1.msra.mxu0 0.0
        %1092 = vmatprep.subr.mxu0 0.0
        %1093 = vmatpush1.msra.mxu0 0.0
        %1094 = vmatprep.subr.mxu0 0.0
        %1095 = vmatpush1.msra.mxu0 0.0
        %1096 = vmatprep.subr.mxu0 0.0
        %1097 = vmatpush1.msra.mxu0 0.0
        %1098 = vmatprep.subr.mxu0 0.0
        %1099 = vmatpush1.msra.mxu0 0.0
        %1100 = vmatprep.subr.mxu0 0.0
        %1101 = vmatpush1.msra.mxu0 0.0
        %1102 = vmatprep.subr.mxu0 0.0
        %1103 = vmatpush1.msra.mxu0 0.0
        %1104 = vmatprep.subr.mxu0 0.0
        %1105 = vmatpush1.msra.mxu0 0.0
        %1106 = vmatprep.subr.mxu0 0.0
        %1107 = vmatpush1.msra.mxu0 0.0
        %1108 = vmatprep.subr.mxu0 0.0
        %1109 = vmatpush1.msra.mxu0 0.0
        %1110 = vmatprep.subr.mxu0 0.0
        %1111 = vmatpush1.msra.mxu0 0.0
        %1112 = vmatprep.subr.mxu0 0.0
        %1113 = vmatpush1.msra.mxu0 0.0
        %1114 = vmatprep.subr.mxu0 0.0
        %1115 = vmatpush1.msra.mxu0 0.0
        %1116 = vmatprep.subr.mxu0 0.0
        %1117 = vmatpush1.msra.mxu0 0.0
        %1118 = vmatprep.subr.mxu0 0.0
        %1119 = vmatpush1.msra.mxu0 0.0
        %1120 = vmatprep.subr.mxu0 0.0
        %1121 = vmatpush1.msra.mxu0 0.0
        %1122 = vmatprep.mubr.f32.mxu0 0.0
        %1123 = vmatmul.mubr.f32.gmra.mrb[0].mxu0 %v1056
        %v1124 = vpop.f32.mrb[0].mxu0
        %v1125 = vadd.f32 0.0, %v1124
        %v1126 = vpop.f32.mrb[0].mxu0
        %1127 = vdwg.mxu0
        %v1129 = vsel %vm793, %v1125, 0
        %1131 = vmatprep.subr.mxu0 0.0
        %1132 = vmatpush1.msra.mxu0 %v621
        %1133 = vmatprep.subr.mxu0 0.0
        %1134 = vmatpush1.msra.mxu0 0.0
        %1135 = vmatprep.subr.mxu0 0.0
        %1136 = vmatpush1.msra.mxu0 0.0
        %1137 = vmatprep.subr.mxu0 0.0
        %1138 = vmatpush1.msra.mxu0 0.0
        %1139 = vmatprep.subr.mxu0 0.0
        %1140 = vmatpush1.msra.mxu0 0.0
        %1141 = vmatprep.subr.mxu0 0.0
        %1142 = vmatpush1.msra.mxu0 0.0
        %1143 = vmatprep.subr.mxu0 0.0
        %1144 = vmatpush1.msra.mxu0 0.0
        %1145 = vmatprep.subr.mxu0 0.0
        %1146 = vmatpush1.msra.mxu0 0.0
        %1147 = vmatprep.subr.mxu0 0.0
        %1148 = vmatpush1.msra.mxu0 0.0
        %1149 = vmatprep.subr.mxu0 0.0
        %1150 = vmatpush1.msra.mxu0 0.0
        %1151 = vmatprep.subr.mxu0 0.0
        %1152 = vmatpush1.msra.mxu0 0.0
        %1153 = vmatprep.subr.mxu0 0.0
        %1154 = vmatpush1.msra.mxu0 0.0
        %1155 = vmatprep.subr.mxu0 0.0
        %1156 = vmatpush1.msra.mxu0 0.0
        %1157 = vmatprep.subr.mxu0 0.0
        %1158 = vmatpush1.msra.mxu0 0.0
        %1159 = vmatprep.subr.mxu0 0.0
        %1160 = vmatpush1.msra.mxu0 0.0
        %1161 = vmatprep.subr.mxu0 0.0
        %1162 = vmatpush1.msra.mxu0 0.0
        %1163 = vmatprep.subr.mxu0 0.0
        %1164 = vmatpush1.msra.mxu0 0.0
        %1165 = vmatprep.subr.mxu0 0.0
        %1166 = vmatpush1.msra.mxu0 0.0
        %1167 = vmatprep.subr.mxu0 0.0
        %1168 = vmatpush1.msra.mxu0 0.0
        %1169 = vmatprep.subr.mxu0 0.0
        %1170 = vmatpush1.msra.mxu0 0.0
        %1171 = vmatprep.subr.mxu0 0.0
        %1172 = vmatpush1.msra.mxu0 0.0
        %1173 = vmatprep.subr.mxu0 0.0
        %1174 = vmatpush1.msra.mxu0 0.0
        %1175 = vmatprep.subr.mxu0 0.0
        %1176 = vmatpush1.msra.mxu0 0.0
        %1177 = vmatprep.subr.mxu0 0.0
        %1178 = vmatpush1.msra.mxu0 0.0
        %1179 = vmatprep.subr.mxu0 0.0
        %1180 = vmatpush1.msra.mxu0 0.0
        %1181 = vmatprep.subr.mxu0 0.0
        %1182 = vmatpush1.msra.mxu0 0.0
        %1183 = vmatprep.subr.mxu0 0.0
        %1184 = vmatpush1.msra.mxu0 0.0
        %1185 = vmatprep.subr.mxu0 0.0
        %1186 = vmatpush1.msra.mxu0 0.0
        %1187 = vmatprep.subr.mxu0 0.0
        %1188 = vmatpush1.msra.mxu0 0.0
        %1189 = vmatprep.subr.mxu0 0.0
        %1190 = vmatpush1.msra.mxu0 0.0
        %1191 = vmatprep.subr.mxu0 0.0
        %1192 = vmatpush1.msra.mxu0 0.0
        %1193 = vmatprep.subr.mxu0 0.0
        %1194 = vmatpush1.msra.mxu0 0.0
        %1195 = vmatprep.mubr.f32.mxu0 0.0
        %1196 = vmatmul.mubr.f32.gmra.mrb[0].mxu0 %v1129
        %v1197 = vpop.f32.mrb[0].mxu0
        %v1198 = vadd.f32 0.0, %v1197
        %v1199 = vpop.f32.mrb[0].mxu0
        %1200 = vdwg.mxu0
        %v1202 = vsel %vm793, %v957, 0
        %1204 = vmatprep.subr.mxu0 0.0
        %1205 = vmatpush1.msra.mxu0 %v620
        %1206 = vmatprep.subr.mxu0 0.0
        %1207 = vmatpush1.msra.mxu0 0.0
        %1208 = vmatprep.subr.mxu0 0.0
        %1209 = vmatpush1.msra.mxu0 0.0
        %1210 = vmatprep.subr.mxu0 0.0
        %1211 = vmatpush1.msra.mxu0 0.0
        %1212 = vmatprep.subr.mxu0 0.0
        %1213 = vmatpush1.msra.mxu0 0.0
        %1214 = vmatprep.subr.mxu0 0.0
        %1215 = vmatpush1.msra.mxu0 0.0
        %1216 = vmatprep.subr.mxu0 0.0
        %1217 = vmatpush1.msra.mxu0 0.0
        %1218 = vmatprep.subr.mxu0 0.0
        %1219 = vmatpush1.msra.mxu0 0.0
        %1220 = vmatprep.subr.mxu0 0.0
        %1221 = vmatpush1.msra.mxu0 0.0
        %1222 = vmatprep.subr.mxu0 0.0
        %1223 = vmatpush1.msra.mxu0 0.0
        %1224 = vmatprep.subr.mxu0 0.0
        %1225 = vmatpush1.msra.mxu0 0.0
        %1226 = vmatprep.subr.mxu0 0.0
        %1227 = vmatpush1.msra.mxu0 0.0
        %1228 = vmatprep.subr.mxu0 0.0
        %1229 = vmatpush1.msra.mxu0 0.0
        %1230 = vmatprep.subr.mxu0 0.0
        %1231 = vmatpush1.msra.mxu0 0.0
        %1232 = vmatprep.subr.mxu0 0.0
        %1233 = vmatpush1.msra.mxu0 0.0
        %1234 = vmatprep.subr.mxu0 0.0
        %1235 = vmatpush1.msra.mxu0 0.0
        %1236 = vmatprep.subr.mxu0 0.0
        %1237 = vmatpush1.msra.mxu0 0.0
        %1238 = vmatprep.subr.mxu0 0.0
        %1239 = vmatpush1.msra.mxu0 0.0
        %1240 = vmatprep.subr.mxu0 0.0
        %1241 = vmatpush1.msra.mxu0 0.0
        %1242 = vmatprep.subr.mxu0 0.0
        %1243 = vmatpush1.msra.mxu0 0.0
        %1244 = vmatprep.subr.mxu0 0.0
        %1245 = vmatpush1.msra.mxu0 0.0
        %1246 = vmatprep.subr.mxu0 0.0
        %1247 = vmatpush1.msra.mxu0 0.0
        %1248 = vmatprep.subr.mxu0 0.0
        %1249 = vmatpush1.msra.mxu0 0.0
        %1250 = vmatprep.subr.mxu0 0.0
        %1251 = vmatpush1.msra.mxu0 0.0
        %1252 = vmatprep.subr.mxu0 0.0
        %1253 = vmatpush1.msra.mxu0 0.0
        %1254 = vmatprep.subr.mxu0 0.0
        %1255 = vmatpush1.msra.mxu0 0.0
        %1256 = vmatprep.subr.mxu0 0.0
        %1257 = vmatpush1.msra.mxu0 0.0
        %1258 = vmatprep.subr.mxu0 0.0
        %1259 = vmatpush1.msra.mxu0 0.0
        %1260 = vmatprep.subr.mxu0 0.0
        %1261 = vmatpush1.msra.mxu0 0.0
        %1262 = vmatprep.subr.mxu0 0.0
        %1263 = vmatpush1.msra.mxu0 0.0
        %1264 = vmatprep.subr.mxu0 0.0
        %1265 = vmatpush1.msra.mxu0 0.0
        %1266 = vmatprep.subr.mxu0 0.0
        %1267 = vmatpush1.msra.mxu0 0.0
        %1268 = vmatprep.mubr.f32.mxu0 0.0
        %1269 = vmatmul.mubr.f32.gmra.mrb[0].mxu0 %v1202
        %v1270 = vpop.f32.mrb[0].mxu0
        %v1271 = vadd.f32 %v1198, %v1270
        %v1272 = vpop.f32.mrb[0].mxu0
        %1273 = vdwg.mxu0
        %v1274 = vld [vmem:[%s8] sm:$0x1]
        %v1276 = vlaneseq
        %v1277 = vshrl.u32 %v1276, 7
        %v1278 = vsub.s32 0, %v1277
        %v1279 = vrot.slane %v1274, %v1278
        %v1281 = vadd.f32 %v1271, %v1279
        %v1282 = vadd.f32 %v613, %v1281
        %v1283 = vld [vmem:[%s13] sm:$0x1]
        %v1284 = vld [vmem:[%s14] sm:$0x1]
        %v1285 = vsel %vm636, %v1282, 0.0
        %1286 = vadd.xlane.f32.xlu0 %v1285
        %v1287 = vpop.xlane.xlu0 %1286
        %v1288 = vrcp.pop 16.0
        %v1289 = vmul.f32 %v1287, %v1288
        %v1290 = vsub.f32 %v1282, %v1289
        %v1291 = vmul.f32 %v1290, %v1290
        %v1292 = vsel %vm636, %v1291, 0.0
        %1293 = vadd.xlane.f32.xlu0 %v1292
        %v1294 = vpop.xlane.xlu0 %1293
        %v1295 = vmul.f32 %v1294, %v1288
        %v1296 = vadd.f32 %v1295, 1e-05
        %v1297 = vrsqrt.pop %v1296
        %v1298 = vmul.f32 %v1290, %v1297
        %v1300 = vlaneseq
        %v1301 = vshrl.u32 %v1300, 7
        %v1302 = vsub.s32 0, %v1301
        %v1303 = vrot.slane %v1283, %v1302
        %v1305 = vmul.f32 %v1298, %v1303
        %v1307 = vlaneseq
        %v1308 = vshrl.u32 %v1307, 7
        %v1309 = vsub.s32 0, %v1308
        %v1310 = vrot.slane %v1284, %v1309
        %v1312 = vadd.f32 %v1305, %v1310
        %v1313 = vld [vmem:[%s10] sm:$0x1]
        %v1315 = vlaneseq
        %v1316 = vshrl.u32 %v1315, 7
        %v1317 = vsub.s32 0, %v1316
        %v1318 = vrot.slane %v1313, %v1317
        %v1321 = vsel %vm636, %v1312, 0
        %1323 = vmatprep.subr.mxu0 0.0
        %1324 = vmatpush1.msra.mxu0 %v622
        %1325 = vmatprep.subr.mxu0 0.0
        %1326 = vmatpush1.msra.mxu0 %v623
        %1327 = vmatprep.subr.mxu0 0.0
        %1328 = vmatpush1.msra.mxu0 0.0
        %1329 = vmatprep.subr.mxu0 0.0
        %1330 = vmatpush1.msra.mxu0 0.0
        %1331 = vmatprep.subr.mxu0 0.0
        %1332 = vmatpush1.msra.mxu0 0.0
        %1333 = vmatprep.subr.mxu0 0.0
        %1334 = vmatpush1.msra.mxu0 0.0
        %1335 = vmatprep.subr.mxu0 0.0
        %1336 = vmatpush1.msra.mxu0 0.0
        %1337 = vmatprep.subr.mxu0 0.0
        %1338 = vmatpush1.msra.mxu0 0.0
        %1339 = vmatprep.subr.mxu0 0.0
        %1340 = vmatpush1.msra.mxu0 0.0
        %1341 = vmatprep.subr.mxu0 0.0
        %1342 = vmatpush1.msra.mxu0 0.0
        %1343 = vmatprep.subr.mxu0 0.0
        %1344 = vmatpush1.msra.mxu0 0.0
        %1345 = vmatprep.subr.mxu0 0.0
        %1346 = vmatpush1.msra.mxu0 0.0
        %1347 = vmatprep.subr.mxu0 0.0
        %1348 = vmatpush1.msra.mxu0 0.0
        %1349 = vmatprep.subr.mxu0 0.0
        %1350 = vmatpush1.msra.mxu0 0.0
        %1351 = vmatprep.subr.mxu0 0.0
        %1352 = vmatpush1.msra.mxu0 0.0
        %1353 = vmatprep.subr.mxu0 0.0
        %1354 = vmatpush1.msra.mxu0 0.0
        %1355 = vmatprep.subr.mxu0 0.0
        %1356 = vmatpush1.msra.mxu0 0.0
        %1357 = vmatprep.subr.mxu0 0.0
        %1358 = vmatpush1.msra.mxu0 0.0
        %1359 = vmatprep.subr.mxu0 0.0
        %1360 = vmatpush1.msra.mxu0 0.0
        %1361 = vmatprep.subr.mxu0 0.0
        %1362 = vmatpush1.msra.mxu0 0.0
        %1363 = vmatprep.subr.mxu0 0.0
        %1364 = vmatpush1.msra.mxu0 0.0
        %1365 = vmatprep.subr.mxu0 0.0
        %1366 = vmatpush1.msra.mxu0 0.0
        %1367 = vmatprep.subr.mxu0 0.0
        %1368 = vmatpush1.msra.mxu0 0.0
        %1369 = vmatprep.subr.mxu0 0.0
        %1370 = vmatpush1.msra.mxu0 0.0
        %1371 = vmatprep.subr.mxu0 0.0
        %1372 = vmatpush1.msra.mxu0 0.0
        %1373 = vmatprep.subr.mxu0 0.0
        %1374 = vmatpush1.msra.mxu0 0.0
        %1375 = vmatprep.subr.mxu0 0.0
        %1376 = vmatpush1.msra.mxu0 0.0
        %1377 = vmatprep.subr.mxu0 0.0
        %1378 = vmatpush1.msra.mxu0 0.0
        %1379 = vmatprep.subr.mxu0 0.0
        %1380 = vmatpush1.msra.mxu0 0.0
        %1381 = vmatprep.subr.mxu0 0.0
        %1382 = vmatpush1.msra.mxu0 0.0
        %1383 = vmatprep.subr.mxu0 0.0
        %1384 = vmatpush1.msra.mxu0 0.0
        %1385 = vmatprep.subr.mxu0 0.0
        %1386 = vmatpush1.msra.mxu0 0.0
        %1387 = vmatprep.mubr.f32.mxu0 0.0
        %1388 = vmatmul.mubr.f32.gmra.mrb[0].mxu0 %v1321
        %v1389 = vpop.f32.mrb[0].mxu0
        %v1390 = vadd.f32 %v1318, %v1389
        %v1391 = vpop.f32.mrb[0].mxu0
        %1392 = vdwg.mxu0
        %v1393 = vmax.f32 %v1390, 0.0
        %v1394 = vld [vmem:[%s12] sm:$0x1]
        %v1396 = vlaneseq
        %v1397 = vshrl.u32 %v1396, 7
        %v1398 = vsub.s32 0, %v1397
        %v1399 = vrot.slane %v1394, %v1398
        %vm1401 = vcmask 261120
        %v1403 = vsel %vm1401, %v1393, 0
        %1405 = vmatprep.subr.mxu0 0.0
        %1406 = vmatpush1.msra.mxu0 %v624
        %1407 = vmatprep.subr.mxu0 0.0
        %1408 = vmatpush1.msra.mxu0 %v625
        %1409 = vmatprep.subr.mxu0 0.0
        %1410 = vmatpush1.msra.mxu0 %v626
        %1411 = vmatprep.subr.mxu0 0.0
        %1412 = vmatpush1.msra.mxu0 %v627
        %1413 = vmatprep.subr.mxu0 0.0
        %1414 = vmatpush1.msra.mxu0 0.0
        %1415 = vmatprep.subr.mxu0 0.0
        %1416 = vmatpush1.msra.mxu0 0.0
        %1417 = vmatprep.subr.mxu0 0.0
        %1418 = vmatpush1.msra.mxu0 0.0
        %1419 = vmatprep.subr.mxu0 0.0
        %1420 = vmatpush1.msra.mxu0 0.0
        %1421 = vmatprep.subr.mxu0 0.0
        %1422 = vmatpush1.msra.mxu0 0.0
        %1423 = vmatprep.subr.mxu0 0.0
        %1424 = vmatpush1.msra.mxu0 0.0
        %1425 = vmatprep.subr.mxu0 0.0
        %1426 = vmatpush1.msra.mxu0 0.0
        %1427 = vmatprep.subr.mxu0 0.0
        %1428 = vmatpush1.msra.mxu0 0.0
        %1429 = vmatprep.subr.mxu0 0.0
        %1430 = vmatpush1.msra.mxu0 0.0
        %1431 = vmatprep.subr.mxu0 0.0
        %1432 = vmatpush1.msra.mxu0 0.0
        %1433 = vmatprep.subr.mxu0 0.0
        %1434 = vmatpush1.msra.mxu0 0.0
        %1435 = vmatprep.subr.mxu0 0.0
        %1436 = vmatpush1.msra.mxu0 0.0
        %1437 = vmatprep.subr.mxu0 0.0
        %1438 = vmatpush1.msra.mxu0 0.0
        %1439 = vmatprep.subr.mxu0 0.0
        %1440 = vmatpush1.msra.mxu0 0.0
        %1441 = vmatprep.subr.mxu0 0.0
        %1442 = vmatpush1.msra.mxu0 0.0
        %1443 = vmatprep.subr.mxu0 0.0
        %1444 = vmatpush1.msra.mxu0 0.0
        %1445 = vmatprep.subr.mxu0 0.0
        %1446 = vmatpush1.msra.mxu0 0.0
        %1447 = vmatprep.subr.mxu0 0.0
        %1448 = vmatpush1.msra.mxu0 0.0
        %1449 = vmatprep.subr.mxu0 0.0
        %1450 = vmatpush1.msra.mxu0 0.0
        %1451 = vmatprep.subr.mxu0 0.0
        %1452 = vmatpush1.msra.mxu0 0.0
        %1453 = vmatprep.subr.mxu0 0.0
        %1454 = vmatpush1.msra.mxu0 0.0
        %1455 = vmatprep.subr.mxu0 0.0
        %1456 = vmatpush1.msra.mxu0 0.0
        %1457 = vmatprep.subr.mxu0 0.0
        %1458 = vmatpush1.msra.mxu0 0.0
        %1459 = vmatprep.subr.mxu0 0.0
        %1460 = vmatpush1.msra.mxu0 0.0
        %1461 = vmatprep.subr.mxu0 0.0
        %1462 = vmatpush1.msra.mxu0 0.0
        %1463 = vmatprep.subr.mxu0 0.0
        %1464 = vmatpush1.msra.mxu0 0.0
        %1465 = vmatprep.subr.mxu0 0.0
        %1466 = vmatpush1.msra.mxu0 0.0
        %1467 = vmatprep.subr.mxu0 0.0
        %1468 = vmatpush1.msra.mxu0 0.0
        %1469 = vmatprep.mubr.f32.mxu0 0.0
        %1470 = vmatmul.mubr.f32.gmra.mrb[0].mxu0 %v1403
        %v1471 = vpop.f32.mrb[0].mxu0
        %v1472 = vadd.f32 %v1399, %v1471
        %v1473 = vpop.f32.mrb[0].mxu0
        %1474 = vdwg.mxu0
        %v1475 = vadd.f32 %v1312, %v1472
        %v1476 = vld [vmem:[%s15] sm:$0x1]
        %v1477 = vld [vmem:[%s16] sm:$0x1]
        %v1478 = vsel %vm636, %v1475, 0.0
        %1479 = vadd.xlane.f32.xlu0 %v1478
        %v1480 = vpop.xlane.xlu0 %1479
        %v1481 = vmul.f32 %v1480, %v1288
        %v1482 = vsub.f32 %v1475, %v1481
        %v1483 = vmul.f32 %v1482, %v1482
        %v1484 = vsel %vm636, %v1483, 0.0
        %1485 = vadd.xlane.f32.xlu0 %v1484
        %v1486 = vpop.xlane.xlu0 %1485
        %v1487 = vmul.f32 %v1486, %v1288
        %v1488 = vadd.f32 %v1487, 1e-05
        %v1489 = vrsqrt.pop %v1488
        %v1490 = vmul.f32 %v1482, %v1489
        %v1492 = vlaneseq
        %v1493 = vshrl.u32 %v1492, 7
        %v1494 = vsub.s32 0, %v1493
        %v1495 = vrot.slane %v1476, %v1494
        %v1497 = vmul.f32 %v1490, %v1495
        %v1499 = vlaneseq
        %v1500 = vshrl.u32 %v1499, 7
        %v1501 = vsub.s32 0, %v1500
        %v1502 = vrot.slane %v1477, %v1501
        %v1504 = vadd.f32 %v1497, %v1502
        %s1505 = scalar_lea.vmem %s3, 16
        %v1506 = vld [vmem:[%s1505] sm:$0xff]
        %v1507 = vld [vmem:[%s1505 + $0x8] sm:$0xff]
        %s1508 = scalar_lea.vmem %s5, 16
        %v1509 = vld [vmem:[%s1508] sm:$0xff]
        %v1510 = vld [vmem:[%s1508 + $0x8] sm:$0xff]
        %s1511 = scalar_lea.vmem %s7, 16
        %v1512 = vld [vmem:[%s1511] sm:$0xff]
        %v1513 = vld [vmem:[%s1511 + $0x8] sm:$0xff]
        %s1514 = scalar_lea.vmem %s9, 16
        %v1515 = vld [vmem:[%s1514] sm:$0xff]
        %v1516 = vld [vmem:[%s1514 + $0x8] sm:$0xff]
        %s1517 = scalar_lea.vmem %s11, 32
        %v1518 = vld [vmem:[%s1517] sm:$0xff]
        %v1519 = vld [vmem:[%s1517 + $0x8] sm:$0xff]
        %v1520 = vld [vmem:[%s1517 + $0x10] sm:$0xff]
        %v1521 = vld [vmem:[%s1517 + $0x18] sm:$0xff]
        %v1522 = vadd.f32 %v1504, %v614
        %s1523 = scalar_lea.vmem %s4, 1
        %v1524 = vld [vmem:[%s1523] sm:$0x1]
        %v1526 = vlaneseq
        %v1527 = vshrl.u32 %v1526, 7
        %v1528 = vsub.s32 0, %v1527
        %v1529 = vrot.slane %v1524, %v1528
        %v1532 = vsel %vm636, %v1522, 0
        %1534 = vmatprep.subr.mxu0 0.0
        %1535 = vmatpush1.msra.mxu0 %v1506
        %1536 = vmatprep.subr.mxu0 0.0
        %1537 = vmatpush1.msra.mxu0 %v1507
        %1538 = vmatprep.subr.mxu0 0.0
        %1539 = vmatpush1.msra.mxu0 0.0
        %1540 = vmatprep.subr.mxu0 0.0
        %1541 = vmatpush1.msra.mxu0 0.0
        %1542 = vmatprep.subr.mxu0 0.0
        %1543 = vmatpush1.msra.mxu0 0.0
        %1544 = vmatprep.subr.mxu0 0.0
        %1545 = vmatpush1.msra.mxu0 0.0
        %1546 = vmatprep.subr.mxu0 0.0
        %1547 = vmatpush1.msra.mxu0 0.0
        %1548 = vmatprep.subr.mxu0 0.0
        %1549 = vmatpush1.msra.mxu0 0.0
        %1550 = vmatprep.subr.mxu0 0.0
        %1551 = vmatpush1.msra.mxu0 0.0
        %1552 = vmatprep.subr.mxu0 0.0
        %1553 = vmatpush1.msra.mxu0 0.0
        %1554 = vmatprep.subr.mxu0 0.0
        %1555 = vmatpush1.msra.mxu0 0.0
        %1556 = vmatprep.subr.mxu0 0.0
        %1557 = vmatpush1.msra.mxu0 0.0
        %1558 = vmatprep.subr.mxu0 0.0
        %1559 = vmatpush1.msra.mxu0 0.0
        %1560 = vmatprep.subr.mxu0 0.0
        %1561 = vmatpush1.msra.mxu0 0.0
        %1562 = vmatprep.subr.mxu0 0.0
        %1563 = vmatpush1.msra.mxu0 0.0
        %1564 = vmatprep.subr.mxu0 0.0
        %1565 = vmatpush1.msra.mxu0 0.0
        %1566 = vmatprep.subr.mxu0 0.0
        %1567 = vmatpush1.msra.mxu0 0.0
        %1568 = vmatprep.subr.mxu0 0.0
        %1569 = vmatpush1.msra.mxu0 0.0
        %1570 = vmatprep.subr.mxu0 0.0
        %1571 = vmatpush1.msra.mxu0 0.0
        %1572 = vmatprep.subr.mxu0 0.0
        %1573 = vmatpush1.msra.mxu0 0.0
        %1574 = vmatprep.subr.mxu0 0.0
        %1575 = vmatpush1.msra.mxu0 0.0
        %1576 = vmatprep.subr.mxu0 0.0
        %1577 = vmatpush1.msra.mxu0 0.0
        %1578 = vmatprep.subr.mxu0 0.0
        %1579 = vmatpush1.msra.mxu0 0.0
        %1580 = vmatprep.subr.mxu0 0.0
        %1581 = vmatpush1.msra.mxu0 0.0
        %1582 = vmatprep.subr.mxu0 0.0
        %1583 = vmatpush1.msra.mxu0 0.0
        %1584 = vmatprep.subr.mxu0 0.0
        %1585 = vmatpush1.msra.mxu0 0.0
        %1586 = vmatprep.subr.mxu0 0.0
        %1587 = vmatpush1.msra.mxu0 0.0
        %1588 = vmatprep.subr.mxu0 0.0
        %1589 = vmatpush1.msra.mxu0 0.0
        %1590 = vmatprep.subr.mxu0 0.0
        %1591 = vmatpush1.msra.mxu0 0.0
        %1592 = vmatprep.subr.mxu0 0.0
        %1593 = vmatpush1.msra.mxu0 0.0
        %1594 = vmatprep.subr.mxu0 0.0
        %1595 = vmatpush1.msra.mxu0 0.0
        %1596 = vmatprep.subr.mxu0 0.0
        %1597 = vmatpush1.msra.mxu0 0.0
        %1598 = vmatprep.mubr.f32.mxu0 0.0
        %1599 = vmatmul.mubr.f32.gmra.mrb[0].mxu0 %v1532
        %v1600 = vpop.f32.mrb[0].mxu0
        %v1601 = vadd.f32 %v1529, %v1600
        %v1602 = vpop.f32.mrb[0].mxu0
        %1603 = vdwg.mxu0
        %s1604 = scalar_lea.vmem %s6, 1
        %v1605 = vld [vmem:[%s1604] sm:$0x1]
        %v1607 = vlaneseq
        %v1608 = vshrl.u32 %v1607, 7
        %v1609 = vsub.s32 0, %v1608
        %v1610 = vrot.slane %v1605, %v1609
        %v1613 = vsel %vm636, %v1504, 0
        %1615 = vmatprep.subr.mxu0 0.0
        %1616 = vmatpush1.msra.mxu0 %v1509
        %1617 = vmatprep.subr.mxu0 0.0
        %1618 = vmatpush1.msra.mxu0 %v1510
        %1619 = vmatprep.subr.mxu0 0.0
        %1620 = vmatpush1.msra.mxu0 0.0
        %1621 = vmatprep.subr.mxu0 0.0
        %1622 = vmatpush1.msra.mxu0 0.0
        %1623 = vmatprep.subr.mxu0 0.0
        %1624 = vmatpush1.msra.mxu0 0.0
        %1625 = vmatprep.subr.mxu0 0.0
        %1626 = vmatpush1.msra.mxu0 0.0
        %1627 = vmatprep.subr.mxu0 0.0
        %1628 = vmatpush1.msra.mxu0 0.0
        %1629 = vmatprep.subr.mxu0 0.0
        %1630 = vmatpush1.msra.mxu0 0.0
        %1631 = vmatprep.subr.mxu0 0.0
        %1632 = vmatpush1.msra.mxu0 0.0
        %1633 = vmatprep.subr.mxu0 0.0
        %1634 = vmatpush1.msra.mxu0 0.0
        %1635 = vmatprep.subr.mxu0 0.0
        %1636 = vmatpush1.msra.mxu0 0.0
        %1637 = vmatprep.subr.mxu0 0.0
        %1638 = vmatpush1.msra.mxu0 0.0
        %1639 = vmatprep.subr.mxu0 0.0
        %1640 = vmatpush1.msra.mxu0 0.0
        %1641 = vmatprep.subr.mxu0 0.0
        %1642 = vmatpush1.msra.mxu0 0.0
        %1643 = vmatprep.subr.mxu0 0.0
        %1644 = vmatpush1.msra.mxu0 0.0
        %1645 = vmatprep.subr.mxu0 0.0
        %1646 = vmatpush1.msra.mxu0 0.0
        %1647 = vmatprep.subr.mxu0 0.0
        %1648 = vmatpush1.msra.mxu0 0.0
        %1649 = vmatprep.subr.mxu0 0.0
        %1650 = vmatpush1.msra.mxu0 0.0
        %1651 = vmatprep.subr.mxu0 0.0
        %1652 = vmatpush1.msra.mxu0 0.0
        %1653 = vmatprep.subr.mxu0 0.0
        %1654 = vmatpush1.msra.mxu0 0.0
        %1655 = vmatprep.subr.mxu0 0.0
        %1656 = vmatpush1.msra.mxu0 0.0
        %1657 = vmatprep.subr.mxu0 0.0
        %1658 = vmatpush1.msra.mxu0 0.0
        %1659 = vmatprep.subr.mxu0 0.0
        %1660 = vmatpush1.msra.mxu0 0.0
        %1661 = vmatprep.subr.mxu0 0.0
        %1662 = vmatpush1.msra.mxu0 0.0
        %1663 = vmatprep.subr.mxu0 0.0
        %1664 = vmatpush1.msra.mxu0 0.0
        %1665 = vmatprep.subr.mxu0 0.0
        %1666 = vmatpush1.msra.mxu0 0.0
        %1667 = vmatprep.subr.mxu0 0.0
        %1668 = vmatpush1.msra.mxu0 0.0
        %1669 = vmatprep.subr.mxu0 0.0
        %1670 = vmatpush1.msra.mxu0 0.0
        %1671 = vmatprep.subr.mxu0 0.0
        %1672 = vmatpush1.msra.mxu0 0.0
        %1673 = vmatprep.subr.mxu0 0.0
        %1674 = vmatpush1.msra.mxu0 0.0
        %1675 = vmatprep.subr.mxu0 0.0
        %1676 = vmatpush1.msra.mxu0 0.0
        %1677 = vmatprep.subr.mxu0 0.0
        %1678 = vmatpush1.msra.mxu0 0.0
        %1679 = vmatprep.mubr.f32.mxu0 0.0
        %1680 = vmatmul.mubr.f32.gmra.mrb[0].mxu0 %v1613
        %v1681 = vpop.f32.mrb[0].mxu0
        %v1682 = vadd.f32 %v1610, %v1681
        %v1683 = vpop.f32.mrb[0].mxu0
        %1684 = vdwg.mxu0
        %1686 = vrot.lane.b32.xlu0 %v1601, 112
        %v1687 = vpop.permute.xlu0 %1686
        %v1688 = vsel %vm793, %v1601, 0
        %v1690 = vsel %vm793, %v1687, 0
        %1692 = vmatprep.subr.mxu0 0.0
        %1693 = vmatpush1.xpose.msra.mxu0 %v1690
        %1694 = vmatprep.subr.mxu0 0.0
        %1695 = vmatpush1.xpose.msra.mxu0 0.0
        %1696 = vmatprep.subr.mxu0 0.0
        %1697 = vmatpush1.xpose.msra.mxu0 0.0
        %1698 = vmatprep.subr.mxu0 0.0
        %1699 = vmatpush1.xpose.msra.mxu0 0.0
        %1700 = vmatprep.subr.mxu0 0.0
        %1701 = vmatpush1.xpose.msra.mxu0 0.0
        %1702 = vmatprep.subr.mxu0 0.0
        %1703 = vmatpush1.xpose.msra.mxu0 0.0
        %1704 = vmatprep.subr.mxu0 0.0
        %1705 = vmatpush1.xpose.msra.mxu0 0.0
        %1706 = vmatprep.subr.mxu0 0.0
        %1707 = vmatpush1.xpose.msra.mxu0 0.0
        %1708 = vmatprep.subr.mxu0 0.0
        %1709 = vmatpush1.xpose.msra.mxu0 0.0
        %1710 = vmatprep.subr.mxu0 0.0
        %1711 = vmatpush1.xpose.msra.mxu0 0.0
        %1712 = vmatprep.subr.mxu0 0.0
        %1713 = vmatpush1.xpose.msra.mxu0 0.0
        %1714 = vmatprep.subr.mxu0 0.0
        %1715 = vmatpush1.xpose.msra.mxu0 0.0
        %1716 = vmatprep.subr.mxu0 0.0
        %1717 = vmatpush1.xpose.msra.mxu0 0.0
        %1718 = vmatprep.subr.mxu0 0.0
        %1719 = vmatpush1.xpose.msra.mxu0 0.0
        %1720 = vmatprep.subr.mxu0 0.0
        %1721 = vmatpush1.xpose.msra.mxu0 0.0
        %1722 = vmatprep.subr.mxu0 0.0
        %1723 = vmatpush1.xpose.msra.mxu0 0.0
        %1724 = vmatprep.subr.mxu0 0.0
        %1725 = vmatpush1.xpose.msra.mxu0 0.0
        %1726 = vmatprep.subr.mxu0 0.0
        %1727 = vmatpush1.xpose.msra.mxu0 0.0
        %1728 = vmatprep.subr.mxu0 0.0
        %1729 = vmatpush1.xpose.msra.mxu0 0.0
        %1730 = vmatprep.subr.mxu0 0.0
        %1731 = vmatpush1.xpose.msra.mxu0 0.0
        %1732 = vmatprep.subr.mxu0 0.0
        %1733 = vmatpush1.xpose.msra.mxu0 0.0
        %1734 = vmatprep.subr.mxu0 0.0
        %1735 = vmatpush1.xpose.msra.mxu0 0.0
        %1736 = vmatprep.subr.mxu0 0.0
        %1737 = vmatpush1.xpose.msra.mxu0 0.0
        %1738 = vmatprep.subr.mxu0 0.0
        %1739 = vmatpush1.xpose.msra.mxu0 0.0
        %1740 = vmatprep.subr.mxu0 0.0
        %1741 = vmatpush1.xpose.msra.mxu0 0.0
        %1742 = vmatprep.subr.mxu0 0.0
        %1743 = vmatpush1.xpose.msra.mxu0 0.0
        %1744 = vmatprep.subr.mxu0 0.0
        %1745 = vmatpush1.xpose.msra.mxu0 0.0
        %1746 = vmatprep.subr.mxu0 0.0
        %1747 = vmatpush1.xpose.msra.mxu0 0.0
        %1748 = vmatprep.subr.mxu0 0.0
        %1749 = vmatpush1.xpose.msra.mxu0 0.0
        %1750 = vmatprep.subr.mxu0 0.0
        %1751 = vmatpush1.xpose.msra.mxu0 0.0
        %1752 = vmatprep.subr.mxu0 0.0
        %1753 = vmatpush1.xpose.msra.mxu0 0.0
        %1754 = vmatprep.subr.mxu0 0.0
        %1755 = vmatpush1.xpose.msra.mxu0 0.0
        %1756 = vmatprep.mubr.f32.mxu0 0.0
        %1757 = vmatmul.mubr.f32.gmra.mrb[0].mxu0 %v1688
        %v1758 = vpop.f32.mrb[0].mxu0
        %v1759 = vadd.f32 0.0, %v1758
        %v1760 = vpop.f32.mrb[0].mxu0
        %1761 = vdwg.mxu0
        %v1762 = vmul.f32 %v1759, 0.35355338
        %v1763 = vadd.f32 %v1762, %v873
        %v1764 = vsel %vm793, %v1763, -inf
        %1765 = vmax.xlane.f32.xlu0 %v1764
        %v1766 = vpop.xlane.xlu0 %1765
        %v1767 = vsub.f32 %v1763, %v1766
        %v1768 = vmul.f32 %v1767, 1.442695
        %v1769 = vpow.pop %v1768
        %v1770 = vsel %vm793, %v1769, 0.0
        %1771 = vadd.xlane.f32.xlu0 %v1770
        %v1772 = vpop.xlane.xlu0 %1771
        %v1773 = vrcp.pop %v1772
        %v1774 = vmul.f32 %v1769, %v1773
        %v1775 = vadd.f32 %v1774, 0.0
        %v1777 = vsel %vm793, %v1774, 0
        %1779 = vmatprep.subr.mxu0 0.0
        %1780 = vmatpush1.msra.mxu0 %v1682
        %1781 = vmatprep.subr.mxu0 0.0
        %1782 = vmatpush1.msra.mxu0 0.0
        %1783 = vmatprep.subr.mxu0 0.0
        %1784 = vmatpush1.msra.mxu0 0.0
        %1785 = vmatprep.subr.mxu0 0.0
        %1786 = vmatpush1.msra.mxu0 0.0
        %1787 = vmatprep.subr.mxu0 0.0
        %1788 = vmatpush1.msra.mxu0 0.0
        %1789 = vmatprep.subr.mxu0 0.0
        %1790 = vmatpush1.msra.mxu0 0.0
        %1791 = vmatprep.subr.mxu0 0.0
        %1792 = vmatpush1.msra.mxu0 0.0
        %1793 = vmatprep.subr.mxu0 0.0
        %1794 = vmatpush1.msra.mxu0 0.0
        %1795 = vmatprep.subr.mxu0 0.0
        %1796 = vmatpush1.msra.mxu0 0.0
        %1797 = vmatprep.subr.mxu0 0.0
        %1798 = vmatpush1.msra.mxu0 0.0
        %1799 = vmatprep.subr.mxu0 0.0
        %1800 = vmatpush1.msra.mxu0 0.0
        %1801 = vmatprep.subr.mxu0 0.0
        %1802 = vmatpush1.msra.mxu0 0.0
        %1803 = vmatprep.subr.mxu0 0.0
        %1804 = vmatpush1.msra.mxu0 0.0
        %1805 = vmatprep.subr.mxu0 0.0
        %1806 = vmatpush1.msra.mxu0 0.0
        %1807 = vmatprep.subr.mxu0 0.0
        %1808 = vmatpush1.msra.mxu0 0.0
        %1809 = vmatprep.subr.mxu0 0.0
        %1810 = vmatpush1.msra.mxu0 0.0
        %1811 = vmatprep.subr.mxu0 0.0
        %1812 = vmatpush1.msra.mxu0 0.0
        %1813 = vmatprep.subr.mxu0 0.0
        %1814 = vmatpush1.msra.mxu0 0.0
        %1815 = vmatprep.subr.mxu0 0.0
        %1816 = vmatpush1.msra.mxu0 0.0
        %1817 = vmatprep.subr.mxu0 0.0
        %1818 = vmatpush1.msra.mxu0 0.0
        %1819 = vmatprep.subr.mxu0 0.0
        %1820 = vmatpush1.msra.mxu0 0.0
        %1821 = vmatprep.subr.mxu0 0.0
        %1822 = vmatpush1.msra.mxu0 0.0
        %1823 = vmatprep.subr.mxu0 0.0
        %1824 = vmatpush1.msra.mxu0 0.0
        %1825 = vmatprep.subr.mxu0 0.0
        %1826 = vmatpush1.msra.mxu0 0.0
        %1827 = vmatprep.subr.mxu0 0.0
        %1828 = vmatpush1.msra.mxu0 0.0
        %1829 = vmatprep.subr.mxu0 0.0
        %1830 = vmatpush1.msra.mxu0 0.0
        %1831 = vmatprep.subr.mxu0 0.0
        %1832 = vmatpush1.msra.mxu0 0.0
        %1833 = vmatprep.subr.mxu0 0.0
        %1834 = vmatpush1.msra.mxu0 0.0
        %1835 = vmatprep.subr.mxu0 0.0
        %1836 = vmatpush1.msra.mxu0 0.0
        %1837 = vmatprep.subr.mxu0 0.0
        %1838 = vmatpush1.msra.mxu0 0.0
        %1839 = vmatprep.subr.mxu0 0.0
        %1840 = vmatpush1.msra.mxu0 0.0
        %1841 = vmatprep.subr.mxu0 0.0
        %1842 = vmatpush1.msra.mxu0 0.0
        %1843 = vmatprep.mubr.f32.mxu0 0.0
        %1844 = vmatmul.mubr.f32.gmra.mrb[0].mxu0 %v1777
        %v1845 = vpop.f32.mrb[0].mxu0
        %v1846 = vadd.f32 0.0, %v1845
        %v1847 = vpop.f32.mrb[0].mxu0
        %1848 = vdwg.mxu0
        %1849 = vrot.lane.b32.xlu0 %v1601, 120
        %v1850 = vpop.permute.xlu0 %1849
        %1851 = vrot.lane.b32.xlu0 %v1601, 104
        %v1852 = vpop.permute.xlu0 %1851
        %v1853 = vsel %vm793, %v1850, 0
        %v1855 = vsel %vm793, %v1852, 0
        %1857 = vmatprep.subr.mxu0 0.0
        %1858 = vmatpush1.xpose.msra.mxu0 %v1855
        %1859 = vmatprep.subr.mxu0 0.0
        %1860 = vmatpush1.xpose.msra.mxu0 0.0
        %1861 = vmatprep.subr.mxu0 0.0
        %1862 = vmatpush1.xpose.msra.mxu0 0.0
        %1863 = vmatprep.subr.mxu0 0.0
        %1864 = vmatpush1.xpose.msra.mxu0 0.0
        %1865 = vmatprep.subr.mxu0 0.0
        %1866 = vmatpush1.xpose.msra.mxu0 0.0
        %1867 = vmatprep.subr.mxu0 0.0
        %1868 = vmatpush1.xpose.msra.mxu0 0.0
        %1869 = vmatprep.subr.mxu0 0.0
        %1870 = vmatpush1.xpose.msra.mxu0 0.0
        %1871 = vmatprep.subr.mxu0 0.0
        %1872 = vmatpush1.xpose.msra.mxu0 0.0
        %1873 = vmatprep.subr.mxu0 0.0
        %1874 = vmatpush1.xpose.msra.mxu0 0.0
        %1875 = vmatprep.subr.mxu0 0.0
        %1876 = vmatpush1.xpose.msra.mxu0 0.0
        %1877 = vmatprep.subr.mxu0 0.0
        %1878 = vmatpush1.xpose.msra.mxu0 0.0
        %1879 = vmatprep.subr.mxu0 0.0
        %1880 = vmatpush1.xpose.msra.mxu0 0.0
        %1881 = vmatprep.subr.mxu0 0.0
        %1882 = vmatpush1.xpose.msra.mxu0 0.0
        %1883 = vmatprep.subr.mxu0 0.0
        %1884 = vmatpush1.xpose.msra.mxu0 0.0
        %1885 = vmatprep.subr.mxu0 0.0
        %1886 = vmatpush1.xpose.msra.mxu0 0.0
        %1887 = vmatprep.subr.mxu0 0.0
        %1888 = vmatpush1.xpose.msra.mxu0 0.0
        %1889 = vmatprep.subr.mxu0 0.0
        %1890 = vmatpush1.xpose.msra.mxu0 0.0
        %1891 = vmatprep.subr.mxu0 0.0
        %1892 = vmatpush1.xpose.msra.mxu0 0.0
        %1893 = vmatprep.subr.mxu0 0.0
        %1894 = vmatpush1.xpose.msra.mxu0 0.0
        %1895 = vmatprep.subr.mxu0 0.0
        %1896 = vmatpush1.xpose.msra.mxu0 0.0
        %1897 = vmatprep.subr.mxu0 0.0
        %1898 = vmatpush1.xpose.msra.mxu0 0.0
        %1899 = vmatprep.subr.mxu0 0.0
        %1900 = vmatpush1.xpose.msra.mxu0 0.0
        %1901 = vmatprep.subr.mxu0 0.0
        %1902 = vmatpush1.xpose.msra.mxu0 0.0
        %1903 = vmatprep.subr.mxu0 0.0
        %1904 = vmatpush1.xpose.msra.mxu0 0.0
        %1905 = vmatprep.subr.mxu0 0.0
        %1906 = vmatpush1.xpose.msra.mxu0 0.0
        %1907 = vmatprep.subr.mxu0 0.0
        %1908 = vmatpush1.xpose.msra.mxu0 0.0
        %1909 = vmatprep.subr.mxu0 0.0
        %1910 = vmatpush1.xpose.msra.mxu0 0.0
        %1911 = vmatprep.subr.mxu0 0.0
        %1912 = vmatpush1.xpose.msra.mxu0 0.0
        %1913 = vmatprep.subr.mxu0 0.0
        %1914 = vmatpush1.xpose.msra.mxu0 0.0
        %1915 = vmatprep.subr.mxu0 0.0
        %1916 = vmatpush1.xpose.msra.mxu0 0.0
        %1917 = vmatprep.subr.mxu0 0.0
        %1918 = vmatpush1.xpose.msra.mxu0 0.0
        %1919 = vmatprep.subr.mxu0 0.0
        %1920 = vmatpush1.xpose.msra.mxu0 0.0
        %1921 = vmatprep.mubr.f32.mxu0 0.0
        %1922 = vmatmul.mubr.f32.gmra.mrb[0].mxu0 %v1853
        %v1923 = vpop.f32.mrb[0].mxu0
        %v1924 = vadd.f32 0.0, %v1923
        %v1925 = vpop.f32.mrb[0].mxu0
        %1926 = vdwg.mxu0
        %v1927 = vmul.f32 %v1924, 0.35355338
        %v1928 = vadd.f32 %v1927, %v873
        %v1929 = vsel %vm793, %v1928, -inf
        %1930 = vmax.xlane.f32.xlu0 %v1929
        %v1931 = vpop.xlane.xlu0 %1930
        %v1932 = vsub.f32 %v1928, %v1931
        %v1933 = vmul.f32 %v1932, 1.442695
        %v1934 = vpow.pop %v1933
        %v1935 = vsel %vm793, %v1934, 0.0
        %1936 = vadd.xlane.f32.xlu0 %v1935
        %v1937 = vpop.xlane.xlu0 %1936
        %v1938 = vrcp.pop %v1937
        %v1939 = vmul.f32 %v1934, %v1938
        %v1940 = vadd.f32 %v1775, %v1939
        %1942 = vrot.lane.b32.xlu0 %v1682, 120
        %v1943 = vpop.permute.xlu0 %1942
        %v1946 = vsel %vm793, %v1939, 0
        %1948 = vmatprep.subr.mxu0 0.0
        %1949 = vmatpush1.msra.mxu0 %v1943
        %1950 = vmatprep.subr.mxu0 0.0
        %1951 = vmatpush1.msra.mxu0 0.0
        %1952 = vmatprep.subr.mxu0 0.0
        %1953 = vmatpush1.msra.mxu0 0.0
        %1954 = vmatprep.subr.mxu0 0.0
        %1955 = vmatpush1.msra.mxu0 0.0
        %1956 = vmatprep.subr.mxu0 0.0
        %1957 = vmatpush1.msra.mxu0 0.0
        %1958 = vmatprep.subr.mxu0 0.0
        %1959 = vmatpush1.msra.mxu0 0.0
        %1960 = vmatprep.subr.mxu0 0.0
        %1961 = vmatpush1.msra.mxu0 0.0
        %1962 = vmatprep.subr.mxu0 0.0
        %1963 = vmatpush1.msra.mxu0 0.0
        %1964 = vmatprep.subr.mxu0 0.0
        %1965 = vmatpush1.msra.mxu0 0.0
        %1966 = vmatprep.subr.mxu0 0.0
        %1967 = vmatpush1.msra.mxu0 0.0
        %1968 = vmatprep.subr.mxu0 0.0
        %1969 = vmatpush1.msra.mxu0 0.0
        %1970 = vmatprep.subr.mxu0 0.0
        %1971 = vmatpush1.msra.mxu0 0.0
        %1972 = vmatprep.subr.mxu0 0.0
        %1973 = vmatpush1.msra.mxu0 0.0
        %1974 = vmatprep.subr.mxu0 0.0
        %1975 = vmatpush1.msra.mxu0 0.0
        %1976 = vmatprep.subr.mxu0 0.0
        %1977 = vmatpush1.msra.mxu0 0.0
        %1978 = vmatprep.subr.mxu0 0.0
        %1979 = vmatpush1.msra.mxu0 0.0
        %1980 = vmatprep.subr.mxu0 0.0
        %1981 = vmatpush1.msra.mxu0 0.0
        %1982 = vmatprep.subr.mxu0 0.0
        %1983 = vmatpush1.msra.mxu0 0.0
        %1984 = vmatprep.subr.mxu0 0.0
        %1985 = vmatpush1.msra.mxu0 0.0
        %1986 = vmatprep.subr.mxu0 0.0
        %1987 = vmatpush1.msra.mxu0 0.0
        %1988 = vmatprep.subr.mxu0 0.0
        %1989 = vmatpush1.msra.mxu0 0.0
        %1990 = vmatprep.subr.mxu0 0.0
        %1991 = vmatpush1.msra.mxu0 0.0
        %1992 = vmatprep.subr.mxu0 0.0
        %1993 = vmatpush1.msra.mxu0 0.0
        %1994 = vmatprep.subr.mxu0 0.0
        %1995 = vmatpush1.msra.mxu0 0.0
        %1996 = vmatprep.subr.mxu0 0.0
        %1997 = vmatpush1.msra.mxu0 0.0
        %1998 = vmatprep.subr.mxu0 0.0
        %1999 = vmatpush1.msra.mxu0 0.0
        %2000 = vmatprep.subr.mxu0 0.0
        %2001 = vmatpush1.msra.mxu0 0.0
        %2002 = vmatprep.subr.mxu0 0.0
        %2003 = vmatpush1.msra.mxu0 0.0
        %2004 = vmatprep.subr.mxu0 0.0
        %2005 = vmatpush1.msra.mxu0 0.0
        %2006 = vmatprep.subr.mxu0 0.0
        %2007 = vmatpush1.msra.mxu0 0.0
        %2008 = vmatprep.subr.mxu0 0.0
        %2009 = vmatpush1.msra.mxu0 0.0
        %2010 = vmatprep.subr.mxu0 0.0
        %2011 = vmatpush1.msra.mxu0 0.0
        %2012 = vmatprep.mubr.f32.mxu0 0.0
        %2013 = vmatmul.mubr.f32.gmra.mrb[0].mxu0 %v1946
        %v2014 = vpop.f32.mrb[0].mxu0
        %v2015 = vadd.f32 0.0, %v2014
        %v2016 = vpop.f32.mrb[0].mxu0
        %2017 = vdwg.mxu0
        %v2019 = vsel %vm793, %v2015, 0
        %2021 = vmatprep.subr.mxu0 0.0
        %2022 = vmatpush1.msra.mxu0 %v1513
        %2023 = vmatprep.subr.mxu0 0.0
        %2024 = vmatpush1.msra.mxu0 0.0
        %2025 = vmatprep.subr.mxu0 0.0
        %2026 = vmatpush1.msra.mxu0 0.0
        %2027 = vmatprep.subr.mxu0 0.0
        %2028 = vmatpush1.msra.mxu0 0.0
        %2029 = vmatprep.subr.mxu0 0.0
        %2030 = vmatpush1.msra.mxu0 0.0
        %2031 = vmatprep.subr.mxu0 0.0
        %2032 = vmatpush1.msra.mxu0 0.0
        %2033 = vmatprep.subr.mxu0 0.0
        %2034 = vmatpush1.msra.mxu0 0.0
        %2035 = vmatprep.subr.mxu0 0.0
        %2036 = vmatpush1.msra.mxu0 0.0
        %2037 = vmatprep.subr.mxu0 0.0
        %2038 = vmatpush1.msra.mxu0 0.0
        %2039 = vmatprep.subr.mxu0 0.0
        %2040 = vmatpush1.msra.mxu0 0.0
        %2041 = vmatprep.subr.mxu0 0.0
        %2042 = vmatpush1.msra.mxu0 0.0
        %2043 = vmatprep.subr.mxu0 0.0
        %2044 = vmatpush1.msra.mxu0 0.0
        %2045 = vmatprep.subr.mxu0 0.0
        %2046 = vmatpush1.msra.mxu0 0.0
        %2047 = vmatprep.subr.mxu0 0.0
        %2048 = vmatpush1.msra.mxu0 0.0
        %2049 = vmatprep.subr.mxu0 0.0
        %2050 = vmatpush1.msra.mxu0 0.0
        %2051 = vmatprep.subr.mxu0 0.0
        %2052 = vmatpush1.msra.mxu0 0.0
        %2053 = vmatprep.subr.mxu0 0.0
        %2054 = vmatpush1.msra.mxu0 0.0
        %2055 = vmatprep.subr.mxu0 0.0
        %2056 = vmatpush1.msra.mxu0 0.0
        %2057 = vmatprep.subr.mxu0 0.0
        %2058 = vmatpush1.msra.mxu0 0.0
        %2059 = vmatprep.subr.mxu0 0.0
        %2060 = vmatpush1.msra.mxu0 0.0
        %2061 = vmatprep.subr.mxu0 0.0
        %2062 = vmatpush1.msra.mxu0 0.0
        %2063 = vmatprep.subr.mxu0 0.0
        %2064 = vmatpush1.msra.mxu0 0.0
        %2065 = vmatprep.subr.mxu0 0.0
        %2066 = vmatpush1.msra.mxu0 0.0
        %2067 = vmatprep.subr.mxu0 0.0
        %2068 = vmatpush1.msra.mxu0 0.0
        %2069 = vmatprep.subr.mxu0 0.0
        %2070 = vmatpush1.msra.mxu0 0.0
        %2071 = vmatprep.subr.mxu0 0.0
        %2072 = vmatpush1.msra.mxu0 0.0
        %2073 = vmatprep.subr.mxu0 0.0
        %2074 = vmatpush1.msra.mxu0 0.0
        %2075 = vmatprep.subr.mxu0 0.0
        %2076 = vmatpush1.msra.mxu0 0.0
        %2077 = vmatprep.subr.mxu0 0.0
        %2078 = vmatpush1.msra.mxu0 0.0
        %2079 = vmatprep.subr.mxu0 0.0
        %2080 = vmatpush1.msra.mxu0 0.0
        %2081 = vmatprep.subr.mxu0 0.0
        %2082 = vmatpush1.msra.mxu0 0.0
        %2083 = vmatprep.subr.mxu0 0.0
        %2084 = vmatpush1.msra.mxu0 0.0
        %2085 = vmatprep.mubr.f32.mxu0 0.0
        %2086 = vmatmul.mubr.f32.gmra.mrb[0].mxu0 %v2019
        %v2087 = vpop.f32.mrb[0].mxu0
        %v2088 = vadd.f32 0.0, %v2087
        %v2089 = vpop.f32.mrb[0].mxu0
        %2090 = vdwg.mxu0
        %v2092 = vsel %vm793, %v1846, 0
        %2094 = vmatprep.subr.mxu0 0.0
        %2095 = vmatpush1.msra.mxu0 %v1512
        %2096 = vmatprep.subr.mxu0 0.0
        %2097 = vmatpush1.msra.mxu0 0.0
        %2098 = vmatprep.subr.mxu0 0.0
        %2099 = vmatpush1.msra.mxu0 0.0
        %2100 = vmatprep.subr.mxu0 0.0
        %2101 = vmatpush1.msra.mxu0 0.0
        %2102 = vmatprep.subr.mxu0 0.0
        %2103 = vmatpush1.msra.mxu0 0.0
        %2104 = vmatprep.subr.mxu0 0.0
        %2105 = vmatpush1.msra.mxu0 0.0
        %2106 = vmatprep.subr.mxu0 0.0
        %2107 = vmatpush1.msra.mxu0 0.0
        %2108 = vmatprep.subr.mxu0 0.0
        %2109 = vmatpush1.msra.mxu0 0.0
        %2110 = vmatprep.subr.mxu0 0.0
        %2111 = vmatpush1.msra.mxu0 0.0
        %2112 = vmatprep.subr.mxu0 0.0
        %2113 = vmatpush1.msra.mxu0 0.0
        %2114 = vmatprep.subr.mxu0 0.0
        %2115 = vmatpush1.msra.mxu0 0.0
        %2116 = vmatprep.subr.mxu0 0.0
        %2117 = vmatpush1.msra.mxu0 0.0
        %2118 = vmatprep.subr.mxu0 0.0
        %2119 = vmatpush1.msra.mxu0 0.0
        %2120 = vmatprep.subr.mxu0 0.0
        %2121 = vmatpush1.msra.mxu0 0.0
        %2122 = vmatprep.subr.mxu0 0.0
        %2123 = vmatpush1.msra.mxu0 0.0
        %2124 = vmatprep.subr.mxu0 0.0
        %2125 = vmatpush1.msra.mxu0 0.0
        %2126 = vmatprep.subr.mxu0 0.0
        %2127 = vmatpush1.msra.mxu0 0.0
        %2128 = vmatprep.subr.mxu0 0.0
        %2129 = vmatpush1.msra.mxu0 0.0
        %2130 = vmatprep.subr.mxu0 0.0
        %2131 = vmatpush1.msra.mxu0 0.0
        %2132 = vmatprep.subr.mxu0 0.0
        %2133 = vmatpush1.msra.mxu0 0.0
        %2134 = vmatprep.subr.mxu0 0.0
        %2135 = vmatpush1.msra.mxu0 0.0
        %2136 = vmatprep.subr.mxu0 0.0
        %2137 = vmatpush1.msra.mxu0 0.0
        %2138 = vmatprep.subr.mxu0 0.0
        %2139 = vmatpush1.msra.mxu0 0.0
        %2140 = vmatprep.subr.mxu0 0.0
        %2141 = vmatpush1.msra.mxu0 0.0
        %2142 = vmatprep.subr.mxu0 0.0
        %2143 = vmatpush1.msra.mxu0 0.0
        %2144 = vmatprep.subr.mxu0 0.0
        %2145 = vmatpush1.msra.mxu0 0.0
        %2146 = vmatprep.subr.mxu0 0.0
        %2147 = vmatpush1.msra.mxu0 0.0
        %2148 = vmatprep.subr.mxu0 0.0
        %2149 = vmatpush1.msra.mxu0 0.0
        %2150 = vmatprep.subr.mxu0 0.0
        %2151 = vmatpush1.msra.mxu0 0.0
        %2152 = vmatprep.subr.mxu0 0.0
        %2153 = vmatpush1.msra.mxu0 0.0
        %2154 = vmatprep.subr.mxu0 0.0
        %2155 = vmatpush1.msra.mxu0 0.0
        %2156 = vmatprep.subr.mxu0 0.0
        %2157 = vmatpush1.msra.mxu0 0.0
        %2158 = vmatprep.mubr.f32.mxu0 0.0
        %2159 = vmatmul.mubr.f32.gmra.mrb[0].mxu0 %v2092
        %v2160 = vpop.f32.mrb[0].mxu0
        %v2161 = vadd.f32 %v2088, %v2160
        %v2162 = vpop.f32.mrb[0].mxu0
        %2163 = vdwg.mxu0
        %s2164 = scalar_lea.vmem %s8, 1
        %v2165 = vld [vmem:[%s2164] sm:$0x1]
        %v2167 = vlaneseq
        %v2168 = vshrl.u32 %v2167, 7
        %v2169 = vsub.s32 0, %v2168
        %v2170 = vrot.slane %v2165, %v2169
        %v2172 = vadd.f32 %v2161, %v2170
        %v2173 = vmul.f32 %v1940, 0.5
        %v2174 = vadd.f32 %v1504, %v2172
        %s2175 = scalar_lea.vmem %s13, 1
        %v2176 = vld [vmem:[%s2175] sm:$0x1]
        %s2177 = scalar_lea.vmem %s14, 1
        %v2178 = vld [vmem:[%s2177] sm:$0x1]
        %v2179 = vsel %vm636, %v2174, 0.0
        %2180 = vadd.xlane.f32.xlu0 %v2179
        %v2181 = vpop.xlane.xlu0 %2180
        %v2182 = vmul.f32 %v2181, %v1288
        %v2183 = vsub.f32 %v2174, %v2182
        %v2184 = vmul.f32 %v2183, %v2183
        %v2185 = vsel %vm636, %v2184, 0.0
        %2186 = vadd.xlane.f32.xlu0 %v2185
        %v2187 = vpop.xlane.xlu0 %2186
        %v2188 = vmul.f32 %v2187, %v1288
        %v2189 = vadd.f32 %v2188, 1e-05
        %v2190 = vrsqrt.pop %v2189
        %v2191 = vmul.f32 %v2183, %v2190
        %v2193 = vlaneseq
        %v2194 = vshrl.u32 %v2193, 7
        %v2195 = vsub.s32 0, %v2194
        %v2196 = vrot.slane %v2176, %v2195
        %v2198 = vmul.f32 %v2191, %v2196
        %v2200 = vlaneseq
        %v2201 = vshrl.u32 %v2200, 7
        %v2202 = vsub.s32 0, %v2201
        %v2203 = vrot.slane %v2178, %v2202
        %v2205 = vadd.f32 %v2198, %v2203
        %s2206 = scalar_lea.vmem %s10, 1
        %v2207 = vld [vmem:[%s2206] sm:$0x1]
        %v2209 = vlaneseq
        %v2210 = vshrl.u32 %v2209, 7
        %v2211 = vsub.s32 0, %v2210
        %v2212 = vrot.slane %v2207, %v2211
        %v2215 = vsel %vm636, %v2205, 0
        %2217 = vmatprep.subr.mxu0 0.0
        %2218 = vmatpush1.msra.mxu0 %v1515
        %2219 = vmatprep.subr.mxu0 0.0
        %2220 = vmatpush1.msra.mxu0 %v1516
        %2221 = vmatprep.subr.mxu0 0.0
        %2222 = vmatpush1.msra.mxu0 0.0
        %2223 = vmatprep.subr.mxu0 0.0
        %2224 = vmatpush1.msra.mxu0 0.0
        %2225 = vmatprep.subr.mxu0 0.0
        %2226 = vmatpush1.msra.mxu0 0.0
        %2227 = vmatprep.subr.mxu0 0.0
        %2228 = vmatpush1.msra.mxu0 0.0
        %2229 = vmatprep.subr.mxu0 0.0
        %2230 = vmatpush1.msra.mxu0 0.0
        %2231 = vmatprep.subr.mxu0 0.0
        %2232 = vmatpush1.msra.mxu0 0.0
        %2233 = vmatprep.subr.mxu0 0.0
        %2234 = vmatpush1.msra.mxu0 0.0
        %2235 = vmatprep.subr.mxu0 0.0
        %2236 = vmatpush1.msra.mxu0 0.0
        %2237 = vmatprep.subr.mxu0 0.0
        %2238 = vmatpush1.msra.mxu0 0.0
        %2239 = vmatprep.subr.mxu0 0.0
        %2240 = vmatpush1.msra.mxu0 0.0
        %2241 = vmatprep.subr.mxu0 0.0
        %2242 = vmatpush1.msra.mxu0 0.0
        %2243 = vmatprep.subr.mxu0 0.0
        %2244 = vmatpush1.msra.mxu0 0.0
        %2245 = vmatprep.subr.mxu0 0.0
        %2246 = vmatpush1.msra.mxu0 0.0
        %2247 = vmatprep.subr.mxu0 0.0
        %2248 = vmatpush1.msra.mxu0 0.0
        %2249 = vmatprep.subr.mxu0 0.0
        %2250 = vmatpush1.msra.mxu0 0.0
        %2251 = vmatprep.subr.mxu0 0.0
        %2252 = vmatpush1.msra.mxu0 0.0
        %2253 = vmatprep.subr.mxu0 0.0
        %2254 = vmatpush1.msra.mxu0 0.0
        %2255 = vmatprep.subr.mxu0 0.0
        %2256 = vmatpush1.msra.mxu0 0.0
        %2257 = vmatprep.subr.mxu0 0.0
        %2258 = vmatpush1.msra.mxu0 0.0
        %2259 = vmatprep.subr.mxu0 0.0
        %2260 = vmatpush1.msra.mxu0 0.0
        %2261 = vmatprep.subr.mxu0 0.0
        %2262 = vmatpush1.msra.mxu0 0.0
        %2263 = vmatprep.subr.mxu0 0.0
        %2264 = vmatpush1.msra.mxu0 0.0
        %2265 = vmatprep.subr.mxu0 0.0
        %2266 = vmatpush1.msra.mxu0 0.0
        %2267 = vmatprep.subr.mxu0 0.0
        %2268 = vmatpush1.msra.mxu0 0.0
        %2269 = vmatprep.subr.mxu0 0.0
        %2270 = vmatpush1.msra.mxu0 0.0
        %2271 = vmatprep.subr.mxu0 0.0
        %2272 = vmatpush1.msra.mxu0 0.0
        %2273 = vmatprep.subr.mxu0 0.0
        %2274 = vmatpush1.msra.mxu0 0.0
        %2275 = vmatprep.subr.mxu0 0.0
        %2276 = vmatpush1.msra.mxu0 0.0
        %2277 = vmatprep.subr.mxu0 0.0
        %2278 = vmatpush1.msra.mxu0 0.0
        %2279 = vmatprep.subr.mxu0 0.0
        %2280 = vmatpush1.msra.mxu0 0.0
        %2281 = vmatprep.mubr.f32.mxu0 0.0
        %2282 = vmatmul.mubr.f32.gmra.mrb[0].mxu0 %v2215
        %v2283 = vpop.f32.mrb[0].mxu0
        %v2284 = vadd.f32 %v2212, %v2283
        %v2285 = vpop.f32.mrb[0].mxu0
        %2286 = vdwg.mxu0
        %v2287 = vmax.f32 %v2284, 0.0
        %s2288 = scalar_lea.vmem %s12, 1
        %v2289 = vld [vmem:[%s2288] sm:$0x1]
        %v2291 = vlaneseq
        %v2292 = vshrl.u32 %v2291, 7
        %v2293 = vsub.s32 0, %v2292
        %v2294 = vrot.slane %v2289, %v2293
        %v2297 = vsel %vm1401, %v2287, 0
        %2299 = vmatprep.subr.mxu0 0.0
        %2300 = vmatpush1.msra.mxu0 %v1518
        %2301 = vmatprep.subr.mxu0 0.0
        %2302 = vmatpush1.msra.mxu0 %v1519
        %2303 = vmatprep.subr.mxu0 0.0
        %2304 = vmatpush1.msra.mxu0 %v1520
        %2305 = vmatprep.subr.mxu0 0.0
        %2306 = vmatpush1.msra.mxu0 %v1521
        %2307 = vmatprep.subr.mxu0 0.0
        %2308 = vmatpush1.msra.mxu0 0.0
        %2309 = vmatprep.subr.mxu0 0.0
        %2310 = vmatpush1.msra.mxu0 0.0
        %2311 = vmatprep.subr.mxu0 0.0
        %2312 = vmatpush1.msra.mxu0 0.0
        %2313 = vmatprep.subr.mxu0 0.0
        %2314 = vmatpush1.msra.mxu0 0.0
        %2315 = vmatprep.subr.mxu0 0.0
        %2316 = vmatpush1.msra.mxu0 0.0
        %2317 = vmatprep.subr.mxu0 0.0
        %2318 = vmatpush1.msra.mxu0 0.0
        %2319 = vmatprep.subr.mxu0 0.0
        %2320 = vmatpush1.msra.mxu0 0.0
        %2321 = vmatprep.subr.mxu0 0.0
        %2322 = vmatpush1.msra.mxu0 0.0
        %2323 = vmatprep.subr.mxu0 0.0
        %2324 = vmatpush1.msra.mxu0 0.0
        %2325 = vmatprep.subr.mxu0 0.0
        %2326 = vmatpush1.msra.mxu0 0.0
        %2327 = vmatprep.subr.mxu0 0.0
        %2328 = vmatpush1.msra.mxu0 0.0
        %2329 = vmatprep.subr.mxu0 0.0
        %2330 = vmatpush1.msra.mxu0 0.0
        %2331 = vmatprep.subr.mxu0 0.0
        %2332 = vmatpush1.msra.mxu0 0.0
        %2333 = vmatprep.subr.mxu0 0.0
        %2334 = vmatpush1.msra.mxu0 0.0
        %2335 = vmatprep.subr.mxu0 0.0
        %2336 = vmatpush1.msra.mxu0 0.0
        %2337 = vmatprep.subr.mxu0 0.0
        %2338 = vmatpush1.msra.mxu0 0.0
        %2339 = vmatprep.subr.mxu0 0.0
        %2340 = vmatpush1.msra.mxu0 0.0
        %2341 = vmatprep.subr.mxu0 0.0
        %2342 = vmatpush1.msra.mxu0 0.0
        %2343 = vmatprep.subr.mxu0 0.0
        %2344 = vmatpush1.msra.mxu0 0.0
        %2345 = vmatprep.subr.mxu0 0.0
        %2346 = vmatpush1.msra.mxu0 0.0
        %2347 = vmatprep.subr.mxu0 0.0
        %2348 = vmatpush1.msra.mxu0 0.0
        %2349 = vmatprep.subr.mxu0 0.0
        %2350 = vmatpush1.msra.mxu0 0.0
        %2351 = vmatprep.subr.mxu0 0.0
        %2352 = vmatpush1.msra.mxu0 0.0
        %2353 = vmatprep.subr.mxu0 0.0
        %2354 = vmatpush1.msra.mxu0 0.0
        %2355 = vmatprep.subr.mxu0 0.0
        %2356 = vmatpush1.msra.mxu0 0.0
        %2357 = vmatprep.subr.mxu0 0.0
        %2358 = vmatpush1.msra.mxu0 0.0
        %2359 = vmatprep.subr.mxu0 0.0
        %2360 = vmatpush1.msra.mxu0 0.0
        %2361 = vmatprep.subr.mxu0 0.0
        %2362 = vmatpush1.msra.mxu0 0.0
        %2363 = vmatprep.mubr.f32.mxu0 0.0
        %2364 = vmatmul.mubr.f32.gmra.mrb[0].mxu0 %v2297
        %v2365 = vpop.f32.mrb[0].mxu0
        %v2366 = vadd.f32 %v2294, %v2365
        %v2367 = vpop.f32.mrb[0].mxu0
        %2368 = vdwg.mxu0
        %v2369 = vadd.f32 %v2205, %v2366
        %s2370 = scalar_lea.vmem %s15, 1
        %v2371 = vld [vmem:[%s2370] sm:$0x1]
        %s2372 = scalar_lea.vmem %s16, 1
        %v2373 = vld [vmem:[%s2372] sm:$0x1]
        %v2374 = vsel %vm636, %v2369, 0.0
        %2375 = vadd.xlane.f32.xlu0 %v2374
        %v2376 = vpop.xlane.xlu0 %2375
        %v2377 = vmul.f32 %v2376, %v1288
        %v2378 = vsub.f32 %v2369, %v2377
        %v2379 = vmul.f32 %v2378, %v2378
        %v2380 = vsel %vm636, %v2379, 0.0
        %2381 = vadd.xlane.f32.xlu0 %v2380
        %v2382 = vpop.xlane.xlu0 %2381
        %v2383 = vmul.f32 %v2382, %v1288
        %v2384 = vadd.f32 %v2383, 1e-05
        %v2385 = vrsqrt.pop %v2384
        %v2386 = vmul.f32 %v2378, %v2385
        %v2388 = vlaneseq
        %v2389 = vshrl.u32 %v2388, 7
        %v2390 = vsub.s32 0, %v2389
        %v2391 = vrot.slane %v2371, %v2390
        %v2393 = vmul.f32 %v2386, %v2391
        %v2395 = vlaneseq
        %v2396 = vshrl.u32 %v2395, 7
        %v2397 = vsub.s32 0, %v2396
        %v2398 = vrot.slane %v2373, %v2397
        %v2400 = vadd.f32 %v2393, %v2398
        %2401 = vst.msk [vmem:[%s612] sm:$0xff] %vm636, %v2400
        %2402 = vst.msk [vmem:[%s597] sm:$0xff] %vm793, %v2173
        %p2403 = scmp.lt.s32.totalorder %s33, 1
        %s2404 = scalar_select %p2403, %s33, 1
        %s2405 = smul.addr %s2404, 8
        %s2406 = scalar_lea.vmem %s17, %s2405
        %s2407 = sand.u32 %s439, 1
        %s2408 = scalar_lea.sflag [#allocation3], %s2407
        %s2409 = sand.u32 %s439, 1
        %s2410 = smul.addr %s2409, 8
        %s2411 = scalar_lea.vmem [#allocation2], %s2410
        // Predicated region
        $region89: #{allen_transformer2_forward.2} parent=87 // pred_check
          %p2412 = pneg %p423
        $region90: #{allen_transformer2_forward.2} parent=87 // pred_check_branch
          %2414 = sbr.rel (%p2412) target = $region92
        $region91: #{allen_transformer2_forward.2} parent=87 // pred_region
          _
        $region92: #{allen_transformer2_forward.2} parent=87 // pred_fallthru
          _
        // Predicated region
        $region93: #{allen_transformer2_forward.2} parent=87 // pred_check
          %p2415 = pneg %p449
        $region94: #{allen_transformer2_forward.2} parent=87 // pred_check_branch
          %2417 = sbr.rel (%p2415) target = $region96
        $region95: #{allen_transformer2_forward.2} parent=87 // pred_region
          %s2419 = ssub.s32 128, 128
          %2420 = vsyncadd %s2408, %s2419
          %s2421 = smul.addr %s33, 128
          %s2422 = scalar_lea.hbm %s18, %s2421
          %s2424 = sshll.u32 %s2411, 4
          %s2425 = int_to_ptr.vmem [resolvable:$true] %s2424
          %2427 = dma.vmem_to_hbm [thread:$0]  %s2425, 128, %s2422, %s2408
        $region96: #{allen_transformer2_forward.2} parent=87 // pred_fallthru
          _
      $region88: #{allen_transformer2_forward.2} parent=5 // pred_fallthru
        _
      %p2428 = scmp.le.s32.totalorder 2, %s28
      // Predicated region
      $region97: #{allen_transformer2_forward.2} parent=5 // pred_check
        %p2429 = pneg %p2428
      $region98: #{allen_transformer2_forward.2} parent=5 // pred_check_branch
        %2431 = sbr.rel (%p2429) target = $region100
      $region99: #{allen_transformer2_forward.2} parent=5 // pred_region
        %s2432 = ssub.s32 %s28, 2
        // Predicated region
        $region101: #{allen_transformer2_forward.2} parent=99 // pred_check
          %p2433 = pneg %p429
        $region102: #{allen_transformer2_forward.2} parent=99 // pred_check_branch
          %2435 = sbr.rel (%p2433) target = $region104
        $region103: #{allen_transformer2_forward.2} parent=99 // pred_region
          %p2436 = scmp.lt.s32.totalorder %s34, 1
          %s2437 = scalar_select %p2436, %s34, 1
          %s2438 = smul.addr %s2437, 8
          %s2439 = scalar_lea.vmem %s17, %s2438
        $region104: #{allen_transformer2_forward.2} parent=99 // pred_fallthru
          _
        // Predicated region
        $region105: #{allen_transformer2_forward.2} parent=99 // pred_check
          %p2440 = pneg %p455
        $region106: #{allen_transformer2_forward.2} parent=99 // pred_check_branch
          %2442 = sbr.rel (%p2440) target = $region108
        $region107: #{allen_transformer2_forward.2} parent=99 // pred_region
          %s2443 = sand.u32 %s440, 1
          %s2444 = scalar_lea.sflag [#allocation3], %s2443
          %s2445 = sand.u32 %s440, 1
          %s2446 = smul.addr %s2445, 8
          %s2447 = scalar_lea.vmem [#allocation2], %s2446
          %2448 = dma.done %s2444, 128
        $region108: #{allen_transformer2_forward.2} parent=99 // pred_fallthru
          _
      $region100: #{allen_transformer2_forward.2} parent=5 // pred_fallthru
        _
    $region6: #{allen_transformer2_forward.2} parent=1 // loop_footer
      %s32 = sadd.s32 1, %s28
    $region7: #{allen_transformer2_forward.2} parent=1 // loop_footer_branch
      %27 = sbr.rel target = $region3
    $region8: #{allen_transformer2_forward.2} parent=1 // loop_exit
      _
    %2449 = vsyncpa [#allocation3], 1
    %s2450 = scalar_lea.sflag [#allocation3], 1
    %2451 = vsyncpa %s2450, 1

</llo_original>
